<compile_context>
chip_gen: v5e
topology: v5e:2x2
jax: 0.10.0
libtpu: 0.0.40
codegen_flags: <defaults>
</compile_context>

<pallas_src>
import functools

import jax
import jax.numpy as jnp
from jax.experimental import pallas as pl
from jax.experimental.pallas import tpu as pltpu


def _im2col(xp, h_out, w_out, stride, c):
    """Build the (h_out*w_out, 9*c) patch matrix from a zero-padded (Hp, Wp, c) tile."""
    taps = []
    for kh in range(3):
        for kw in range(3):
            taps.append(
                xp[kh:kh + (h_out - 1) * stride + 1:stride,
                   kw:kw + (w_out - 1) * stride + 1:stride, :])
    patch = jnp.concatenate(taps, axis=-1)          # (h_out, w_out, 9*c)
    return patch.reshape(h_out * w_out, 9 * c)      # contiguous collapse


def _fused_block_kernel(x_ref, w1_ref, b1_ref, w2_ref, b2_ref, o_ref,
                        xpad_ref, ypad_ref, *, stride, H, W, H1, W1):
    """One image per grid step: conv3x3(stride) + bias + relu + conv3x3(1) + bias.

    x_ref  : (1, H, W, Cin)        NHWC input tile (compute dtype)
    w1_ref : (9*Cin, Cmed)         tap-major packed weights (compute dtype)
    b1_ref : (1, Cmed)             f32 bias
    w2_ref : (9*Cmed, Cout)        tap-major packed weights (compute dtype)
    b2_ref : (1, Cout)             f32 bias
    o_ref  : (1, H1*W1, Cout)      f32 output slab
    xpad_ref : (H+2, W+2, Cin)     f32 VMEM scratch (zero-padded input)
    ypad_ref : (H1+2, W1+2, Cmed)  f32 VMEM scratch (zero-padded intermediate)
    """
    cdt = w1_ref.dtype
    Cin = x_ref.shape[-1]
    Cmed = w1_ref.shape[-1]

    # ---- pad input into VMEM scratch (no HBM pad copy) ----
    xpad_ref[...] = jnp.zeros_like(xpad_ref)
    xpad_ref[pl.ds(1, H), pl.ds(1, W), :] = (
        x_ref[...].reshape(H, W, Cin).astype(jnp.float32))

    # ---- conv1: single K = 9*Cin MXU matmul, f32 accumulation ----
    patch1 = _im2col(xpad_ref[...], H1, W1, stride, Cin)
    acc1 = jnp.dot(patch1.astype(cdt), w1_ref[...],
                   preferred_element_type=jnp.float32)
    y1 = jnp.maximum(acc1 + b1_ref[...], 0.0)        # (H1*W1, Cmed) f32

    # ---- pad intermediate in VMEM (never written to HBM) ----
    ypad_ref[...] = jnp.zeros_like(ypad_ref)
    ypad_ref[pl.ds(1, H1), pl.ds(1, W1), :] = y1.reshape(H1, W1, Cmed)

    # ---- conv2: stride 1, single K = 9*Cmed MXU matmul ----
    patch2 = _im2col(ypad_ref[...], H1, W1, 1, Cmed)
    acc2 = jnp.dot(patch2.astype(cdt), w2_ref[...],
                   preferred_element_type=jnp.float32)
    o_ref[...] = (acc2 + b2_ref[...]).reshape(1, H1 * W1, -1).astype(o_ref.dtype)


def building_block_forward(x_nchw, params, *, is_downsample=False,
                           compute_dtype=jnp.float32):
    """Pallas implementation of BuildingBlock.forward.  Input/output are NCHW f32.

    compute_dtype: dtype of the MXU operands (use jnp.bfloat16 on v6e/v7x for
    2x MXU rate and half the activation/weight HBM bytes; accumulation is
    always f32, so numerics stay within conv tolerance).
    """
    stride = 2 if is_downsample else 1
    w1, b1, w2, b2 = params["w1"], params["b1"], params["w2"], params["b2"]
    Cin, Cmed = w1.shape[2], w1.shape[3]
    Cout = w2.shape[3]
    B, _, H, W = x_nchw.shape
    H1 = (H + 2 - 3) // stride + 1
    W1 = (W + 2 - 3) // stride + 1

    # NCHW -> NHWC (cast fused with the transpose copy).
    x = jnp.transpose(x_nchw, (0, 2, 3, 1)).astype(compute_dtype)
    # Tap-major packed weights: HWIO (3,3,Cin,Cout) -> (9*Cin, Cout).
    w1p = w1.reshape(9 * Cin, Cmed).astype(compute_dtype)
    w2p = w2.reshape(9 * Cmed, Cout).astype(compute_dtype)
    b1r = b1.reshape(1, Cmed).astype(jnp.float32)
    b2r = b2.reshape(1, Cout).astype(jnp.float32)

    kernel = functools.partial(_fused_block_kernel, stride=stride,
                               H=H, W=W, H1=H1, W1=W1)

    itemsize = jnp.dtype(compute_dtype).itemsize
    flops = 2 * B * H1 * W1 * 9 * Cin * Cmed + 2 * B * H1 * W1 * 9 * Cmed * Cout
    bytes_accessed = (B * H * W * Cin * itemsize                 # input
                      + (9 * Cin * Cmed + 9 * Cmed * Cout) * itemsize  # weights
                      + (Cmed + Cout) * 4                        # biases
                      + B * H1 * W1 * Cout * 4)                  # output
    block_bytes = (H * W * Cin * itemsize + H1 * W1 * Cout * 4
                   + (9 * Cin * Cmed + 9 * Cmed * Cout) * itemsize
                   + (Cmed + Cout) * 4)
    scratch_bytes = ((H + 2) * (W + 2) * Cin + (H1 + 2) * (W1 + 2) * Cmed) * 4
    # Double-buffered blocks + scratch + headroom, clamped under v7x's 64 MiB.
    vmem_limit = int(min(max(4 * block_bytes + 2 * scratch_bytes, 32 * 1024 * 1024),
                         56 * 1024 * 1024))

    out = pl.pallas_call(
        kernel,
        out_shape=jax.ShapeDtypeStruct((B, H1 * W1, Cout), jnp.float32),
        grid=(B,),
        in_specs=[
            pl.BlockSpec((1, H, W, Cin), lambda b: (b, 0, 0, 0)),
            pl.BlockSpec((9 * Cin, Cmed), lambda b: (0, 0)),
            pl.BlockSpec((1, Cmed), lambda b: (0, 0)),
            pl.BlockSpec((9 * Cmed, Cout), lambda b: (0, 0)),
            pl.BlockSpec((1, Cout), lambda b: (0, 0)),
        ],
        out_specs=pl.BlockSpec((1, H1 * W1, Cout), lambda b: (b, 0, 0)),
        scratch_shapes=[
            pltpu.VMEM((H + 2, W + 2, Cin), jnp.float32),
            pltpu.VMEM((H1 + 2, W1 + 2, Cmed), jnp.float32),
        ],
        compiler_params=pltpu.CompilerParams(
            dimension_semantics=("parallel",),
            vmem_limit_bytes=vmem_limit),
        cost_estimate=pl.CostEstimate(flops=int(flops), transcendentals=0,
                                      bytes_accessed=int(bytes_accessed)),
    )(x, w1p, b1r, w2p, b2r)

    # (B, H1*W1, Cout) -> NCHW
    return jnp.transpose(out.reshape(B, H1, W1, Cout), (0, 3, 1, 2))


def init_params(key, in_channels, med_channels, out_channels):
    """Deterministic synthetic init (kaiming-uniform-like scale, like nn.Conv2d)."""
    k1, k2, k3, k4 = jax.random.split(key, 4)
    fan1 = in_channels * 9
    fan2 = med_channels * 9
    lim1 = 1.0 / jnp.sqrt(fan1)
    lim2 = 1.0 / jnp.sqrt(fan2)
    # Weights stored HWIO: (3, 3, Cin, Cout)
    w1 = jax.random.uniform(k1, (3, 3, in_channels, med_channels),
                            jnp.float32, -lim1, lim1)
    b1 = jax.random.uniform(k2, (med_channels,), jnp.float32, -lim1, lim1)
    w2 = jax.random.uniform(k3, (3, 3, med_channels, out_channels),
                            jnp.float32, -lim2, lim2)
    b2 = jax.random.uniform(k4, (out_channels,), jnp.float32, -lim2, lim2)
    return {"w1": w1, "b1": b1, "w2": w2, "b2": b2}


def _reference_forward(x_nchw, params, *, is_downsample=False):
    """Pure-JAX reference (lax conv, f32) for correctness check."""
    stride = 2 if is_downsample else 1
    x = jnp.transpose(x_nchw, (0, 2, 3, 1)).astype(jnp.float32)
    y = jax.lax.conv_general_dilated(
        x, params["w1"], (stride, stride), ((1, 1), (1, 1)),
        dimension_numbers=("NHWC", "HWIO", "NHWC")) + params["b1"]
    y = jnp.maximum(y, 0.0)
    y = jax.lax.conv_general_dilated(
        y, params["w2"], (1, 1), ((1, 1), (1, 1)),
        dimension_numbers=("NHWC", "HWIO", "NHWC")) + params["b2"]
    return jnp.transpose(y, (0, 3, 1, 2))


if __name__ == "__main__":
    key = jax.random.PRNGKey(0)
    kx, kp = jax.random.split(key)

    batch, in_ch, med_ch, out_ch, hw = 2, 4, 8, 4, 16
    x = jax.random.normal(kx, (batch, in_ch, hw, hw), jnp.float32)   # NCHW
    params = init_params(kp, in_ch, med_ch, out_ch)

    ref = jax.block_until_ready(_reference_forward(x, params, is_downsample=False))

    # f32 operand path (exact module semantics).
    out_f32 = jax.block_until_ready(
        building_block_forward(x, params, is_downsample=False,
                               compute_dtype=jnp.float32))
    assert out_f32.shape == (batch, out_ch, hw, hw), out_f32.shape
    err = float(jnp.max(jnp.abs(out_f32 - ref)))
    assert err < 1e-4, err

    # bf16 operand / f32 accumulate path (preferred on v6e/v7x).
    out_bf16 = jax.block_until_ready(
        building_block_forward(x, params, is_downsample=False,
                               compute_dtype=jnp.bfloat16))
    err_bf = float(jnp.max(jnp.abs(out_bf16 - ref)))
    assert err_bf < 3e-2, err_bf

    print("KERNEL_OK")
</pallas_src>

<mosaic_0001>
module attributes {stable_mosaic.version = 11 : i64} {
  func.func @_fused_block_kernel(%arg0: i32, %arg1: memref<1x16x16x4xf32, #tpu.memory_space<vmem>>, %arg2: memref<36x8xf32, #tpu.memory_space<vmem>>, %arg3: memref<1x8xf32, #tpu.memory_space<vmem>>, %arg4: memref<72x4xf32, #tpu.memory_space<vmem>>, %arg5: memref<1x4xf32, #tpu.memory_space<vmem>>, %arg6: memref<1x256x4xf32, #tpu.memory_space<vmem>>, %arg7: memref<18x18x4xf32, #tpu.memory_space<vmem>>, %arg8: memref<18x18x8xf32, #tpu.memory_space<vmem>>) attributes {dimension_semantics = [#tpu.dimension_semantics<parallel>], iteration_bounds = array<i64: 2>, scalar_prefetch = 0 : i64, scratch_operands = 2 : i64, tpu.core_type = #tpu.core_type<tc>, window_params = [{transform_indices = @transform_0, window_bounds = array<i64: 1, 16, 16, 4>}, {pipeline_mode = #tpu.pipeline_mode<synchronous>, transform_indices = @transform_1, window_bounds = array<i64: 36, 8>}, {pipeline_mode = #tpu.pipeline_mode<synchronous>, transform_indices = @transform_2, window_bounds = array<i64: 1, 8>}, {pipeline_mode = #tpu.pipeline_mode<synchronous>, transform_indices = @transform_3, window_bounds = array<i64: 72, 4>}, {pipeline_mode = #tpu.pipeline_mode<synchronous>, transform_indices = @transform_4, window_bounds = array<i64: 1, 4>}, {transform_indices = @transform_5, window_bounds = array<i64: 1, 256, 4>}]} {
    %cst = arith.constant 0.000000e+00 : f32
    %0 = vector.broadcast %cst : f32 to vector<18x18x4xf32>
    %c0 = arith.constant 0 : index
    %c0_0 = arith.constant 0 : index
    %c0_1 = arith.constant 0 : index
    %1 = vector.load %arg7[%c0, %c0_0, %c0_1] : memref<18x18x4xf32, #tpu.memory_space<vmem>>, vector<18x18x4xf32>
    tpu.vector_store %arg7[%c0, %c0_0, %c0_1], %0 {strides = array<i32>} : memref<18x18x4xf32, #tpu.memory_space<vmem>>, vector<18x18x4xf32>,
    %c0_2 = arith.constant 0 : index
    %c0_3 = arith.constant 0 : index
    %c0_4 = arith.constant 0 : index
    %c0_5 = arith.constant 0 : index
    %2 = vector.load %arg1[%c0_2, %c0_3, %c0_4, %c0_5] : memref<1x16x16x4xf32, #tpu.memory_space<vmem>>, vector<1x16x16x4xf32>
    %3 = vector.shape_cast %2 : vector<1x16x16x4xf32> to vector<16x16x4xf32>
    %c1 = arith.constant 1 : index
    %c1_6 = arith.constant 1 : index
    %c0_7 = arith.constant 0 : index
    %4 = vector.load %arg7[%c1, %c1_6, %c0_7] : memref<18x18x4xf32, #tpu.memory_space<vmem>>, vector<16x16x4xf32>
    tpu.vector_store %arg7[%c1, %c1_6, %c0_7], %3 {strides = array<i32>} : memref<18x18x4xf32, #tpu.memory_space<vmem>>, vector<16x16x4xf32>,
    %c0_8 = arith.constant 0 : index
    %c0_9 = arith.constant 0 : index
    %c0_10 = arith.constant 0 : index
    %5 = vector.load %arg7[%c0_8, %c0_9, %c0_10] : memref<18x18x4xf32, #tpu.memory_space<vmem>>, vector<18x18x4xf32>
    %6 = vector.extract_strided_slice %5 {offsets = [0, 0, 0], sizes = [16, 16, 4], strides = [1, 1, 1]} : vector<18x18x4xf32> to vector<16x16x4xf32>
    %7 = vector.extract_strided_slice %5 {offsets = [0, 1, 0], sizes = [16, 16, 4], strides = [1, 1, 1]} : vector<18x18x4xf32> to vector<16x16x4xf32>
    %8 = vector.extract_strided_slice %5 {offsets = [0, 2, 0], sizes = [16, 16, 4], strides = [1, 1, 1]} : vector<18x18x4xf32> to vector<16x16x4xf32>
    %9 = vector.extract_strided_slice %5 {offsets = [1, 0, 0], sizes = [16, 16, 4], strides = [1, 1, 1]} : vector<18x18x4xf32> to vector<16x16x4xf32>
    %10 = vector.extract_strided_slice %5 {offsets = [1, 1, 0], sizes = [16, 16, 4], strides = [1, 1, 1]} : vector<18x18x4xf32> to vector<16x16x4xf32>
    %11 = vector.extract_strided_slice %5 {offsets = [1, 2, 0], sizes = [16, 16, 4], strides = [1, 1, 1]} : vector<18x18x4xf32> to vector<16x16x4xf32>
    %12 = vector.extract_strided_slice %5 {offsets = [2, 0, 0], sizes = [16, 16, 4], strides = [1, 1, 1]} : vector<18x18x4xf32> to vector<16x16x4xf32>
    %13 = vector.extract_strided_slice %5 {offsets = [2, 1, 0], sizes = [16, 16, 4], strides = [1, 1, 1]} : vector<18x18x4xf32> to vector<16x16x4xf32>
    %14 = vector.extract_strided_slice %5 {offsets = [2, 2, 0], sizes = [16, 16, 4], strides = [1, 1, 1]} : vector<18x18x4xf32> to vector<16x16x4xf32>
    %15 = tpu.concatenate %6, %7, %8, %9, %10, %11, %12, %13, %14 in 2 : vector<16x16x4xf32>, vector<16x16x4xf32>, vector<16x16x4xf32>, vector<16x16x4xf32>, vector<16x16x4xf32>, vector<16x16x4xf32>, vector<16x16x4xf32>, vector<16x16x4xf32>, vector<16x16x4xf32> -> vector<16x16x36xf32>
    %16 = vector.shape_cast %15 : vector<16x16x36xf32> to vector<256x36xf32>
    %c0_11 = arith.constant 0 : index
    %c0_12 = arith.constant 0 : index
    %17 = vector.load %arg2[%c0_11, %c0_12] : memref<36x8xf32, #tpu.memory_space<vmem>>, vector<36x8xf32>
    %cst_13 = arith.constant dense<0.000000e+00> : vector<256x8xf32>
    %18 = tpu.matmul %16, %17, %cst_13 {dimension_numbers = #tpu.dot_dimension_numbers<[1], [0], [0], [1], [0, 0, 1, 1], [], []>} : vector<256x36xf32>, vector<36x8xf32>, vector<256x8xf32> -> vector<256x8xf32>
    %c0_14 = arith.constant 0 : index
    %c0_15 = arith.constant 0 : index
    %19 = vector.load %arg3[%c0_14, %c0_15] : memref<1x8xf32, #tpu.memory_space<vmem>>, vector<1x8xf32>
    %20 = vector.broadcast %19 : vector<1x8xf32> to vector<256x8xf32>
    %21 = arith.addf %18, %20 : vector<256x8xf32>
    %cst_16 = arith.constant 0.000000e+00 : f32
    %22 = vector.broadcast %cst_16 : f32 to vector<256x8xf32>
    %23 = arith.maximumf %21, %22 : vector<256x8xf32>
    %cst_17 = arith.constant 0.000000e+00 : f32
    %24 = vector.broadcast %cst_17 : f32 to vector<18x18x8xf32>
    %c0_18 = arith.constant 0 : index
    %c0_19 = arith.constant 0 : index
    %c0_20 = arith.constant 0 : index
    %25 = vector.load %arg8[%c0_18, %c0_19, %c0_20] : memref<18x18x8xf32, #tpu.memory_space<vmem>>, vector<18x18x8xf32>
    tpu.vector_store %arg8[%c0_18, %c0_19, %c0_20], %24 {strides = array<i32>} : memref<18x18x8xf32, #tpu.memory_space<vmem>>, vector<18x18x8xf32>,
    %26 = vector.shape_cast %23 : vector<256x8xf32> to vector<16x16x8xf32>
    %c1_21 = arith.constant 1 : index
    %c1_22 = arith.constant 1 : index
    %c0_23 = arith.constant 0 : index
    %27 = vector.load %arg8[%c1_21, %c1_22, %c0_23] : memref<18x18x8xf32, #tpu.memory_space<vmem>>, vector<16x16x8xf32>
    tpu.vector_store %arg8[%c1_21, %c1_22, %c0_23], %26 {strides = array<i32>} : memref<18x18x8xf32, #tpu.memory_space<vmem>>, vector<16x16x8xf32>,
    %c0_24 = arith.constant 0 : index
    %c0_25 = arith.constant 0 : index
    %c0_26 = arith.constant 0 : index
    %28 = vector.load %arg8[%c0_24, %c0_25, %c0_26] : memref<18x18x8xf32, #tpu.memory_space<vmem>>, vector<18x18x8xf32>
    %29 = vector.extract_strided_slice %28 {offsets = [0, 0, 0], sizes = [16, 16, 8], strides = [1, 1, 1]} : vector<18x18x8xf32> to vector<16x16x8xf32>
    %30 = vector.extract_strided_slice %28 {offsets = [0, 1, 0], sizes = [16, 16, 8], strides = [1, 1, 1]} : vector<18x18x8xf32> to vector<16x16x8xf32>
    %31 = vector.extract_strided_slice %28 {offsets = [0, 2, 0], sizes = [16, 16, 8], strides = [1, 1, 1]} : vector<18x18x8xf32> to vector<16x16x8xf32>
    %32 = vector.extract_strided_slice %28 {offsets = [1, 0, 0], sizes = [16, 16, 8], strides = [1, 1, 1]} : vector<18x18x8xf32> to vector<16x16x8xf32>
    %33 = vector.extract_strided_slice %28 {offsets = [1, 1, 0], sizes = [16, 16, 8], strides = [1, 1, 1]} : vector<18x18x8xf32> to vector<16x16x8xf32>
    %34 = vector.extract_strided_slice %28 {offsets = [1, 2, 0], sizes = [16, 16, 8], strides = [1, 1, 1]} : vector<18x18x8xf32> to vector<16x16x8xf32>
    %35 = vector.extract_strided_slice %28 {offsets = [2, 0, 0], sizes = [16, 16, 8], strides = [1, 1, 1]} : vector<18x18x8xf32> to vector<16x16x8xf32>
    %36 = vector.extract_strided_slice %28 {offsets = [2, 1, 0], sizes = [16, 16, 8], strides = [1, 1, 1]} : vector<18x18x8xf32> to vector<16x16x8xf32>
    %37 = vector.extract_strided_slice %28 {offsets = [2, 2, 0], sizes = [16, 16, 8], strides = [1, 1, 1]} : vector<18x18x8xf32> to vector<16x16x8xf32>
    %38 = tpu.concatenate %29, %30, %31, %32, %33, %34, %35, %36, %37 in 2 : vector<16x16x8xf32>, vector<16x16x8xf32>, vector<16x16x8xf32>, vector<16x16x8xf32>, vector<16x16x8xf32>, vector<16x16x8xf32>, vector<16x16x8xf32>, vector<16x16x8xf32>, vector<16x16x8xf32> -> vector<16x16x72xf32>
    %39 = vector.shape_cast %38 : vector<16x16x72xf32> to vector<256x72xf32>
    %c0_27 = arith.constant 0 : index
    %c0_28 = arith.constant 0 : index
    %40 = vector.load %arg4[%c0_27, %c0_28] : memref<72x4xf32, #tpu.memory_space<vmem>>, vector<72x4xf32>
    %cst_29 = arith.constant dense<0.000000e+00> : vector<256x4xf32>
    %41 = tpu.matmul %39, %40, %cst_29 {dimension_numbers = #tpu.dot_dimension_numbers<[1], [0], [0], [1], [0, 0, 1, 1], [], []>} : vector<256x72xf32>, vector<72x4xf32>, vector<256x4xf32> -> vector<256x4xf32>
    %c0_30 = arith.constant 0 : index
    %c0_31 = arith.constant 0 : index
    %42 = vector.load %arg5[%c0_30, %c0_31] : memref<1x4xf32, #tpu.memory_space<vmem>>, vector<1x4xf32>
    %43 = vector.broadcast %42 : vector<1x4xf32> to vector<256x4xf32>
    %44 = arith.addf %41, %43 : vector<256x4xf32>
    %45 = vector.shape_cast %44 : vector<256x4xf32> to vector<1x256x4xf32>
    %c0_32 = arith.constant 0 : index
    %c0_33 = arith.constant 0 : index
    %c0_34 = arith.constant 0 : index
    %46 = vector.load %arg6[%c0_32, %c0_33, %c0_34] : memref<1x256x4xf32, #tpu.memory_space<vmem>>, vector<1x256x4xf32>
    tpu.vector_store %arg6[%c0_32, %c0_33, %c0_34], %45 {strides = array<i32>} : memref<1x256x4xf32, #tpu.memory_space<vmem>>, vector<1x256x4xf32>,
    return
  }
  func.func @transform_0(%arg0: i32) -> (i32, i32, i32, i32) {
    %c0_i32 = arith.constant 0 : i32
    %c0_i32_0 = arith.constant 0 : i32
    %c0_i32_1 = arith.constant 0 : i32
    %c0_i32_2 = arith.constant 0 : i32
    return %arg0, %c0_i32, %c0_i32_0, %c0_i32_1 : i32, i32, i32, i32
  }
  func.func @transform_1(%arg0: i32) -> (i32, i32) {
    %c0_i32 = arith.constant 0 : i32
    %c0_i32_0 = arith.constant 0 : i32
    %c0_i32_1 = arith.constant 0 : i32
    return %c0_i32, %c0_i32_0 : i32, i32
  }
  func.func @transform_2(%arg0: i32) -> (i32, i32) {
    %c0_i32 = arith.constant 0 : i32
    %c0_i32_0 = arith.constant 0 : i32
    %c0_i32_1 = arith.constant 0 : i32
    return %c0_i32, %c0_i32_0 : i32, i32
  }
  func.func @transform_3(%arg0: i32) -> (i32, i32) {
    %c0_i32 = arith.constant 0 : i32
    %c0_i32_0 = arith.constant 0 : i32
    %c0_i32_1 = arith.constant 0 : i32
    return %c0_i32, %c0_i32_0 : i32, i32
  }
  func.func @transform_4(%arg0: i32) -> (i32, i32) {
    %c0_i32 = arith.constant 0 : i32
    %c0_i32_0 = arith.constant 0 : i32
    %c0_i32_1 = arith.constant 0 : i32
    return %c0_i32, %c0_i32_0 : i32, i32
  }
  func.func @transform_5(%arg0: i32) -> (i32, i32, i32) {
    %c0_i32 = arith.constant 0 : i32
    %c0_i32_0 = arith.constant 0 : i32
    %c0_i32_1 = arith.constant 0 : i32
    return %arg0, %c0_i32, %c0_i32_0 : i32, i32, i32
  }
}

</mosaic_0001>

<llo_original>
// kernel: tpu_custom_call.1
$region0: #{tpu_custom_call.1}
  #allocation0 [shape = 'u32[]', space=smem, size = 0x4, offset = 0x4, fixed_abs, tag = 'smem constant byte address 0x4 - core index']
  #allocation1 [shape = 'u32[72,128]{1,0:T(1,128)}', space=vmem, size = 0x9000, scoped, tag = 'internal scratch']
  #allocation2 [shape = 'f32[18,18,4]{2,1,0:T(8,128)}', space=vmem, size = 0x36000, scoped, tag = 'scratch operand']
  #allocation3 [shape = 'f32[18,18,8]{2,1,0:T(8,128)}', space=vmem, size = 0x36000, scoped, tag = 'scratch operand']
  %s0 = inlined_call_operand.vmem [shape: f32[2,16,16,4], index: 0, kind: input, shape index: {}]
  %s1 = inlined_call_operand.vmem [shape: f32[36,8], index: 1, kind: input, shape index: {}]
  %s2 = inlined_call_operand.vmem [shape: f32[1,8], index: 2, kind: input, shape index: {}]
  %s3 = inlined_call_operand.vmem [shape: f32[72,4], index: 3, kind: input, shape index: {}]
  %s4 = inlined_call_operand.vmem [shape: f32[1,4], index: 4, kind: input, shape index: {}]
  %s5 = inlined_call_operand.vmem [shape: f32[2,256,4], index: 5, kind: output, shape index: {}]
  %s6 = sld [smem:[#allocation0]]
  $region53: #{tpu_custom_call.1} parent=0
    _
  %s8 = ssub.s32 1, %s6
  %s9 = scalar_select 0, %s8, %s6
  loop: start=0, step=1, limit=4
  $region2: #{tpu_custom_call.1} parent=0 // loop_pre_header
    _
  $region3: #{tpu_custom_call.1} parent=0 // loop_header
    %s11 = sphi 0, %s15
    %p12 = scmp.ge.s32.totalorder %s11, 4
    %s21 = sphi 0, %s23
    %s24 = sphi 0, %s21
    %s25 = sphi 0, %s24
    %s41 = sphi 0, %s25
    %s45 = sphi 0, %s45
    %s47 = sphi 0, %s45
    %s48 = sphi 0, %s47
    %s62 = sphi 0, %s48
    %s66 = sphi 0, %s66
    %s68 = sphi 0, %s66
    %s69 = sphi 0, %s68
    %s83 = sphi 0, %s69
    %s87 = sphi 0, %s87
    %s89 = sphi 0, %s87
    %s90 = sphi 0, %s89
    %s104 = sphi 0, %s90
    %s108 = sphi 0, %s108
    %s110 = sphi 0, %s108
    %s111 = sphi 0, %s110
    %s125 = sphi 0, %s111
    %s131 = sphi 0, %s133
    %s134 = sphi 0, %s131
    %s135 = sphi 0, %s134
    %s151 = sphi 0, %s135
  $region4: #{tpu_custom_call.1} parent=0 // loop_header_branch
    %14 = sbr.rel (%p12) target = $region8
  $region5: #{tpu_custom_call.1} parent=0 // loop_body
    %s16 = ssub.s32 %s11, 1
    %s17 = ssub.s32 %s11, 2
    %s18 = sadd.s32 %s11, 1
    %s19 = ssub.s32 %s11, %s18
    %p20 = scmp.eq.s32.totalorder %s19, 0
    %s22 = sadd.s32 %s21, 1
    %s23 = scalar_select %p20, %s21, %s22
    %p26 = pneg %p20
    %p27 = scmp.eq.s32.totalorder %s11, 1
    %p28 = por %p26, %p27
    %p29 = scmp.ne.s32.totalorder %s21, %s24
    %p30 = scmp.eq.s32.totalorder %s11, 0
    %p31 = por %p29, %p30
    %p32 = scmp.ne.s32.totalorder %s21, %s24
    %p33 = scmp.eq.s32.totalorder %s16, 1
    %p34 = por %p32, %p33
    %p35 = scmp.ne.s32.totalorder %s24, %s25
    %p36 = scmp.eq.s32.totalorder %s16, 0
    %p37 = por %p35, %p36
    %p38 = scmp.ne.s32.totalorder %s24, %s25
    %p39 = scmp.eq.s32.totalorder %s17, 1
    %p40 = por %p38, %p39
    %p42 = scmp.ne.s32.totalorder %s25, %s41
    %p43 = scmp.eq.s32.totalorder %s17, 0
    %p44 = por %p42, %p43
    %s46 = sadd.s32 %s45, 1
    %p49 = scmp.eq.s32.totalorder %s11, 1
    %p50 = scmp.ne.s32.totalorder %s45, %s47
    %p51 = scmp.eq.s32.totalorder %s11, 0
    %p52 = por %p50, %p51
    %p53 = scmp.ne.s32.totalorder %s45, %s47
    %p54 = scmp.eq.s32.totalorder %s16, 1
    %p55 = por %p53, %p54
    %p56 = scmp.ne.s32.totalorder %s47, %s48
    %p57 = scmp.eq.s32.totalorder %s16, 0
    %p58 = por %p56, %p57
    %p59 = scmp.ne.s32.totalorder %s47, %s48
    %p60 = scmp.eq.s32.totalorder %s17, 1
    %p61 = por %p59, %p60
    %p63 = scmp.ne.s32.totalorder %s48, %s62
    %p64 = scmp.eq.s32.totalorder %s17, 0
    %p65 = por %p63, %p64
    %s67 = sadd.s32 %s66, 1
    %p70 = scmp.eq.s32.totalorder %s11, 1
    %p71 = scmp.ne.s32.totalorder %s66, %s68
    %p72 = scmp.eq.s32.totalorder %s11, 0
    %p73 = por %p71, %p72
    %p74 = scmp.ne.s32.totalorder %s66, %s68
    %p75 = scmp.eq.s32.totalorder %s16, 1
    %p76 = por %p74, %p75
    %p77 = scmp.ne.s32.totalorder %s68, %s69
    %p78 = scmp.eq.s32.totalorder %s16, 0
    %p79 = por %p77, %p78
    %p80 = scmp.ne.s32.totalorder %s68, %s69
    %p81 = scmp.eq.s32.totalorder %s17, 1
    %p82 = por %p80, %p81
    %p84 = scmp.ne.s32.totalorder %s69, %s83
    %p85 = scmp.eq.s32.totalorder %s17, 0
    %p86 = por %p84, %p85
    %s88 = sadd.s32 %s87, 1
    %p91 = scmp.eq.s32.totalorder %s11, 1
    %p92 = scmp.ne.s32.totalorder %s87, %s89
    %p93 = scmp.eq.s32.totalorder %s11, 0
    %p94 = por %p92, %p93
    %p95 = scmp.ne.s32.totalorder %s87, %s89
    %p96 = scmp.eq.s32.totalorder %s16, 1
    %p97 = por %p95, %p96
    %p98 = scmp.ne.s32.totalorder %s89, %s90
    %p99 = scmp.eq.s32.totalorder %s16, 0
    %p100 = por %p98, %p99
    %p101 = scmp.ne.s32.totalorder %s89, %s90
    %p102 = scmp.eq.s32.totalorder %s17, 1
    %p103 = por %p101, %p102
    %p105 = scmp.ne.s32.totalorder %s90, %s104
    %p106 = scmp.eq.s32.totalorder %s17, 0
    %p107 = por %p105, %p106
    %s109 = sadd.s32 %s108, 1
    %p112 = scmp.eq.s32.totalorder %s11, 1
    %p113 = scmp.ne.s32.totalorder %s108, %s110
    %p114 = scmp.eq.s32.totalorder %s11, 0
    %p115 = por %p113, %p114
    %p116 = scmp.ne.s32.totalorder %s108, %s110
    %p117 = scmp.eq.s32.totalorder %s16, 1
    %p118 = por %p116, %p117
    %p119 = scmp.ne.s32.totalorder %s110, %s111
    %p120 = scmp.eq.s32.totalorder %s16, 0
    %p121 = por %p119, %p120
    %p122 = scmp.ne.s32.totalorder %s110, %s111
    %p123 = scmp.eq.s32.totalorder %s17, 1
    %p124 = por %p122, %p123
    %p126 = scmp.ne.s32.totalorder %s111, %s125
    %p127 = scmp.eq.s32.totalorder %s17, 0
    %p128 = por %p126, %p127
    %s129 = ssub.s32 %s11, %s18
    %p130 = scmp.eq.s32.totalorder %s129, 0
    %s132 = sadd.s32 %s131, 1
    %s133 = scalar_select %p130, %s131, %s132
    %p136 = pneg %p130
    %p137 = scmp.eq.s32.totalorder %s11, 1
    %p138 = por %p136, %p137
    %p139 = scmp.ne.s32.totalorder %s131, %s134
    %p140 = scmp.eq.s32.totalorder %s11, 0
    %p141 = por %p139, %p140
    %p142 = scmp.ne.s32.totalorder %s131, %s134
    %p143 = scmp.eq.s32.totalorder %s16, 1
    %p144 = por %p142, %p143
    %p145 = scmp.ne.s32.totalorder %s134, %s135
    %p146 = scmp.eq.s32.totalorder %s16, 0
    %p147 = por %p145, %p146
    %p148 = scmp.ne.s32.totalorder %s134, %s135
    %p149 = scmp.eq.s32.totalorder %s17, 1
    %p150 = por %p148, %p149
    %p152 = scmp.ne.s32.totalorder %s135, %s151
    %p153 = scmp.eq.s32.totalorder %s17, 0
    %p154 = por %p152, %p153
    %p155 = scmp.le.s32.totalorder 1, %s11
    %p156 = scmp.lt.s32.totalorder %s11, 3
    %p157 = pnand %p155, %p156
    %p158 = pneg %p157
    // Predicated region
    $region9: #{tpu_custom_call.1} parent=5 // pred_check
      _
    $region10: #{tpu_custom_call.1} parent=5 // pred_check_branch
      %160 = sbr.rel (%p157) target = $region12
    $region11: #{tpu_custom_call.1} parent=5 // pred_region
      %s161 = ssub.s32 %s11, 1
      // Predicated region
      $region13: #{tpu_custom_call.1} parent=11 // pred_check
        %p162 = pneg %p58
      $region14: #{tpu_custom_call.1} parent=11 // pred_check_branch
        %164 = sbr.rel (%p162) target = $region16
      $region15: #{tpu_custom_call.1} parent=11 // pred_region
        _
      $region16: #{tpu_custom_call.1} parent=11 // pred_fallthru
        _
      // Predicated region
      $region17: #{tpu_custom_call.1} parent=11 // pred_check
        %p165 = pneg %p79
      $region18: #{tpu_custom_call.1} parent=11 // pred_check_branch
        %167 = sbr.rel (%p165) target = $region20
      $region19: #{tpu_custom_call.1} parent=11 // pred_region
        _
      $region20: #{tpu_custom_call.1} parent=11 // pred_fallthru
        _
      // Predicated region
      $region21: #{tpu_custom_call.1} parent=11 // pred_check
        %p168 = pneg %p100
      $region22: #{tpu_custom_call.1} parent=11 // pred_check_branch
        %170 = sbr.rel (%p168) target = $region24
      $region23: #{tpu_custom_call.1} parent=11 // pred_region
        _
      $region24: #{tpu_custom_call.1} parent=11 // pred_fallthru
        _
      // Predicated region
      $region25: #{tpu_custom_call.1} parent=11 // pred_check
        %p171 = pneg %p121
      $region26: #{tpu_custom_call.1} parent=11 // pred_check_branch
        %173 = sbr.rel (%p171) target = $region28
      $region27: #{tpu_custom_call.1} parent=11 // pred_region
        _
      $region28: #{tpu_custom_call.1} parent=11 // pred_fallthru
        _
    $region12: #{tpu_custom_call.1} parent=5 // pred_fallthru
      _
    %p174 = scmp.lt.s32.totalorder %s11, 2
    // Predicated region
    $region29: #{tpu_custom_call.1} parent=5 // pred_check
      %p175 = pneg %p174
    $region30: #{tpu_custom_call.1} parent=5 // pred_check_branch
      %177 = sbr.rel (%p175) target = $region32
    $region31: #{tpu_custom_call.1} parent=5 // pred_region
      // Predicated region
      $region33: #{tpu_custom_call.1} parent=31 // pred_check
        %p178 = pneg %p31
      $region34: #{tpu_custom_call.1} parent=31 // pred_check_branch
        %180 = sbr.rel (%p178) target = $region36
      $region35: #{tpu_custom_call.1} parent=31 // pred_region
        %p181 = scmp.lt.s32.totalorder %s11, 1
        %s182 = scalar_select %p181, %s11, 1
        %s183 = smul.addr %s182, 32
        %s184 = smul.addr %s183, 8
        %s185 = scalar_lea.vmem %s0, %s184
      $region36: #{tpu_custom_call.1} parent=31 // pred_fallthru
        _
    $region32: #{tpu_custom_call.1} parent=5 // pred_fallthru
      _
    %p186 = scmp.le.s32.totalorder 1, %s11
    %p187 = scmp.lt.s32.totalorder %s11, 3
    %p188 = pnand %p186, %p187
    %p189 = pneg %p188
    // Predicated region
    $region37: #{tpu_custom_call.1} parent=5 // pred_check
      _
    $region38: #{tpu_custom_call.1} parent=5 // pred_check_branch
      %191 = sbr.rel (%p188) target = $region40
    $region39: #{tpu_custom_call.1} parent=5 // pred_region
      %s192 = ssub.s32 %s11, 1
      %p193 = scmp.lt.s32.totalorder %s16, 1
      %s194 = scalar_select %p193, %s16, 1
      %s195 = smul.addr %s194, 32
      %s196 = smul.addr %s195, 8
      %s197 = scalar_lea.vmem %s0, %s196
      %p198 = pneg %p37
      %p199 = pneg %p34
      %p200 = pneg %p58
      %p201 = pneg %p55
      %p202 = pneg %p79
      %p203 = pneg %p76
      %p204 = pneg %p100
      %p205 = pneg %p97
      %p206 = pneg %p121
      %p207 = pneg %p118
      %p208 = pneg %p147
      %p209 = pneg %p144
      %p210 = scmp.lt.s32.totalorder %s16, 1
      %s211 = scalar_select %p210, %s16, 1
      %s212 = smul.addr %s211, 32
      %s213 = smul.addr %s212, 8
      %s214 = scalar_lea.vmem %s5, %s213
      %p215 = scmp.lt.s32.totalorder %s16, 1
      %s216 = scalar_select %p215, %s16, 1
      %s217 = smul.addr %s216, 32
      %s218 = smul.addr %s217, 8
      %s219 = scalar_lea.vmem %s0, %s218
      %p220 = scmp.lt.s32.totalorder %s16, 1
      %s221 = scalar_select %p220, %s16, 1
      %s222 = smul.addr %s221, 32
      %s223 = smul.addr %s222, 8
      %s224 = scalar_lea.vmem %s5, %s223
      %vm225 = vcmask 31744
      %226 = vst.msk [vmem:[#allocation2] sm:$0xff] %vm225, 0.0
      %227 = vst.msk [vmem:[#allocation2 + $0x8] sm:$0xff] %vm225, 0.0
      %vm228 = vcmask 25600
      %229 = vst.msk [vmem:[#allocation2 + $0x10] sm:$0x3] %vm228, 0.0
      %230 = vst.msk [vmem:[#allocation2 + $0x18] sm:$0xff] %vm225, 0.0
      %231 = vst.msk [vmem:[#allocation2 + $0x20] sm:$0xff] %vm225, 0.0
      %232 = vst.msk [vmem:[#allocation2 + $0x28] sm:$0x3] %vm228, 0.0
      %233 = vst.msk [vmem:[#allocation2 + $0x30] sm:$0xff] %vm225, 0.0
      %234 = vst.msk [vmem:[#allocation2 + $0x38] sm:$0xff] %vm225, 0.0
      %235 = vst.msk [vmem:[#allocation2 + $0x40] sm:$0x3] %vm228, 0.0
      %236 = vst.msk [vmem:[#allocation2 + $0x48] sm:$0xff] %vm225, 0.0
      %237 = vst.msk [vmem:[#allocation2 + $0x50] sm:$0xff] %vm225, 0.0
      %238 = vst.msk [vmem:[#allocation2 + $0x58] sm:$0x3] %vm228, 0.0
      %239 = vst.msk [vmem:[#allocation2 + $0x60] sm:$0xff] %vm225, 0.0
      %240 = vst.msk [vmem:[#allocation2 + $0x68] sm:$0xff] %vm225, 0.0
      %241 = vst.msk [vmem:[#allocation2 + $0x70] sm:$0x3] %vm228, 0.0
      %242 = vst.msk [vmem:[#allocation2 + $0x78] sm:$0xff] %vm225, 0.0
      %243 = vst.msk [vmem:[#allocation2 + $0x80] sm:$0xff] %vm225, 0.0
      %244 = vst.msk [vmem:[#allocation2 + $0x88] sm:$0x3] %vm228, 0.0
      %245 = vst.msk [vmem:[#allocation2 + $0x90] sm:$0xff] %vm225, 0.0
      %246 = vst.msk [vmem:[#allocation2 + $0x98] sm:$0xff] %vm225, 0.0
      %247 = vst.msk [vmem:[#allocation2 + $0xa0] sm:$0x3] %vm228, 0.0
      %248 = vst.msk [vmem:[#allocation2 + $0xa8] sm:$0xff] %vm225, 0.0
      %249 = vst.msk [vmem:[#allocation2 + $0xb0] sm:$0xff] %vm225, 0.0
      %250 = vst.msk [vmem:[#allocation2 + $0xb8] sm:$0x3] %vm228, 0.0
      %251 = vst.msk [vmem:[#allocation2 + $0xc0] sm:$0xff] %vm225, 0.0
      %252 = vst.msk [vmem:[#allocation2 + $0xc8] sm:$0xff] %vm225, 0.0
      %253 = vst.msk [vmem:[#allocation2 + $0xd0] sm:$0x3] %vm228, 0.0
      %254 = vst.msk [vmem:[#allocation2 + $0xd8] sm:$0xff] %vm225, 0.0
      %255 = vst.msk [vmem:[#allocation2 + $0xe0] sm:$0xff] %vm225, 0.0
      %256 = vst.msk [vmem:[#allocation2 + $0xe8] sm:$0x3] %vm228, 0.0
      %257 = vst.msk [vmem:[#allocation2 + $0xf0] sm:$0xff] %vm225, 0.0
      %258 = vst.msk [vmem:[#allocation2 + $0xf8] sm:$0xff] %vm225, 0.0
      %259 = vst.msk [vmem:[#allocation2 + $0x100] sm:$0x3] %vm228, 0.0
      %260 = vst.msk [vmem:[#allocation2 + $0x108] sm:$0xff] %vm225, 0.0
      %261 = vst.msk [vmem:[#allocation2 + $0x110] sm:$0xff] %vm225, 0.0
      %262 = vst.msk [vmem:[#allocation2 + $0x118] sm:$0x3] %vm228, 0.0
      %263 = vst.msk [vmem:[#allocation2 + $0x120] sm:$0xff] %vm225, 0.0
      %264 = vst.msk [vmem:[#allocation2 + $0x128] sm:$0xff] %vm225, 0.0
      %265 = vst.msk [vmem:[#allocation2 + $0x130] sm:$0x3] %vm228, 0.0
      %266 = vst.msk [vmem:[#allocation2 + $0x138] sm:$0xff] %vm225, 0.0
      %267 = vst.msk [vmem:[#allocation2 + $0x140] sm:$0xff] %vm225, 0.0
      %268 = vst.msk [vmem:[#allocation2 + $0x148] sm:$0x3] %vm228, 0.0
      %269 = vst.msk [vmem:[#allocation2 + $0x150] sm:$0xff] %vm225, 0.0
      %270 = vst.msk [vmem:[#allocation2 + $0x158] sm:$0xff] %vm225, 0.0
      %271 = vst.msk [vmem:[#allocation2 + $0x160] sm:$0x3] %vm228, 0.0
      %272 = vst.msk [vmem:[#allocation2 + $0x168] sm:$0xff] %vm225, 0.0
      %273 = vst.msk [vmem:[#allocation2 + $0x170] sm:$0xff] %vm225, 0.0
      %274 = vst.msk [vmem:[#allocation2 + $0x178] sm:$0x3] %vm228, 0.0
      %275 = vst.msk [vmem:[#allocation2 + $0x180] sm:$0xff] %vm225, 0.0
      %276 = vst.msk [vmem:[#allocation2 + $0x188] sm:$0xff] %vm225, 0.0
      %277 = vst.msk [vmem:[#allocation2 + $0x190] sm:$0x3] %vm228, 0.0
      %278 = vst.msk [vmem:[#allocation2 + $0x198] sm:$0xff] %vm225, 0.0
      %279 = vst.msk [vmem:[#allocation2 + $0x1a0] sm:$0xff] %vm225, 0.0
      %280 = vst.msk [vmem:[#allocation2 + $0x1a8] sm:$0x3] %vm228, 0.0
      %v281 = vld [vmem:[%s219] sm:$0xff]
      %v282 = vld [vmem:[%s219 + $0x8] sm:$0xff]
      %v283 = vld [vmem:[%s219 + $0x10] sm:$0xff]
      %v284 = vld [vmem:[%s219 + $0x18] sm:$0xff]
      %v285 = vld [vmem:[%s219 + $0x20] sm:$0xff]
      %v286 = vld [vmem:[%s219 + $0x28] sm:$0xff]
      %v287 = vld [vmem:[%s219 + $0x30] sm:$0xff]
      %v288 = vld [vmem:[%s219 + $0x38] sm:$0xff]
      %v289 = vld [vmem:[%s219 + $0x40] sm:$0xff]
      %v290 = vld [vmem:[%s219 + $0x48] sm:$0xff]
      %v291 = vld [vmem:[%s219 + $0x50] sm:$0xff]
      %v292 = vld [vmem:[%s219 + $0x58] sm:$0xff]
      %v293 = vld [vmem:[%s219 + $0x60] sm:$0xff]
      %v294 = vld [vmem:[%s219 + $0x68] sm:$0xff]
      %v295 = vld [vmem:[%s219 + $0x70] sm:$0xff]
      %v296 = vld [vmem:[%s219 + $0x78] sm:$0xff]
      %v297 = vld [vmem:[%s219 + $0x80] sm:$0xff]
      %v298 = vld [vmem:[%s219 + $0x88] sm:$0xff]
      %v299 = vld [vmem:[%s219 + $0x90] sm:$0xff]
      %v300 = vld [vmem:[%s219 + $0x98] sm:$0xff]
      %v301 = vld [vmem:[%s219 + $0xa0] sm:$0xff]
      %v302 = vld [vmem:[%s219 + $0xa8] sm:$0xff]
      %v303 = vld [vmem:[%s219 + $0xb0] sm:$0xff]
      %v304 = vld [vmem:[%s219 + $0xb8] sm:$0xff]
      %v305 = vld [vmem:[%s219 + $0xc0] sm:$0xff]
      %v306 = vld [vmem:[%s219 + $0xc8] sm:$0xff]
      %v307 = vld [vmem:[%s219 + $0xd0] sm:$0xff]
      %v308 = vld [vmem:[%s219 + $0xd8] sm:$0xff]
      %v309 = vld [vmem:[%s219 + $0xe0] sm:$0xff]
      %v310 = vld [vmem:[%s219 + $0xe8] sm:$0xff]
      %v311 = vld [vmem:[%s219 + $0xf0] sm:$0xff]
      %v312 = vld [vmem:[%s219 + $0xf8] sm:$0xff]
      %s313 = scalar_lea.vmem [#allocation2], 24
      %314 = vst.msk [vmem:[%s313 + $0x1] sm:$0xff] %vm225, %v281
      %315 = vst.msk [vmem:[%s313 + $0x9] sm:$0xff] %vm225, %v282
      %316 = vst.msk [vmem:[%s313 + $0x19] sm:$0xff] %vm225, %v283
      %317 = vst.msk [vmem:[%s313 + $0x21] sm:$0xff] %vm225, %v284
      %318 = vst.msk [vmem:[%s313 + $0x31] sm:$0xff] %vm225, %v285
      %319 = vst.msk [vmem:[%s313 + $0x39] sm:$0xff] %vm225, %v286
      %320 = vst.msk [vmem:[%s313 + $0x49] sm:$0xff] %vm225, %v287
      %321 = vst.msk [vmem:[%s313 + $0x51] sm:$0xff] %vm225, %v288
      %322 = vst.msk [vmem:[%s313 + $0x61] sm:$0xff] %vm225, %v289
      %323 = vst.msk [vmem:[%s313 + $0x69] sm:$0xff] %vm225, %v290
      %324 = vst.msk [vmem:[%s313 + $0x79] sm:$0xff] %vm225, %v291
      %325 = vst.msk [vmem:[%s313 + $0x81] sm:$0xff] %vm225, %v292
      %326 = vst.msk [vmem:[%s313 + $0x91] sm:$0xff] %vm225, %v293
      %327 = vst.msk [vmem:[%s313 + $0x99] sm:$0xff] %vm225, %v294
      %328 = vst.msk [vmem:[%s313 + $0xa9] sm:$0xff] %vm225, %v295
      %329 = vst.msk [vmem:[%s313 + $0xb1] sm:$0xff] %vm225, %v296
      %330 = vst.msk [vmem:[%s313 + $0xc1] sm:$0xff] %vm225, %v297
      %331 = vst.msk [vmem:[%s313 + $0xc9] sm:$0xff] %vm225, %v298
      %332 = vst.msk [vmem:[%s313 + $0xd9] sm:$0xff] %vm225, %v299
      %333 = vst.msk [vmem:[%s313 + $0xe1] sm:$0xff] %vm225, %v300
      %334 = vst.msk [vmem:[%s313 + $0xf1] sm:$0xff] %vm225, %v301
      %335 = vst.msk [vmem:[%s313 + $0xf9] sm:$0xff] %vm225, %v302
      %336 = vst.msk [vmem:[%s313 + $0x109] sm:$0xff] %vm225, %v303
      %337 = vst.msk [vmem:[%s313 + $0x111] sm:$0xff] %vm225, %v304
      %338 = vst.msk [vmem:[%s313 + $0x121] sm:$0xff] %vm225, %v305
      %339 = vst.msk [vmem:[%s313 + $0x129] sm:$0xff] %vm225, %v306
      %340 = vst.msk [vmem:[%s313 + $0x139] sm:$0xff] %vm225, %v307
      %341 = vst.msk [vmem:[%s313 + $0x141] sm:$0xff] %vm225, %v308
      %342 = vst.msk [vmem:[%s313 + $0x151] sm:$0xff] %vm225, %v309
      %343 = vst.msk [vmem:[%s313 + $0x159] sm:$0xff] %vm225, %v310
      %344 = vst.msk [vmem:[%s313 + $0x169] sm:$0xff] %vm225, %v311
      %345 = vst.msk [vmem:[%s313 + $0x171] sm:$0xff] %vm225, %v312
      %v346 = vld [vmem:[#allocation2] sm:$0xff]
      %v347 = vld [vmem:[#allocation2 + $0x8] sm:$0xff]
      %v348 = vld [vmem:[#allocation2 + $0x10] sm:$0x3]
      %v349 = vld [vmem:[#allocation2 + $0x18] sm:$0xff]
      %v350 = vld [vmem:[#allocation2 + $0x20] sm:$0xff]
      %v351 = vld [vmem:[#allocation2 + $0x28] sm:$0x3]
      %v352 = vld [vmem:[#allocation2 + $0x30] sm:$0xff]
      %v353 = vld [vmem:[#allocation2 + $0x38] sm:$0xff]
      %v354 = vld [vmem:[#allocation2 + $0x40] sm:$0x3]
      %v355 = vld [vmem:[#allocation2 + $0x48] sm:$0xff]
      %v356 = vld [vmem:[#allocation2 + $0x50] sm:$0xff]
      %v357 = vld [vmem:[#allocation2 + $0x58] sm:$0x3]
      %v358 = vld [vmem:[#allocation2 + $0x60] sm:$0xff]
      %v359 = vld [vmem:[#allocation2 + $0x68] sm:$0xff]
      %v360 = vld [vmem:[#allocation2 + $0x70] sm:$0x3]
      %v361 = vld [vmem:[#allocation2 + $0x78] sm:$0xff]
      %v362 = vld [vmem:[#allocation2 + $0x80] sm:$0xff]
      %v363 = vld [vmem:[#allocation2 + $0x88] sm:$0x3]
      %v364 = vld [vmem:[#allocation2 + $0x90] sm:$0xff]
      %v365 = vld [vmem:[#allocation2 + $0x98] sm:$0xff]
      %v366 = vld [vmem:[#allocation2 + $0xa0] sm:$0x3]
      %v367 = vld [vmem:[#allocation2 + $0xa8] sm:$0xff]
      %v368 = vld [vmem:[#allocation2 + $0xb0] sm:$0xff]
      %v369 = vld [vmem:[#allocation2 + $0xb8] sm:$0x3]
      %v370 = vld [vmem:[#allocation2 + $0xc0] sm:$0xff]
      %v371 = vld [vmem:[#allocation2 + $0xc8] sm:$0xff]
      %v372 = vld [vmem:[#allocation2 + $0xd0] sm:$0x3]
      %v373 = vld [vmem:[#allocation2 + $0xd8] sm:$0xff]
      %v374 = vld [vmem:[#allocation2 + $0xe0] sm:$0xff]
      %v375 = vld [vmem:[#allocation2 + $0xe8] sm:$0x3]
      %v376 = vld [vmem:[#allocation2 + $0xf0] sm:$0xff]
      %v377 = vld [vmem:[#allocation2 + $0xf8] sm:$0xff]
      %v378 = vld [vmem:[#allocation2 + $0x100] sm:$0x3]
      %v379 = vld [vmem:[#allocation2 + $0x108] sm:$0xff]
      %v380 = vld [vmem:[#allocation2 + $0x110] sm:$0xff]
      %v381 = vld [vmem:[#allocation2 + $0x118] sm:$0x3]
      %v382 = vld [vmem:[#allocation2 + $0x120] sm:$0xff]
      %v383 = vld [vmem:[#allocation2 + $0x128] sm:$0xff]
      %v384 = vld [vmem:[#allocation2 + $0x130] sm:$0x3]
      %v385 = vld [vmem:[#allocation2 + $0x138] sm:$0xff]
      %v386 = vld [vmem:[#allocation2 + $0x140] sm:$0xff]
      %v387 = vld [vmem:[#allocation2 + $0x148] sm:$0x3]
      %v388 = vld [vmem:[#allocation2 + $0x150] sm:$0xff]
      %v389 = vld [vmem:[#allocation2 + $0x158] sm:$0xff]
      %v390 = vld [vmem:[#allocation2 + $0x160] sm:$0x3]
      %v391 = vld [vmem:[#allocation2 + $0x168] sm:$0xff]
      %v392 = vld [vmem:[#allocation2 + $0x170] sm:$0xff]
      %v393 = vld [vmem:[#allocation2 + $0x178] sm:$0x3]
      %v394 = vld [vmem:[#allocation2 + $0x180] sm:$0xff]
      %v395 = vld [vmem:[#allocation2 + $0x188] sm:$0xff]
      %v396 = vld [vmem:[#allocation2 + $0x190] sm:$0x3]
      %v397 = vld [vmem:[#allocation2 + $0x198] sm:$0xff]
      %v398 = vld [vmem:[#allocation2 + $0x1a0] sm:$0xff]
      %v399 = vld [vmem:[#allocation2 + $0x1a8] sm:$0x3]
      %vm448 = vcmask 1046528
      %v449 = vrot.slane %v346, 1
      %v450 = vrot.slane %v347, 1
      %v451 = vsel %vm448, %v449, %v450
      %v452 = vrot.slane %v348, 1
      %v453 = vsel %vm448, %v450, %v452
      %v454 = vrot.slane %v349, 1
      %v455 = vrot.slane %v350, 1
      %v456 = vsel %vm448, %v454, %v455
      %v457 = vrot.slane %v351, 1
      %v458 = vsel %vm448, %v455, %v457
      %v459 = vrot.slane %v352, 1
      %v460 = vrot.slane %v353, 1
      %v461 = vsel %vm448, %v459, %v460
      %v462 = vrot.slane %v354, 1
      %v463 = vsel %vm448, %v460, %v462
      %v464 = vrot.slane %v355, 1
      %v465 = vrot.slane %v356, 1
      %v466 = vsel %vm448, %v464, %v465
      %v467 = vrot.slane %v357, 1
      %v468 = vsel %vm448, %v465, %v467
      %v469 = vrot.slane %v358, 1
      %v470 = vrot.slane %v359, 1
      %v471 = vsel %vm448, %v469, %v470
      %v472 = vrot.slane %v360, 1
      %v473 = vsel %vm448, %v470, %v472
      %v474 = vrot.slane %v361, 1
      %v475 = vrot.slane %v362, 1
      %v476 = vsel %vm448, %v474, %v475
      %v477 = vrot.slane %v363, 1
      %v478 = vsel %vm448, %v475, %v477
      %v479 = vrot.slane %v364, 1
      %v480 = vrot.slane %v365, 1
      %v481 = vsel %vm448, %v479, %v480
      %v482 = vrot.slane %v366, 1
      %v483 = vsel %vm448, %v480, %v482
      %v484 = vrot.slane %v367, 1
      %v485 = vrot.slane %v368, 1
      %v486 = vsel %vm448, %v484, %v485
      %v487 = vrot.slane %v369, 1
      %v488 = vsel %vm448, %v485, %v487
      %v489 = vrot.slane %v370, 1
      %v490 = vrot.slane %v371, 1
      %v491 = vsel %vm448, %v489, %v490
      %v492 = vrot.slane %v372, 1
      %v493 = vsel %vm448, %v490, %v492
      %v494 = vrot.slane %v373, 1
      %v495 = vrot.slane %v374, 1
      %v496 = vsel %vm448, %v494, %v495
      %v497 = vrot.slane %v375, 1
      %v498 = vsel %vm448, %v495, %v497
      %v499 = vrot.slane %v376, 1
      %v500 = vrot.slane %v377, 1
      %v501 = vsel %vm448, %v499, %v500
      %v502 = vrot.slane %v378, 1
      %v503 = vsel %vm448, %v500, %v502
      %v504 = vrot.slane %v379, 1
      %v505 = vrot.slane %v380, 1
      %v506 = vsel %vm448, %v504, %v505
      %v507 = vrot.slane %v381, 1
      %v508 = vsel %vm448, %v505, %v507
      %v509 = vrot.slane %v382, 1
      %v510 = vrot.slane %v383, 1
      %v511 = vsel %vm448, %v509, %v510
      %v512 = vrot.slane %v384, 1
      %v513 = vsel %vm448, %v510, %v512
      %v514 = vrot.slane %v385, 1
      %v515 = vrot.slane %v386, 1
      %v516 = vsel %vm448, %v514, %v515
      %v517 = vrot.slane %v387, 1
      %v518 = vsel %vm448, %v515, %v517
      %v519 = vrot.slane %v388, 1
      %v520 = vrot.slane %v389, 1
      %v521 = vsel %vm448, %v519, %v520
      %v522 = vrot.slane %v390, 1
      %v523 = vsel %vm448, %v520, %v522
      %v524 = vrot.slane %v391, 1
      %v525 = vrot.slane %v392, 1
      %v526 = vsel %vm448, %v524, %v525
      %v527 = vrot.slane %v393, 1
      %v528 = vsel %vm448, %v525, %v527
      %529 = vrot.lane.b32.xlu0 %v451, 4
      %v530 = vpop.permute.xlu0 %529
      %531 = vrot.lane.b32.xlu0 %v453, 4
      %v532 = vpop.permute.xlu0 %531
      %533 = vrot.lane.b32.xlu0 %v456, 4
      %v534 = vpop.permute.xlu0 %533
      %535 = vrot.lane.b32.xlu0 %v458, 4
      %v536 = vpop.permute.xlu0 %535
      %537 = vrot.lane.b32.xlu0 %v461, 4
      %v538 = vpop.permute.xlu0 %537
      %539 = vrot.lane.b32.xlu0 %v463, 4
      %v540 = vpop.permute.xlu0 %539
      %541 = vrot.lane.b32.xlu0 %v466, 4
      %v542 = vpop.permute.xlu0 %541
      %543 = vrot.lane.b32.xlu0 %v468, 4
      %v544 = vpop.permute.xlu0 %543
      %545 = vrot.lane.b32.xlu0 %v471, 4
      %v546 = vpop.permute.xlu0 %545
      %547 = vrot.lane.b32.xlu0 %v473, 4
      %v548 = vpop.permute.xlu0 %547
      %549 = vrot.lane.b32.xlu0 %v476, 4
      %v550 = vpop.permute.xlu0 %549
      %551 = vrot.lane.b32.xlu0 %v478, 4
      %v552 = vpop.permute.xlu0 %551
      %553 = vrot.lane.b32.xlu0 %v481, 4
      %v554 = vpop.permute.xlu0 %553
      %555 = vrot.lane.b32.xlu0 %v483, 4
      %v556 = vpop.permute.xlu0 %555
      %557 = vrot.lane.b32.xlu0 %v486, 4
      %v558 = vpop.permute.xlu0 %557
      %559 = vrot.lane.b32.xlu0 %v488, 4
      %v560 = vpop.permute.xlu0 %559
      %561 = vrot.lane.b32.xlu0 %v491, 4
      %v562 = vpop.permute.xlu0 %561
      %563 = vrot.lane.b32.xlu0 %v493, 4
      %v564 = vpop.permute.xlu0 %563
      %565 = vrot.lane.b32.xlu0 %v496, 4
      %v566 = vpop.permute.xlu0 %565
      %567 = vrot.lane.b32.xlu0 %v498, 4
      %v568 = vpop.permute.xlu0 %567
      %569 = vrot.lane.b32.xlu0 %v501, 4
      %v570 = vpop.permute.xlu0 %569
      %571 = vrot.lane.b32.xlu0 %v503, 4
      %v572 = vpop.permute.xlu0 %571
      %573 = vrot.lane.b32.xlu0 %v506, 4
      %v574 = vpop.permute.xlu0 %573
      %575 = vrot.lane.b32.xlu0 %v508, 4
      %v576 = vpop.permute.xlu0 %575
      %577 = vrot.lane.b32.xlu0 %v511, 4
      %v578 = vpop.permute.xlu0 %577
      %579 = vrot.lane.b32.xlu0 %v513, 4
      %v580 = vpop.permute.xlu0 %579
      %581 = vrot.lane.b32.xlu0 %v516, 4
      %v582 = vpop.permute.xlu0 %581
      %583 = vrot.lane.b32.xlu0 %v518, 4
      %v584 = vpop.permute.xlu0 %583
      %585 = vrot.lane.b32.xlu0 %v521, 4
      %v586 = vpop.permute.xlu0 %585
      %587 = vrot.lane.b32.xlu0 %v523, 4
      %v588 = vpop.permute.xlu0 %587
      %589 = vrot.lane.b32.xlu0 %v526, 4
      %v590 = vpop.permute.xlu0 %589
      %591 = vrot.lane.b32.xlu0 %v528, 4
      %v592 = vpop.permute.xlu0 %591
      %vm625 = vcmask 1045504
      %v626 = vrot.slane %v346, 2
      %v627 = vrot.slane %v347, 2
      %v628 = vsel %vm625, %v626, %v627
      %v629 = vrot.slane %v348, 2
      %v630 = vsel %vm625, %v627, %v629
      %v631 = vrot.slane %v349, 2
      %v632 = vrot.slane %v350, 2
      %v633 = vsel %vm625, %v631, %v632
      %v634 = vrot.slane %v351, 2
      %v635 = vsel %vm625, %v632, %v634
      %v636 = vrot.slane %v352, 2
      %v637 = vrot.slane %v353, 2
      %v638 = vsel %vm625, %v636, %v637
      %v639 = vrot.slane %v354, 2
      %v640 = vsel %vm625, %v637, %v639
      %v641 = vrot.slane %v355, 2
      %v642 = vrot.slane %v356, 2
      %v643 = vsel %vm625, %v641, %v642
      %v644 = vrot.slane %v357, 2
      %v645 = vsel %vm625, %v642, %v644
      %v646 = vrot.slane %v358, 2
      %v647 = vrot.slane %v359, 2
      %v648 = vsel %vm625, %v646, %v647
      %v649 = vrot.slane %v360, 2
      %v650 = vsel %vm625, %v647, %v649
      %v651 = vrot.slane %v361, 2
      %v652 = vrot.slane %v362, 2
      %v653 = vsel %vm625, %v651, %v652
      %v654 = vrot.slane %v363, 2
      %v655 = vsel %vm625, %v652, %v654
      %v656 = vrot.slane %v364, 2
      %v657 = vrot.slane %v365, 2
      %v658 = vsel %vm625, %v656, %v657
      %v659 = vrot.slane %v366, 2
      %v660 = vsel %vm625, %v657, %v659
      %v661 = vrot.slane %v367, 2
      %v662 = vrot.slane %v368, 2
      %v663 = vsel %vm625, %v661, %v662
      %v664 = vrot.slane %v369, 2
      %v665 = vsel %vm625, %v662, %v664
      %v666 = vrot.slane %v370, 2
      %v667 = vrot.slane %v371, 2
      %v668 = vsel %vm625, %v666, %v667
      %v669 = vrot.slane %v372, 2
      %v670 = vsel %vm625, %v667, %v669
      %v671 = vrot.slane %v373, 2
      %v672 = vrot.slane %v374, 2
      %v673 = vsel %vm625, %v671, %v672
      %v674 = vrot.slane %v375, 2
      %v675 = vsel %vm625, %v672, %v674
      %v676 = vrot.slane %v376, 2
      %v677 = vrot.slane %v377, 2
      %v678 = vsel %vm625, %v676, %v677
      %v679 = vrot.slane %v378, 2
      %v680 = vsel %vm625, %v677, %v679
      %v681 = vrot.slane %v379, 2
      %v682 = vrot.slane %v380, 2
      %v683 = vsel %vm625, %v681, %v682
      %v684 = vrot.slane %v381, 2
      %v685 = vsel %vm625, %v682, %v684
      %v686 = vrot.slane %v382, 2
      %v687 = vrot.slane %v383, 2
      %v688 = vsel %vm625, %v686, %v687
      %v689 = vrot.slane %v384, 2
      %v690 = vsel %vm625, %v687, %v689
      %v691 = vrot.slane %v385, 2
      %v692 = vrot.slane %v386, 2
      %v693 = vsel %vm625, %v691, %v692
      %v694 = vrot.slane %v387, 2
      %v695 = vsel %vm625, %v692, %v694
      %v696 = vrot.slane %v388, 2
      %v697 = vrot.slane %v389, 2
      %v698 = vsel %vm625, %v696, %v697
      %v699 = vrot.slane %v390, 2
      %v700 = vsel %vm625, %v697, %v699
      %v701 = vrot.slane %v391, 2
      %v702 = vrot.slane %v392, 2
      %v703 = vsel %vm625, %v701, %v702
      %v704 = vrot.slane %v393, 2
      %v705 = vsel %vm625, %v702, %v704
      %706 = vrot.lane.b32.xlu0 %v628, 8
      %v707 = vpop.permute.xlu0 %706
      %708 = vrot.lane.b32.xlu0 %v630, 8
      %v709 = vpop.permute.xlu0 %708
      %710 = vrot.lane.b32.xlu0 %v633, 8
      %v711 = vpop.permute.xlu0 %710
      %712 = vrot.lane.b32.xlu0 %v635, 8
      %v713 = vpop.permute.xlu0 %712
      %714 = vrot.lane.b32.xlu0 %v638, 8
      %v715 = vpop.permute.xlu0 %714
      %716 = vrot.lane.b32.xlu0 %v640, 8
      %v717 = vpop.permute.xlu0 %716
      %718 = vrot.lane.b32.xlu0 %v643, 8
      %v719 = vpop.permute.xlu0 %718
      %720 = vrot.lane.b32.xlu0 %v645, 8
      %v721 = vpop.permute.xlu0 %720
      %722 = vrot.lane.b32.xlu0 %v648, 8
      %v723 = vpop.permute.xlu0 %722
      %724 = vrot.lane.b32.xlu0 %v650, 8
      %v725 = vpop.permute.xlu0 %724
      %726 = vrot.lane.b32.xlu0 %v653, 8
      %v727 = vpop.permute.xlu0 %726
      %728 = vrot.lane.b32.xlu0 %v655, 8
      %v729 = vpop.permute.xlu0 %728
      %730 = vrot.lane.b32.xlu0 %v658, 8
      %v731 = vpop.permute.xlu0 %730
      %732 = vrot.lane.b32.xlu0 %v660, 8
      %v733 = vpop.permute.xlu0 %732
      %734 = vrot.lane.b32.xlu0 %v663, 8
      %v735 = vpop.permute.xlu0 %734
      %736 = vrot.lane.b32.xlu0 %v665, 8
      %v737 = vpop.permute.xlu0 %736
      %738 = vrot.lane.b32.xlu0 %v668, 8
      %v739 = vpop.permute.xlu0 %738
      %740 = vrot.lane.b32.xlu0 %v670, 8
      %v741 = vpop.permute.xlu0 %740
      %742 = vrot.lane.b32.xlu0 %v673, 8
      %v743 = vpop.permute.xlu0 %742
      %744 = vrot.lane.b32.xlu0 %v675, 8
      %v745 = vpop.permute.xlu0 %744
      %746 = vrot.lane.b32.xlu0 %v678, 8
      %v747 = vpop.permute.xlu0 %746
      %748 = vrot.lane.b32.xlu0 %v680, 8
      %v749 = vpop.permute.xlu0 %748
      %750 = vrot.lane.b32.xlu0 %v683, 8
      %v751 = vpop.permute.xlu0 %750
      %752 = vrot.lane.b32.xlu0 %v685, 8
      %v753 = vpop.permute.xlu0 %752
      %754 = vrot.lane.b32.xlu0 %v688, 8
      %v755 = vpop.permute.xlu0 %754
      %756 = vrot.lane.b32.xlu0 %v690, 8
      %v757 = vpop.permute.xlu0 %756
      %758 = vrot.lane.b32.xlu0 %v693, 8
      %v759 = vpop.permute.xlu0 %758
      %760 = vrot.lane.b32.xlu0 %v695, 8
      %v761 = vpop.permute.xlu0 %760
      %762 = vrot.lane.b32.xlu0 %v698, 8
      %v763 = vpop.permute.xlu0 %762
      %764 = vrot.lane.b32.xlu0 %v700, 8
      %v765 = vpop.permute.xlu0 %764
      %766 = vrot.lane.b32.xlu0 %v703, 8
      %v767 = vpop.permute.xlu0 %766
      %768 = vrot.lane.b32.xlu0 %v705, 8
      %v769 = vpop.permute.xlu0 %768
      %804 = vrot.lane.b32.xlu0 %v349, 12
      %v805 = vpop.permute.xlu0 %804
      %806 = vrot.lane.b32.xlu0 %v350, 12
      %v807 = vpop.permute.xlu0 %806
      %808 = vrot.lane.b32.xlu0 %v352, 12
      %v809 = vpop.permute.xlu0 %808
      %810 = vrot.lane.b32.xlu0 %v353, 12
      %v811 = vpop.permute.xlu0 %810
      %812 = vrot.lane.b32.xlu0 %v355, 12
      %v813 = vpop.permute.xlu0 %812
      %814 = vrot.lane.b32.xlu0 %v356, 12
      %v815 = vpop.permute.xlu0 %814
      %816 = vrot.lane.b32.xlu0 %v358, 12
      %v817 = vpop.permute.xlu0 %816
      %818 = vrot.lane.b32.xlu0 %v359, 12
      %v819 = vpop.permute.xlu0 %818
      %820 = vrot.lane.b32.xlu0 %v361, 12
      %v821 = vpop.permute.xlu0 %820
      %822 = vrot.lane.b32.xlu0 %v362, 12
      %v823 = vpop.permute.xlu0 %822
      %824 = vrot.lane.b32.xlu0 %v364, 12
      %v825 = vpop.permute.xlu0 %824
      %826 = vrot.lane.b32.xlu0 %v365, 12
      %v827 = vpop.permute.xlu0 %826
      %828 = vrot.lane.b32.xlu0 %v367, 12
      %v829 = vpop.permute.xlu0 %828
      %830 = vrot.lane.b32.xlu0 %v368, 12
      %v831 = vpop.permute.xlu0 %830
      %832 = vrot.lane.b32.xlu0 %v370, 12
      %v833 = vpop.permute.xlu0 %832
      %834 = vrot.lane.b32.xlu0 %v371, 12
      %v835 = vpop.permute.xlu0 %834
      %836 = vrot.lane.b32.xlu0 %v373, 12
      %v837 = vpop.permute.xlu0 %836
      %838 = vrot.lane.b32.xlu0 %v374, 12
      %v839 = vpop.permute.xlu0 %838
      %840 = vrot.lane.b32.xlu0 %v376, 12
      %v841 = vpop.permute.xlu0 %840
      %842 = vrot.lane.b32.xlu0 %v377, 12
      %v843 = vpop.permute.xlu0 %842
      %844 = vrot.lane.b32.xlu0 %v379, 12
      %v845 = vpop.permute.xlu0 %844
      %846 = vrot.lane.b32.xlu0 %v380, 12
      %v847 = vpop.permute.xlu0 %846
      %848 = vrot.lane.b32.xlu0 %v382, 12
      %v849 = vpop.permute.xlu0 %848
      %850 = vrot.lane.b32.xlu0 %v383, 12
      %v851 = vpop.permute.xlu0 %850
      %852 = vrot.lane.b32.xlu0 %v385, 12
      %v853 = vpop.permute.xlu0 %852
      %854 = vrot.lane.b32.xlu0 %v386, 12
      %v855 = vpop.permute.xlu0 %854
      %856 = vrot.lane.b32.xlu0 %v388, 12
      %v857 = vpop.permute.xlu0 %856
      %858 = vrot.lane.b32.xlu0 %v389, 12
      %v859 = vpop.permute.xlu0 %858
      %860 = vrot.lane.b32.xlu0 %v391, 12
      %v861 = vpop.permute.xlu0 %860
      %862 = vrot.lane.b32.xlu0 %v392, 12
      %v863 = vpop.permute.xlu0 %862
      %864 = vrot.lane.b32.xlu0 %v394, 12
      %v865 = vpop.permute.xlu0 %864
      %866 = vrot.lane.b32.xlu0 %v395, 12
      %v867 = vpop.permute.xlu0 %866
      %v901 = vrot.slane %v394, 1
      %v902 = vrot.slane %v395, 1
      %v903 = vsel %vm448, %v901, %v902
      %v904 = vrot.slane %v396, 1
      %v905 = vsel %vm448, %v902, %v904
      %906 = vrot.lane.b32.xlu0 %v456, 16
      %v907 = vpop.permute.xlu0 %906
      %908 = vrot.lane.b32.xlu0 %v458, 16
      %v909 = vpop.permute.xlu0 %908
      %910 = vrot.lane.b32.xlu0 %v461, 16
      %v911 = vpop.permute.xlu0 %910
      %912 = vrot.lane.b32.xlu0 %v463, 16
      %v913 = vpop.permute.xlu0 %912
      %914 = vrot.lane.b32.xlu0 %v466, 16
      %v915 = vpop.permute.xlu0 %914
      %916 = vrot.lane.b32.xlu0 %v468, 16
      %v917 = vpop.permute.xlu0 %916
      %918 = vrot.lane.b32.xlu0 %v471, 16
      %v919 = vpop.permute.xlu0 %918
      %920 = vrot.lane.b32.xlu0 %v473, 16
      %v921 = vpop.permute.xlu0 %920
      %922 = vrot.lane.b32.xlu0 %v476, 16
      %v923 = vpop.permute.xlu0 %922
      %924 = vrot.lane.b32.xlu0 %v478, 16
      %v925 = vpop.permute.xlu0 %924
      %926 = vrot.lane.b32.xlu0 %v481, 16
      %v927 = vpop.permute.xlu0 %926
      %928 = vrot.lane.b32.xlu0 %v483, 16
      %v929 = vpop.permute.xlu0 %928
      %930 = vrot.lane.b32.xlu0 %v486, 16
      %v931 = vpop.permute.xlu0 %930
      %932 = vrot.lane.b32.xlu0 %v488, 16
      %v933 = vpop.permute.xlu0 %932
      %934 = vrot.lane.b32.xlu0 %v491, 16
      %v935 = vpop.permute.xlu0 %934
      %936 = vrot.lane.b32.xlu0 %v493, 16
      %v937 = vpop.permute.xlu0 %936
      %938 = vrot.lane.b32.xlu0 %v496, 16
      %v939 = vpop.permute.xlu0 %938
      %940 = vrot.lane.b32.xlu0 %v498, 16
      %v941 = vpop.permute.xlu0 %940
      %942 = vrot.lane.b32.xlu0 %v501, 16
      %v943 = vpop.permute.xlu0 %942
      %944 = vrot.lane.b32.xlu0 %v503, 16
      %v945 = vpop.permute.xlu0 %944
      %946 = vrot.lane.b32.xlu0 %v506, 16
      %v947 = vpop.permute.xlu0 %946
      %948 = vrot.lane.b32.xlu0 %v508, 16
      %v949 = vpop.permute.xlu0 %948
      %950 = vrot.lane.b32.xlu0 %v511, 16
      %v951 = vpop.permute.xlu0 %950
      %952 = vrot.lane.b32.xlu0 %v513, 16
      %v953 = vpop.permute.xlu0 %952
      %954 = vrot.lane.b32.xlu0 %v516, 16
      %v955 = vpop.permute.xlu0 %954
      %956 = vrot.lane.b32.xlu0 %v518, 16
      %v957 = vpop.permute.xlu0 %956
      %958 = vrot.lane.b32.xlu0 %v521, 16
      %v959 = vpop.permute.xlu0 %958
      %960 = vrot.lane.b32.xlu0 %v523, 16
      %v961 = vpop.permute.xlu0 %960
      %962 = vrot.lane.b32.xlu0 %v526, 16
      %v963 = vpop.permute.xlu0 %962
      %964 = vrot.lane.b32.xlu0 %v528, 16
      %v965 = vpop.permute.xlu0 %964
      %966 = vrot.lane.b32.xlu0 %v903, 16
      %v967 = vpop.permute.xlu0 %966
      %968 = vrot.lane.b32.xlu0 %v905, 16
      %v969 = vpop.permute.xlu0 %968
      %v1002 = vrot.slane %v394, 2
      %v1003 = vrot.slane %v395, 2
      %v1004 = vsel %vm625, %v1002, %v1003
      %v1005 = vrot.slane %v396, 2
      %v1006 = vsel %vm625, %v1003, %v1005
      %1007 = vrot.lane.b32.xlu0 %v633, 20
      %v1008 = vpop.permute.xlu0 %1007
      %1009 = vrot.lane.b32.xlu0 %v635, 20
      %v1010 = vpop.permute.xlu0 %1009
      %1011 = vrot.lane.b32.xlu0 %v638, 20
      %v1012 = vpop.permute.xlu0 %1011
      %1013 = vrot.lane.b32.xlu0 %v640, 20
      %v1014 = vpop.permute.xlu0 %1013
      %1015 = vrot.lane.b32.xlu0 %v643, 20
      %v1016 = vpop.permute.xlu0 %1015
      %1017 = vrot.lane.b32.xlu0 %v645, 20
      %v1018 = vpop.permute.xlu0 %1017
      %1019 = vrot.lane.b32.xlu0 %v648, 20
      %v1020 = vpop.permute.xlu0 %1019
      %1021 = vrot.lane.b32.xlu0 %v650, 20
      %v1022 = vpop.permute.xlu0 %1021
      %1023 = vrot.lane.b32.xlu0 %v653, 20
      %v1024 = vpop.permute.xlu0 %1023
      %1025 = vrot.lane.b32.xlu0 %v655, 20
      %v1026 = vpop.permute.xlu0 %1025
      %1027 = vrot.lane.b32.xlu0 %v658, 20
      %v1028 = vpop.permute.xlu0 %1027
      %1029 = vrot.lane.b32.xlu0 %v660, 20
      %v1030 = vpop.permute.xlu0 %1029
      %1031 = vrot.lane.b32.xlu0 %v663, 20
      %v1032 = vpop.permute.xlu0 %1031
      %1033 = vrot.lane.b32.xlu0 %v665, 20
      %v1034 = vpop.permute.xlu0 %1033
      %1035 = vrot.lane.b32.xlu0 %v668, 20
      %v1036 = vpop.permute.xlu0 %1035
      %1037 = vrot.lane.b32.xlu0 %v670, 20
      %v1038 = vpop.permute.xlu0 %1037
      %1039 = vrot.lane.b32.xlu0 %v673, 20
      %v1040 = vpop.permute.xlu0 %1039
      %1041 = vrot.lane.b32.xlu0 %v675, 20
      %v1042 = vpop.permute.xlu0 %1041
      %1043 = vrot.lane.b32.xlu0 %v678, 20
      %v1044 = vpop.permute.xlu0 %1043
      %1045 = vrot.lane.b32.xlu0 %v680, 20
      %v1046 = vpop.permute.xlu0 %1045
      %1047 = vrot.lane.b32.xlu0 %v683, 20
      %v1048 = vpop.permute.xlu0 %1047
      %1049 = vrot.lane.b32.xlu0 %v685, 20
      %v1050 = vpop.permute.xlu0 %1049
      %1051 = vrot.lane.b32.xlu0 %v688, 20
      %v1052 = vpop.permute.xlu0 %1051
      %1053 = vrot.lane.b32.xlu0 %v690, 20
      %v1054 = vpop.permute.xlu0 %1053
      %1055 = vrot.lane.b32.xlu0 %v693, 20
      %v1056 = vpop.permute.xlu0 %1055
      %1057 = vrot.lane.b32.xlu0 %v695, 20
      %v1058 = vpop.permute.xlu0 %1057
      %1059 = vrot.lane.b32.xlu0 %v698, 20
      %v1060 = vpop.permute.xlu0 %1059
      %1061 = vrot.lane.b32.xlu0 %v700, 20
      %v1062 = vpop.permute.xlu0 %1061
      %1063 = vrot.lane.b32.xlu0 %v703, 20
      %v1064 = vpop.permute.xlu0 %1063
      %1065 = vrot.lane.b32.xlu0 %v705, 20
      %v1066 = vpop.permute.xlu0 %1065
      %1067 = vrot.lane.b32.xlu0 %v1004, 20
      %v1068 = vpop.permute.xlu0 %1067
      %1069 = vrot.lane.b32.xlu0 %v1006, 20
      %v1070 = vpop.permute.xlu0 %1069
      %1105 = vrot.lane.b32.xlu0 %v352, 24
      %v1106 = vpop.permute.xlu0 %1105
      %1107 = vrot.lane.b32.xlu0 %v353, 24
      %v1108 = vpop.permute.xlu0 %1107
      %1109 = vrot.lane.b32.xlu0 %v355, 24
      %v1110 = vpop.permute.xlu0 %1109
      %1111 = vrot.lane.b32.xlu0 %v356, 24
      %v1112 = vpop.permute.xlu0 %1111
      %1113 = vrot.lane.b32.xlu0 %v358, 24
      %v1114 = vpop.permute.xlu0 %1113
      %1115 = vrot.lane.b32.xlu0 %v359, 24
      %v1116 = vpop.permute.xlu0 %1115
      %1117 = vrot.lane.b32.xlu0 %v361, 24
      %v1118 = vpop.permute.xlu0 %1117
      %1119 = vrot.lane.b32.xlu0 %v362, 24
      %v1120 = vpop.permute.xlu0 %1119
      %1121 = vrot.lane.b32.xlu0 %v364, 24
      %v1122 = vpop.permute.xlu0 %1121
      %1123 = vrot.lane.b32.xlu0 %v365, 24
      %v1124 = vpop.permute.xlu0 %1123
      %1125 = vrot.lane.b32.xlu0 %v367, 24
      %v1126 = vpop.permute.xlu0 %1125
      %1127 = vrot.lane.b32.xlu0 %v368, 24
      %v1128 = vpop.permute.xlu0 %1127
      %1129 = vrot.lane.b32.xlu0 %v370, 24
      %v1130 = vpop.permute.xlu0 %1129
      %1131 = vrot.lane.b32.xlu0 %v371, 24
      %v1132 = vpop.permute.xlu0 %1131
      %1133 = vrot.lane.b32.xlu0 %v373, 24
      %v1134 = vpop.permute.xlu0 %1133
      %1135 = vrot.lane.b32.xlu0 %v374, 24
      %v1136 = vpop.permute.xlu0 %1135
      %1137 = vrot.lane.b32.xlu0 %v376, 24
      %v1138 = vpop.permute.xlu0 %1137
      %1139 = vrot.lane.b32.xlu0 %v377, 24
      %v1140 = vpop.permute.xlu0 %1139
      %1141 = vrot.lane.b32.xlu0 %v379, 24
      %v1142 = vpop.permute.xlu0 %1141
      %1143 = vrot.lane.b32.xlu0 %v380, 24
      %v1144 = vpop.permute.xlu0 %1143
      %1145 = vrot.lane.b32.xlu0 %v382, 24
      %v1146 = vpop.permute.xlu0 %1145
      %1147 = vrot.lane.b32.xlu0 %v383, 24
      %v1148 = vpop.permute.xlu0 %1147
      %1149 = vrot.lane.b32.xlu0 %v385, 24
      %v1150 = vpop.permute.xlu0 %1149
      %1151 = vrot.lane.b32.xlu0 %v386, 24
      %v1152 = vpop.permute.xlu0 %1151
      %1153 = vrot.lane.b32.xlu0 %v388, 24
      %v1154 = vpop.permute.xlu0 %1153
      %1155 = vrot.lane.b32.xlu0 %v389, 24
      %v1156 = vpop.permute.xlu0 %1155
      %1157 = vrot.lane.b32.xlu0 %v391, 24
      %v1158 = vpop.permute.xlu0 %1157
      %1159 = vrot.lane.b32.xlu0 %v392, 24
      %v1160 = vpop.permute.xlu0 %1159
      %1161 = vrot.lane.b32.xlu0 %v394, 24
      %v1162 = vpop.permute.xlu0 %1161
      %1163 = vrot.lane.b32.xlu0 %v395, 24
      %v1164 = vpop.permute.xlu0 %1163
      %1165 = vrot.lane.b32.xlu0 %v397, 24
      %v1166 = vpop.permute.xlu0 %1165
      %1167 = vrot.lane.b32.xlu0 %v398, 24
      %v1168 = vpop.permute.xlu0 %1167
      %v1202 = vrot.slane %v397, 1
      %v1203 = vrot.slane %v398, 1
      %v1204 = vsel %vm448, %v1202, %v1203
      %v1205 = vrot.slane %v399, 1
      %v1206 = vsel %vm448, %v1203, %v1205
      %1207 = vrot.lane.b32.xlu0 %v461, 28
      %v1208 = vpop.permute.xlu0 %1207
      %1209 = vrot.lane.b32.xlu0 %v463, 28
      %v1210 = vpop.permute.xlu0 %1209
      %1211 = vrot.lane.b32.xlu0 %v466, 28
      %v1212 = vpop.permute.xlu0 %1211
      %1213 = vrot.lane.b32.xlu0 %v468, 28
      %v1214 = vpop.permute.xlu0 %1213
      %1215 = vrot.lane.b32.xlu0 %v471, 28
      %v1216 = vpop.permute.xlu0 %1215
      %1217 = vrot.lane.b32.xlu0 %v473, 28
      %v1218 = vpop.permute.xlu0 %1217
      %1219 = vrot.lane.b32.xlu0 %v476, 28
      %v1220 = vpop.permute.xlu0 %1219
      %1221 = vrot.lane.b32.xlu0 %v478, 28
      %v1222 = vpop.permute.xlu0 %1221
      %1223 = vrot.lane.b32.xlu0 %v481, 28
      %v1224 = vpop.permute.xlu0 %1223
      %1225 = vrot.lane.b32.xlu0 %v483, 28
      %v1226 = vpop.permute.xlu0 %1225
      %1227 = vrot.lane.b32.xlu0 %v486, 28
      %v1228 = vpop.permute.xlu0 %1227
      %1229 = vrot.lane.b32.xlu0 %v488, 28
      %v1230 = vpop.permute.xlu0 %1229
      %1231 = vrot.lane.b32.xlu0 %v491, 28
      %v1232 = vpop.permute.xlu0 %1231
      %1233 = vrot.lane.b32.xlu0 %v493, 28
      %v1234 = vpop.permute.xlu0 %1233
      %1235 = vrot.lane.b32.xlu0 %v496, 28
      %v1236 = vpop.permute.xlu0 %1235
      %1237 = vrot.lane.b32.xlu0 %v498, 28
      %v1238 = vpop.permute.xlu0 %1237
      %1239 = vrot.lane.b32.xlu0 %v501, 28
      %v1240 = vpop.permute.xlu0 %1239
      %1241 = vrot.lane.b32.xlu0 %v503, 28
      %v1242 = vpop.permute.xlu0 %1241
      %1243 = vrot.lane.b32.xlu0 %v506, 28
      %v1244 = vpop.permute.xlu0 %1243
      %1245 = vrot.lane.b32.xlu0 %v508, 28
      %v1246 = vpop.permute.xlu0 %1245
      %1247 = vrot.lane.b32.xlu0 %v511, 28
      %v1248 = vpop.permute.xlu0 %1247
      %1249 = vrot.lane.b32.xlu0 %v513, 28
      %v1250 = vpop.permute.xlu0 %1249
      %1251 = vrot.lane.b32.xlu0 %v516, 28
      %v1252 = vpop.permute.xlu0 %1251
      %1253 = vrot.lane.b32.xlu0 %v518, 28
      %v1254 = vpop.permute.xlu0 %1253
      %1255 = vrot.lane.b32.xlu0 %v521, 28
      %v1256 = vpop.permute.xlu0 %1255
      %1257 = vrot.lane.b32.xlu0 %v523, 28
      %v1258 = vpop.permute.xlu0 %1257
      %1259 = vrot.lane.b32.xlu0 %v526, 28
      %v1260 = vpop.permute.xlu0 %1259
      %1261 = vrot.lane.b32.xlu0 %v528, 28
      %v1262 = vpop.permute.xlu0 %1261
      %1263 = vrot.lane.b32.xlu0 %v903, 28
      %v1264 = vpop.permute.xlu0 %1263
      %1265 = vrot.lane.b32.xlu0 %v905, 28
      %v1266 = vpop.permute.xlu0 %1265
      %1267 = vrot.lane.b32.xlu0 %v1204, 28
      %v1268 = vpop.permute.xlu0 %1267
      %1269 = vrot.lane.b32.xlu0 %v1206, 28
      %v1270 = vpop.permute.xlu0 %1269
      %v1303 = vrot.slane %v397, 2
      %v1304 = vrot.slane %v398, 2
      %v1305 = vsel %vm625, %v1303, %v1304
      %v1306 = vrot.slane %v399, 2
      %v1307 = vsel %vm625, %v1304, %v1306
      %1308 = vrot.lane.b32.xlu0 %v638, 32
      %v1309 = vpop.permute.xlu0 %1308
      %1310 = vrot.lane.b32.xlu0 %v640, 32
      %v1311 = vpop.permute.xlu0 %1310
      %1312 = vrot.lane.b32.xlu0 %v643, 32
      %v1313 = vpop.permute.xlu0 %1312
      %1314 = vrot.lane.b32.xlu0 %v645, 32
      %v1315 = vpop.permute.xlu0 %1314
      %1316 = vrot.lane.b32.xlu0 %v648, 32
      %v1317 = vpop.permute.xlu0 %1316
      %1318 = vrot.lane.b32.xlu0 %v650, 32
      %v1319 = vpop.permute.xlu0 %1318
      %1320 = vrot.lane.b32.xlu0 %v653, 32
      %v1321 = vpop.permute.xlu0 %1320
      %1322 = vrot.lane.b32.xlu0 %v655, 32
      %v1323 = vpop.permute.xlu0 %1322
      %1324 = vrot.lane.b32.xlu0 %v658, 32
      %v1325 = vpop.permute.xlu0 %1324
      %1326 = vrot.lane.b32.xlu0 %v660, 32
      %v1327 = vpop.permute.xlu0 %1326
      %1328 = vrot.lane.b32.xlu0 %v663, 32
      %v1329 = vpop.permute.xlu0 %1328
      %1330 = vrot.lane.b32.xlu0 %v665, 32
      %v1331 = vpop.permute.xlu0 %1330
      %1332 = vrot.lane.b32.xlu0 %v668, 32
      %v1333 = vpop.permute.xlu0 %1332
      %1334 = vrot.lane.b32.xlu0 %v670, 32
      %v1335 = vpop.permute.xlu0 %1334
      %1336 = vrot.lane.b32.xlu0 %v673, 32
      %v1337 = vpop.permute.xlu0 %1336
      %1338 = vrot.lane.b32.xlu0 %v675, 32
      %v1339 = vpop.permute.xlu0 %1338
      %1340 = vrot.lane.b32.xlu0 %v678, 32
      %v1341 = vpop.permute.xlu0 %1340
      %1342 = vrot.lane.b32.xlu0 %v680, 32
      %v1343 = vpop.permute.xlu0 %1342
      %1344 = vrot.lane.b32.xlu0 %v683, 32
      %v1345 = vpop.permute.xlu0 %1344
      %1346 = vrot.lane.b32.xlu0 %v685, 32
      %v1347 = vpop.permute.xlu0 %1346
      %1348 = vrot.lane.b32.xlu0 %v688, 32
      %v1349 = vpop.permute.xlu0 %1348
      %1350 = vrot.lane.b32.xlu0 %v690, 32
      %v1351 = vpop.permute.xlu0 %1350
      %1352 = vrot.lane.b32.xlu0 %v693, 32
      %v1353 = vpop.permute.xlu0 %1352
      %1354 = vrot.lane.b32.xlu0 %v695, 32
      %v1355 = vpop.permute.xlu0 %1354
      %1356 = vrot.lane.b32.xlu0 %v698, 32
      %v1357 = vpop.permute.xlu0 %1356
      %1358 = vrot.lane.b32.xlu0 %v700, 32
      %v1359 = vpop.permute.xlu0 %1358
      %1360 = vrot.lane.b32.xlu0 %v703, 32
      %v1361 = vpop.permute.xlu0 %1360
      %1362 = vrot.lane.b32.xlu0 %v705, 32
      %v1363 = vpop.permute.xlu0 %1362
      %1364 = vrot.lane.b32.xlu0 %v1004, 32
      %v1365 = vpop.permute.xlu0 %1364
      %1366 = vrot.lane.b32.xlu0 %v1006, 32
      %v1367 = vpop.permute.xlu0 %1366
      %1368 = vrot.lane.b32.xlu0 %v1305, 32
      %v1369 = vpop.permute.xlu0 %1368
      %1370 = vrot.lane.b32.xlu0 %v1307, 32
      %v1371 = vpop.permute.xlu0 %1370
      %v1404 = vsel %vm225, %v346, %v530
      %v1405 = vsel %vm225, %v347, %v532
      %v1406 = vsel %vm225, %v349, %v534
      %v1407 = vsel %vm225, %v350, %v536
      %v1408 = vsel %vm225, %v352, %v538
      %v1409 = vsel %vm225, %v353, %v540
      %v1410 = vsel %vm225, %v355, %v542
      %v1411 = vsel %vm225, %v356, %v544
      %v1412 = vsel %vm225, %v358, %v546
      %v1413 = vsel %vm225, %v359, %v548
      %v1414 = vsel %vm225, %v361, %v550
      %v1415 = vsel %vm225, %v362, %v552
      %v1416 = vsel %vm225, %v364, %v554
      %v1417 = vsel %vm225, %v365, %v556
      %v1418 = vsel %vm225, %v367, %v558
      %v1419 = vsel %vm225, %v368, %v560
      %v1420 = vsel %vm225, %v370, %v562
      %v1421 = vsel %vm225, %v371, %v564
      %v1422 = vsel %vm225, %v373, %v566
      %v1423 = vsel %vm225, %v374, %v568
      %v1424 = vsel %vm225, %v376, %v570
      %v1425 = vsel %vm225, %v377, %v572
      %v1426 = vsel %vm225, %v379, %v574
      %v1427 = vsel %vm225, %v380, %v576
      %v1428 = vsel %vm225, %v382, %v578
      %v1429 = vsel %vm225, %v383, %v580
      %v1430 = vsel %vm225, %v385, %v582
      %v1431 = vsel %vm225, %v386, %v584
      %v1432 = vsel %vm225, %v388, %v586
      %v1433 = vsel %vm225, %v389, %v588
      %v1434 = vsel %vm225, %v391, %v590
      %v1435 = vsel %vm225, %v392, %v592
      %vm1436 = vcmask 64512
      %v1437 = vsel %vm1436, %v1404, %v707
      %v1438 = vsel %vm1436, %v1405, %v709
      %v1439 = vsel %vm1436, %v1406, %v711
      %v1440 = vsel %vm1436, %v1407, %v713
      %v1441 = vsel %vm1436, %v1408, %v715
      %v1442 = vsel %vm1436, %v1409, %v717
      %v1443 = vsel %vm1436, %v1410, %v719
      %v1444 = vsel %vm1436, %v1411, %v721
      %v1445 = vsel %vm1436, %v1412, %v723
      %v1446 = vsel %vm1436, %v1413, %v725
      %v1447 = vsel %vm1436, %v1414, %v727
      %v1448 = vsel %vm1436, %v1415, %v729
      %v1449 = vsel %vm1436, %v1416, %v731
      %v1450 = vsel %vm1436, %v1417, %v733
      %v1451 = vsel %vm1436, %v1418, %v735
      %v1452 = vsel %vm1436, %v1419, %v737
      %v1453 = vsel %vm1436, %v1420, %v739
      %v1454 = vsel %vm1436, %v1421, %v741
      %v1455 = vsel %vm1436, %v1422, %v743
      %v1456 = vsel %vm1436, %v1423, %v745
      %v1457 = vsel %vm1436, %v1424, %v747
      %v1458 = vsel %vm1436, %v1425, %v749
      %v1459 = vsel %vm1436, %v1426, %v751
      %v1460 = vsel %vm1436, %v1427, %v753
      %v1461 = vsel %vm1436, %v1428, %v755
      %v1462 = vsel %vm1436, %v1429, %v757
      %v1463 = vsel %vm1436, %v1430, %v759
      %v1464 = vsel %vm1436, %v1431, %v761
      %v1465 = vsel %vm1436, %v1432, %v763
      %v1466 = vsel %vm1436, %v1433, %v765
      %v1467 = vsel %vm1436, %v1434, %v767
      %v1468 = vsel %vm1436, %v1435, %v769
      %vm1469 = vcmask 97280
      %v1470 = vsel %vm1469, %v1437, %v805
      %v1471 = vsel %vm1469, %v1438, %v807
      %v1472 = vsel %vm1469, %v1439, %v809
      %v1473 = vsel %vm1469, %v1440, %v811
      %v1474 = vsel %vm1469, %v1441, %v813
      %v1475 = vsel %vm1469, %v1442, %v815
      %v1476 = vsel %vm1469, %v1443, %v817
      %v1477 = vsel %vm1469, %v1444, %v819
      %v1478 = vsel %vm1469, %v1445, %v821
      %v1479 = vsel %vm1469, %v1446, %v823
      %v1480 = vsel %vm1469, %v1447, %v825
      %v1481 = vsel %vm1469, %v1448, %v827
      %v1482 = vsel %vm1469, %v1449, %v829
      %v1483 = vsel %vm1469, %v1450, %v831
      %v1484 = vsel %vm1469, %v1451, %v833
      %v1485 = vsel %vm1469, %v1452, %v835
      %v1486 = vsel %vm1469, %v1453, %v837
      %v1487 = vsel %vm1469, %v1454, %v839
      %v1488 = vsel %vm1469, %v1455, %v841
      %v1489 = vsel %vm1469, %v1456, %v843
      %v1490 = vsel %vm1469, %v1457, %v845
      %v1491 = vsel %vm1469, %v1458, %v847
      %v1492 = vsel %vm1469, %v1459, %v849
      %v1493 = vsel %vm1469, %v1460, %v851
      %v1494 = vsel %vm1469, %v1461, %v853
      %v1495 = vsel %vm1469, %v1462, %v855
      %v1496 = vsel %vm1469, %v1463, %v857
      %v1497 = vsel %vm1469, %v1464, %v859
      %v1498 = vsel %vm1469, %v1465, %v861
      %v1499 = vsel %vm1469, %v1466, %v863
      %v1500 = vsel %vm1469, %v1467, %v865
      %v1501 = vsel %vm1469, %v1468, %v867
      %vm1502 = vcmask 130048
      %v1503 = vsel %vm1502, %v1470, %v907
      %v1504 = vsel %vm1502, %v1471, %v909
      %v1505 = vsel %vm1502, %v1472, %v911
      %v1506 = vsel %vm1502, %v1473, %v913
      %v1507 = vsel %vm1502, %v1474, %v915
      %v1508 = vsel %vm1502, %v1475, %v917
      %v1509 = vsel %vm1502, %v1476, %v919
      %v1510 = vsel %vm1502, %v1477, %v921
      %v1511 = vsel %vm1502, %v1478, %v923
      %v1512 = vsel %vm1502, %v1479, %v925
      %v1513 = vsel %vm1502, %v1480, %v927
      %v1514 = vsel %vm1502, %v1481, %v929
      %v1515 = vsel %vm1502, %v1482, %v931
      %v1516 = vsel %vm1502, %v1483, %v933
      %v1517 = vsel %vm1502, %v1484, %v935
      %v1518 = vsel %vm1502, %v1485, %v937
      %v1519 = vsel %vm1502, %v1486, %v939
      %v1520 = vsel %vm1502, %v1487, %v941
      %v1521 = vsel %vm1502, %v1488, %v943
      %v1522 = vsel %vm1502, %v1489, %v945
      %v1523 = vsel %vm1502, %v1490, %v947
      %v1524 = vsel %vm1502, %v1491, %v949
      %v1525 = vsel %vm1502, %v1492, %v951
      %v1526 = vsel %vm1502, %v1493, %v953
      %v1527 = vsel %vm1502, %v1494, %v955
      %v1528 = vsel %vm1502, %v1495, %v957
      %v1529 = vsel %vm1502, %v1496, %v959
      %v1530 = vsel %vm1502, %v1497, %v961
      %v1531 = vsel %vm1502, %v1498, %v963
      %v1532 = vsel %vm1502, %v1499, %v965
      %v1533 = vsel %vm1502, %v1500, %v967
      %v1534 = vsel %vm1502, %v1501, %v969
      %vm1535 = vcmask 162816
      %v1536 = vsel %vm1535, %v1503, %v1008
      %v1537 = vsel %vm1535, %v1504, %v1010
      %v1538 = vsel %vm1535, %v1505, %v1012
      %v1539 = vsel %vm1535, %v1506, %v1014
      %v1540 = vsel %vm1535, %v1507, %v1016
      %v1541 = vsel %vm1535, %v1508, %v1018
      %v1542 = vsel %vm1535, %v1509, %v1020
      %v1543 = vsel %vm1535, %v1510, %v1022
      %v1544 = vsel %vm1535, %v1511, %v1024
      %v1545 = vsel %vm1535, %v1512, %v1026
      %v1546 = vsel %vm1535, %v1513, %v1028
      %v1547 = vsel %vm1535, %v1514, %v1030
      %v1548 = vsel %vm1535, %v1515, %v1032
      %v1549 = vsel %vm1535, %v1516, %v1034
      %v1550 = vsel %vm1535, %v1517, %v1036
      %v1551 = vsel %vm1535, %v1518, %v1038
      %v1552 = vsel %vm1535, %v1519, %v1040
      %v1553 = vsel %vm1535, %v1520, %v1042
      %v1554 = vsel %vm1535, %v1521, %v1044
      %v1555 = vsel %vm1535, %v1522, %v1046
      %v1556 = vsel %vm1535, %v1523, %v1048
      %v1557 = vsel %vm1535, %v1524, %v1050
      %v1558 = vsel %vm1535, %v1525, %v1052
      %v1559 = vsel %vm1535, %v1526, %v1054
      %v1560 = vsel %vm1535, %v1527, %v1056
      %v1561 = vsel %vm1535, %v1528, %v1058
      %v1562 = vsel %vm1535, %v1529, %v1060
      %v1563 = vsel %vm1535, %v1530, %v1062
      %v1564 = vsel %vm1535, %v1531, %v1064
      %v1565 = vsel %vm1535, %v1532, %v1066
      %v1566 = vsel %vm1535, %v1533, %v1068
      %v1567 = vsel %vm1535, %v1534, %v1070
      %vm1568 = vcmask 195584
      %v1569 = vsel %vm1568, %v1536, %v1106
      %v1570 = vsel %vm1568, %v1537, %v1108
      %v1571 = vsel %vm1568, %v1538, %v1110
      %v1572 = vsel %vm1568, %v1539, %v1112
      %v1573 = vsel %vm1568, %v1540, %v1114
      %v1574 = vsel %vm1568, %v1541, %v1116
      %v1575 = vsel %vm1568, %v1542, %v1118
      %v1576 = vsel %vm1568, %v1543, %v1120
      %v1577 = vsel %vm1568, %v1544, %v1122
      %v1578 = vsel %vm1568, %v1545, %v1124
      %v1579 = vsel %vm1568, %v1546, %v1126
      %v1580 = vsel %vm1568, %v1547, %v1128
      %v1581 = vsel %vm1568, %v1548, %v1130
      %v1582 = vsel %vm1568, %v1549, %v1132
      %v1583 = vsel %vm1568, %v1550, %v1134
      %v1584 = vsel %vm1568, %v1551, %v1136
      %v1585 = vsel %vm1568, %v1552, %v1138
      %v1586 = vsel %vm1568, %v1553, %v1140
      %v1587 = vsel %vm1568, %v1554, %v1142
      %v1588 = vsel %vm1568, %v1555, %v1144
      %v1589 = vsel %vm1568, %v1556, %v1146
      %v1590 = vsel %vm1568, %v1557, %v1148
      %v1591 = vsel %vm1568, %v1558, %v1150
      %v1592 = vsel %vm1568, %v1559, %v1152
      %v1593 = vsel %vm1568, %v1560, %v1154
      %v1594 = vsel %vm1568, %v1561, %v1156
      %v1595 = vsel %vm1568, %v1562, %v1158
      %v1596 = vsel %vm1568, %v1563, %v1160
      %v1597 = vsel %vm1568, %v1564, %v1162
      %v1598 = vsel %vm1568, %v1565, %v1164
      %v1599 = vsel %vm1568, %v1566, %v1166
      %v1600 = vsel %vm1568, %v1567, %v1168
      %vm1601 = vcmask 228352
      %v1602 = vsel %vm1601, %v1569, %v1208
      %v1603 = vsel %vm1601, %v1570, %v1210
      %v1604 = vsel %vm1601, %v1571, %v1212
      %v1605 = vsel %vm1601, %v1572, %v1214
      %v1606 = vsel %vm1601, %v1573, %v1216
      %v1607 = vsel %vm1601, %v1574, %v1218
      %v1608 = vsel %vm1601, %v1575, %v1220
      %v1609 = vsel %vm1601, %v1576, %v1222
      %v1610 = vsel %vm1601, %v1577, %v1224
      %v1611 = vsel %vm1601, %v1578, %v1226
      %v1612 = vsel %vm1601, %v1579, %v1228
      %v1613 = vsel %vm1601, %v1580, %v1230
      %v1614 = vsel %vm1601, %v1581, %v1232
      %v1615 = vsel %vm1601, %v1582, %v1234
      %v1616 = vsel %vm1601, %v1583, %v1236
      %v1617 = vsel %vm1601, %v1584, %v1238
      %v1618 = vsel %vm1601, %v1585, %v1240
      %v1619 = vsel %vm1601, %v1586, %v1242
      %v1620 = vsel %vm1601, %v1587, %v1244
      %v1621 = vsel %vm1601, %v1588, %v1246
      %v1622 = vsel %vm1601, %v1589, %v1248
      %v1623 = vsel %vm1601, %v1590, %v1250
      %v1624 = vsel %vm1601, %v1591, %v1252
      %v1625 = vsel %vm1601, %v1592, %v1254
      %v1626 = vsel %vm1601, %v1593, %v1256
      %v1627 = vsel %vm1601, %v1594, %v1258
      %v1628 = vsel %vm1601, %v1595, %v1260
      %v1629 = vsel %vm1601, %v1596, %v1262
      %v1630 = vsel %vm1601, %v1597, %v1264
      %v1631 = vsel %vm1601, %v1598, %v1266
      %v1632 = vsel %vm1601, %v1599, %v1268
      %v1633 = vsel %vm1601, %v1600, %v1270
      %vm1634 = vcmask 261120
      %v1635 = vsel %vm1634, %v1602, %v1309
      %v1636 = vsel %vm1634, %v1603, %v1311
      %v1637 = vsel %vm1634, %v1604, %v1313
      %v1638 = vsel %vm1634, %v1605, %v1315
      %v1639 = vsel %vm1634, %v1606, %v1317
      %v1640 = vsel %vm1634, %v1607, %v1319
      %v1641 = vsel %vm1634, %v1608, %v1321
      %v1642 = vsel %vm1634, %v1609, %v1323
      %v1643 = vsel %vm1634, %v1610, %v1325
      %v1644 = vsel %vm1634, %v1611, %v1327
      %v1645 = vsel %vm1634, %v1612, %v1329
      %v1646 = vsel %vm1634, %v1613, %v1331
      %v1647 = vsel %vm1634, %v1614, %v1333
      %v1648 = vsel %vm1634, %v1615, %v1335
      %v1649 = vsel %vm1634, %v1616, %v1337
      %v1650 = vsel %vm1634, %v1617, %v1339
      %v1651 = vsel %vm1634, %v1618, %v1341
      %v1652 = vsel %vm1634, %v1619, %v1343
      %v1653 = vsel %vm1634, %v1620, %v1345
      %v1654 = vsel %vm1634, %v1621, %v1347
      %v1655 = vsel %vm1634, %v1622, %v1349
      %v1656 = vsel %vm1634, %v1623, %v1351
      %v1657 = vsel %vm1634, %v1624, %v1353
      %v1658 = vsel %vm1634, %v1625, %v1355
      %v1659 = vsel %vm1634, %v1626, %v1357
      %v1660 = vsel %vm1634, %v1627, %v1359
      %v1661 = vsel %vm1634, %v1628, %v1361
      %v1662 = vsel %vm1634, %v1629, %v1363
      %v1663 = vsel %vm1634, %v1630, %v1365
      %v1664 = vsel %vm1634, %v1631, %v1367
      %v1665 = vsel %vm1634, %v1632, %v1369
      %v1666 = vsel %vm1634, %v1633, %v1371
      %v1667 = vld [vmem:[%s1] sm:$0xff]
      %v1668 = vld [vmem:[%s1 + $0x8] sm:$0xff]
      %v1669 = vld [vmem:[%s1 + $0x10] sm:$0xff]
      %v1670 = vld [vmem:[%s1 + $0x18] sm:$0xff]
      %v1671 = vld [vmem:[%s1 + $0x20] sm:$0xf]
      %v1672 = vld [vmem:[%s2] sm:$0x1]
      %v1674 = vperm.slane %v1672, 0
      %vm1676 = vcmask 293888
      %v1678 = vsel %vm1676, %v1635, 0
      %v1681 = vsel %vm1676, %v1636, 0
      %v1684 = vsel %vm1676, %v1637, 0
      %v1687 = vsel %vm1676, %v1638, 0
      %v1690 = vsel %vm1676, %v1639, 0
      %v1693 = vsel %vm1676, %v1640, 0
      %v1696 = vsel %vm1676, %v1641, 0
      %v1699 = vsel %vm1676, %v1642, 0
      %v1702 = vsel %vm1676, %v1643, 0
      %v1705 = vsel %vm1676, %v1644, 0
      %v1708 = vsel %vm1676, %v1645, 0
      %v1711 = vsel %vm1676, %v1646, 0
      %v1714 = vsel %vm1676, %v1647, 0
      %v1717 = vsel %vm1676, %v1648, 0
      %v1720 = vsel %vm1676, %v1649, 0
      %v1723 = vsel %vm1676, %v1650, 0
      %v1726 = vsel %vm1676, %v1651, 0
      %v1729 = vsel %vm1676, %v1652, 0
      %v1732 = vsel %vm1676, %v1653, 0
      %v1735 = vsel %vm1676, %v1654, 0
      %v1738 = vsel %vm1676, %v1655, 0
      %v1741 = vsel %vm1676, %v1656, 0
      %v1744 = vsel %vm1676, %v1657, 0
      %v1747 = vsel %vm1676, %v1658, 0
      %v1750 = vsel %vm1676, %v1659, 0
      %v1753 = vsel %vm1676, %v1660, 0
      %v1756 = vsel %vm1676, %v1661, 0
      %v1759 = vsel %vm1676, %v1662, 0
      %v1762 = vsel %vm1676, %v1663, 0
      %v1765 = vsel %vm1676, %v1664, 0
      %v1768 = vsel %vm1676, %v1665, 0
      %v1771 = vsel %vm1676, %v1666, 0
      %vm1773 = vcmask 1043456
      %v1775 = vsel %vm1773, %v1671, 0
      %1777 = vmatpush.msra.mxu0 0.0
      %1778 = vmatpush.msra.mxu0 0.0
      %1779 = vmatpush.msra.mxu0 0.0
      %1780 = vmatpush.msra.mxu0 0.0
      %1781 = vmatpush.msra.mxu0 0.0
      %1782 = vmatpush.msra.mxu0 0.0
      %1783 = vmatpush.msra.mxu0 0.0
      %1784 = vmatpush.msra.mxu0 0.0
      %1785 = vmatpush.msra.mxu0 0.0
      %1786 = vmatpush.msra.mxu0 0.0
      %1787 = vmatpush.msra.mxu0 0.0
      %1788 = vmatpush.msra.mxu0 %v1775
      %1789 = vmatpush.msra.mxu0 %v1670
      %1790 = vmatpush.msra.mxu0 %v1669
      %1791 = vmatpush.msra.mxu0 %v1668
      %1792 = vmatpush.msra.mxu0 %v1667
      %1793 = vmatmul.f32.gmra.mxu0 %v1678
      %v1794 = vpop.f32.mrf.mxu0
      %v1795 = vadd.f32 %v1674, %v1794
      %1796 = vmatmul.f32.gmra.mxu0 %v1681
      %v1797 = vpop.f32.mrf.mxu0
      %v1798 = vadd.f32 %v1674, %v1797
      %1799 = vmatmul.f32.gmra.mxu0 %v1684
      %v1800 = vpop.f32.mrf.mxu0
      %v1801 = vadd.f32 %v1674, %v1800
      %1802 = vmatmul.f32.gmra.mxu0 %v1687
      %v1803 = vpop.f32.mrf.mxu0
      %v1804 = vadd.f32 %v1674, %v1803
      %1805 = vmatmul.f32.gmra.mxu0 %v1690
      %v1806 = vpop.f32.mrf.mxu0
      %v1807 = vadd.f32 %v1674, %v1806
      %1808 = vmatmul.f32.gmra.mxu0 %v1693
      %v1809 = vpop.f32.mrf.mxu0
      %v1810 = vadd.f32 %v1674, %v1809
      %1811 = vmatmul.f32.gmra.mxu0 %v1696
      %v1812 = vpop.f32.mrf.mxu0
      %v1813 = vadd.f32 %v1674, %v1812
      %1814 = vmatmul.f32.gmra.mxu0 %v1699
      %v1815 = vpop.f32.mrf.mxu0
      %v1816 = vadd.f32 %v1674, %v1815
      %1817 = vmatmul.f32.gmra.mxu0 %v1702
      %v1818 = vpop.f32.mrf.mxu0
      %v1819 = vadd.f32 %v1674, %v1818
      %1820 = vmatmul.f32.gmra.mxu0 %v1705
      %v1821 = vpop.f32.mrf.mxu0
      %v1822 = vadd.f32 %v1674, %v1821
      %1823 = vmatmul.f32.gmra.mxu0 %v1708
      %v1824 = vpop.f32.mrf.mxu0
      %v1825 = vadd.f32 %v1674, %v1824
      %1826 = vmatmul.f32.gmra.mxu0 %v1711
      %v1827 = vpop.f32.mrf.mxu0
      %v1828 = vadd.f32 %v1674, %v1827
      %1829 = vmatmul.f32.gmra.mxu0 %v1714
      %v1830 = vpop.f32.mrf.mxu0
      %v1831 = vadd.f32 %v1674, %v1830
      %1832 = vmatmul.f32.gmra.mxu0 %v1717
      %v1833 = vpop.f32.mrf.mxu0
      %v1834 = vadd.f32 %v1674, %v1833
      %1835 = vmatmul.f32.gmra.mxu0 %v1720
      %v1836 = vpop.f32.mrf.mxu0
      %v1837 = vadd.f32 %v1674, %v1836
      %1838 = vmatmul.f32.gmra.mxu0 %v1723
      %v1839 = vpop.f32.mrf.mxu0
      %v1840 = vadd.f32 %v1674, %v1839
      %1841 = vmatmul.f32.gmra.mxu0 %v1726
      %v1842 = vpop.f32.mrf.mxu0
      %v1843 = vadd.f32 %v1674, %v1842
      %1844 = vmatmul.f32.gmra.mxu0 %v1729
      %v1845 = vpop.f32.mrf.mxu0
      %v1846 = vadd.f32 %v1674, %v1845
      %1847 = vmatmul.f32.gmra.mxu0 %v1732
      %v1848 = vpop.f32.mrf.mxu0
      %v1849 = vadd.f32 %v1674, %v1848
      %1850 = vmatmul.f32.gmra.mxu0 %v1735
      %v1851 = vpop.f32.mrf.mxu0
      %v1852 = vadd.f32 %v1674, %v1851
      %1853 = vmatmul.f32.gmra.mxu0 %v1738
      %v1854 = vpop.f32.mrf.mxu0
      %v1855 = vadd.f32 %v1674, %v1854
      %1856 = vmatmul.f32.gmra.mxu0 %v1741
      %v1857 = vpop.f32.mrf.mxu0
      %v1858 = vadd.f32 %v1674, %v1857
      %1859 = vmatmul.f32.gmra.mxu0 %v1744
      %v1860 = vpop.f32.mrf.mxu0
      %v1861 = vadd.f32 %v1674, %v1860
      %1862 = vmatmul.f32.gmra.mxu0 %v1747
      %v1863 = vpop.f32.mrf.mxu0
      %v1864 = vadd.f32 %v1674, %v1863
      %1865 = vmatmul.f32.gmra.mxu0 %v1750
      %v1866 = vpop.f32.mrf.mxu0
      %v1867 = vadd.f32 %v1674, %v1866
      %1868 = vmatmul.f32.gmra.mxu0 %v1753
      %v1869 = vpop.f32.mrf.mxu0
      %v1870 = vadd.f32 %v1674, %v1869
      %1871 = vmatmul.f32.gmra.mxu0 %v1756
      %v1872 = vpop.f32.mrf.mxu0
      %v1873 = vadd.f32 %v1674, %v1872
      %1874 = vmatmul.f32.gmra.mxu0 %v1759
      %v1875 = vpop.f32.mrf.mxu0
      %v1876 = vadd.f32 %v1674, %v1875
      %1877 = vmatmul.f32.gmra.mxu0 %v1762
      %v1878 = vpop.f32.mrf.mxu0
      %v1879 = vadd.f32 %v1674, %v1878
      %1880 = vmatmul.f32.gmra.mxu0 %v1765
      %v1881 = vpop.f32.mrf.mxu0
      %v1882 = vadd.f32 %v1674, %v1881
      %1883 = vmatmul.f32.gmra.mxu0 %v1768
      %v1884 = vpop.f32.mrf.mxu0
      %v1885 = vadd.f32 %v1674, %v1884
      %1886 = vmatmul.f32.gmra.mxu0 %v1771
      %v1887 = vpop.f32.mrf.mxu0
      %v1888 = vadd.f32 %v1674, %v1887
      %1889 = vdwg.mxu0
      %v1890 = vmax.f32 %v1795, 0.0
      %v1891 = vmax.f32 %v1798, 0.0
      %v1892 = vmax.f32 %v1801, 0.0
      %v1893 = vmax.f32 %v1804, 0.0
      %v1894 = vmax.f32 %v1807, 0.0
      %v1895 = vmax.f32 %v1810, 0.0
      %v1896 = vmax.f32 %v1813, 0.0
      %v1897 = vmax.f32 %v1816, 0.0
      %v1898 = vmax.f32 %v1819, 0.0
      %v1899 = vmax.f32 %v1822, 0.0
      %v1900 = vmax.f32 %v1825, 0.0
      %v1901 = vmax.f32 %v1828, 0.0
      %v1902 = vmax.f32 %v1831, 0.0
      %v1903 = vmax.f32 %v1834, 0.0
      %v1904 = vmax.f32 %v1837, 0.0
      %v1905 = vmax.f32 %v1840, 0.0
      %v1906 = vmax.f32 %v1843, 0.0
      %v1907 = vmax.f32 %v1846, 0.0
      %v1908 = vmax.f32 %v1849, 0.0
      %v1909 = vmax.f32 %v1852, 0.0
      %v1910 = vmax.f32 %v1855, 0.0
      %v1911 = vmax.f32 %v1858, 0.0
      %v1912 = vmax.f32 %v1861, 0.0
      %v1913 = vmax.f32 %v1864, 0.0
      %v1914 = vmax.f32 %v1867, 0.0
      %v1915 = vmax.f32 %v1870, 0.0
      %v1916 = vmax.f32 %v1873, 0.0
      %v1917 = vmax.f32 %v1876, 0.0
      %v1918 = vmax.f32 %v1879, 0.0
      %v1919 = vmax.f32 %v1882, 0.0
      %v1920 = vmax.f32 %v1885, 0.0
      %v1921 = vmax.f32 %v1888, 0.0
      %1922 = vst.msk [vmem:[#allocation3] sm:$0xff] %vm1436, 0.0
      %1923 = vst.msk [vmem:[#allocation3 + $0x8] sm:$0xff] %vm1436, 0.0
      %vm1924 = vcmask 58368
      %1925 = vst.msk [vmem:[#allocation3 + $0x10] sm:$0x3] %vm1924, 0.0
      %1926 = vst.msk [vmem:[#allocation3 + $0x18] sm:$0xff] %vm1436, 0.0
      %1927 = vst.msk [vmem:[#allocation3 + $0x20] sm:$0xff] %vm1436, 0.0
      %1928 = vst.msk [vmem:[#allocation3 + $0x28] sm:$0x3] %vm1924, 0.0
      %1929 = vst.msk [vmem:[#allocation3 + $0x30] sm:$0xff] %vm1436, 0.0
      %1930 = vst.msk [vmem:[#allocation3 + $0x38] sm:$0xff] %vm1436, 0.0
      %1931 = vst.msk [vmem:[#allocation3 + $0x40] sm:$0x3] %vm1924, 0.0
      %1932 = vst.msk [vmem:[#allocation3 + $0x48] sm:$0xff] %vm1436, 0.0
      %1933 = vst.msk [vmem:[#allocation3 + $0x50] sm:$0xff] %vm1436, 0.0
      %1934 = vst.msk [vmem:[#allocation3 + $0x58] sm:$0x3] %vm1924, 0.0
      %1935 = vst.msk [vmem:[#allocation3 + $0x60] sm:$0xff] %vm1436, 0.0
      %1936 = vst.msk [vmem:[#allocation3 + $0x68] sm:$0xff] %vm1436, 0.0
      %1937 = vst.msk [vmem:[#allocation3 + $0x70] sm:$0x3] %vm1924, 0.0
      %1938 = vst.msk [vmem:[#allocation3 + $0x78] sm:$0xff] %vm1436, 0.0
      %1939 = vst.msk [vmem:[#allocation3 + $0x80] sm:$0xff] %vm1436, 0.0
      %1940 = vst.msk [vmem:[#allocation3 + $0x88] sm:$0x3] %vm1924, 0.0
      %1941 = vst.msk [vmem:[#allocation3 + $0x90] sm:$0xff] %vm1436, 0.0
      %1942 = vst.msk [vmem:[#allocation3 + $0x98] sm:$0xff] %vm1436, 0.0
      %1943 = vst.msk [vmem:[#allocation3 + $0xa0] sm:$0x3] %vm1924, 0.0
      %1944 = vst.msk [vmem:[#allocation3 + $0xa8] sm:$0xff] %vm1436, 0.0
      %1945 = vst.msk [vmem:[#allocation3 + $0xb0] sm:$0xff] %vm1436, 0.0
      %1946 = vst.msk [vmem:[#allocation3 + $0xb8] sm:$0x3] %vm1924, 0.0
      %1947 = vst.msk [vmem:[#allocation3 + $0xc0] sm:$0xff] %vm1436, 0.0
      %1948 = vst.msk [vmem:[#allocation3 + $0xc8] sm:$0xff] %vm1436, 0.0
      %1949 = vst.msk [vmem:[#allocation3 + $0xd0] sm:$0x3] %vm1924, 0.0
      %1950 = vst.msk [vmem:[#allocation3 + $0xd8] sm:$0xff] %vm1436, 0.0
      %1951 = vst.msk [vmem:[#allocation3 + $0xe0] sm:$0xff] %vm1436, 0.0
      %1952 = vst.msk [vmem:[#allocation3 + $0xe8] sm:$0x3] %vm1924, 0.0
      %1953 = vst.msk [vmem:[#allocation3 + $0xf0] sm:$0xff] %vm1436, 0.0
      %1954 = vst.msk [vmem:[#allocation3 + $0xf8] sm:$0xff] %vm1436, 0.0
      %1955 = vst.msk [vmem:[#allocation3 + $0x100] sm:$0x3] %vm1924, 0.0
      %1956 = vst.msk [vmem:[#allocation3 + $0x108] sm:$0xff] %vm1436, 0.0
      %1957 = vst.msk [vmem:[#allocation3 + $0x110] sm:$0xff] %vm1436, 0.0
      %1958 = vst.msk [vmem:[#allocation3 + $0x118] sm:$0x3] %vm1924, 0.0
      %1959 = vst.msk [vmem:[#allocation3 + $0x120] sm:$0xff] %vm1436, 0.0
      %1960 = vst.msk [vmem:[#allocation3 + $0x128] sm:$0xff] %vm1436, 0.0
      %1961 = vst.msk [vmem:[#allocation3 + $0x130] sm:$0x3] %vm1924, 0.0
      %1962 = vst.msk [vmem:[#allocation3 + $0x138] sm:$0xff] %vm1436, 0.0
      %1963 = vst.msk [vmem:[#allocation3 + $0x140] sm:$0xff] %vm1436, 0.0
      %1964 = vst.msk [vmem:[#allocation3 + $0x148] sm:$0x3] %vm1924, 0.0
      %1965 = vst.msk [vmem:[#allocation3 + $0x150] sm:$0xff] %vm1436, 0.0
      %1966 = vst.msk [vmem:[#allocation3 + $0x158] sm:$0xff] %vm1436, 0.0
      %1967 = vst.msk [vmem:[#allocation3 + $0x160] sm:$0x3] %vm1924, 0.0
      %1968 = vst.msk [vmem:[#allocation3 + $0x168] sm:$0xff] %vm1436, 0.0
      %1969 = vst.msk [vmem:[#allocation3 + $0x170] sm:$0xff] %vm1436, 0.0
      %1970 = vst.msk [vmem:[#allocation3 + $0x178] sm:$0x3] %vm1924, 0.0
      %1971 = vst.msk [vmem:[#allocation3 + $0x180] sm:$0xff] %vm1436, 0.0
      %1972 = vst.msk [vmem:[#allocation3 + $0x188] sm:$0xff] %vm1436, 0.0
      %1973 = vst.msk [vmem:[#allocation3 + $0x190] sm:$0x3] %vm1924, 0.0
      %1974 = vst.msk [vmem:[#allocation3 + $0x198] sm:$0xff] %vm1436, 0.0
      %1975 = vst.msk [vmem:[#allocation3 + $0x1a0] sm:$0xff] %vm1436, 0.0
      %1976 = vst.msk [vmem:[#allocation3 + $0x1a8] sm:$0x3] %vm1924, 0.0
      %s1977 = scalar_lea.vmem [#allocation3], 24
      %1978 = vst.msk [vmem:[%s1977 + $0x1] sm:$0xff] %vm1436, %v1890
      %1979 = vst.msk [vmem:[%s1977 + $0x9] sm:$0xff] %vm1436, %v1891
      %1980 = vst.msk [vmem:[%s1977 + $0x19] sm:$0xff] %vm1436, %v1892
      %1981 = vst.msk [vmem:[%s1977 + $0x21] sm:$0xff] %vm1436, %v1893
      %1982 = vst.msk [vmem:[%s1977 + $0x31] sm:$0xff] %vm1436, %v1894
      %1983 = vst.msk [vmem:[%s1977 + $0x39] sm:$0xff] %vm1436, %v1895
      %1984 = vst.msk [vmem:[%s1977 + $0x49] sm:$0xff] %vm1436, %v1896
      %1985 = vst.msk [vmem:[%s1977 + $0x51] sm:$0xff] %vm1436, %v1897
      %1986 = vst.msk [vmem:[%s1977 + $0x61] sm:$0xff] %vm1436, %v1898
      %1987 = vst.msk [vmem:[%s1977 + $0x69] sm:$0xff] %vm1436, %v1899
      %1988 = vst.msk [vmem:[%s1977 + $0x79] sm:$0xff] %vm1436, %v1900
      %1989 = vst.msk [vmem:[%s1977 + $0x81] sm:$0xff] %vm1436, %v1901
      %1990 = vst.msk [vmem:[%s1977 + $0x91] sm:$0xff] %vm1436, %v1902
      %1991 = vst.msk [vmem:[%s1977 + $0x99] sm:$0xff] %vm1436, %v1903
      %1992 = vst.msk [vmem:[%s1977 + $0xa9] sm:$0xff] %vm1436, %v1904
      %1993 = vst.msk [vmem:[%s1977 + $0xb1] sm:$0xff] %vm1436, %v1905
      %1994 = vst.msk [vmem:[%s1977 + $0xc1] sm:$0xff] %vm1436, %v1906
      %1995 = vst.msk [vmem:[%s1977 + $0xc9] sm:$0xff] %vm1436, %v1907
      %1996 = vst.msk [vmem:[%s1977 + $0xd9] sm:$0xff] %vm1436, %v1908
      %1997 = vst.msk [vmem:[%s1977 + $0xe1] sm:$0xff] %vm1436, %v1909
      %1998 = vst.msk [vmem:[%s1977 + $0xf1] sm:$0xff] %vm1436, %v1910
      %1999 = vst.msk [vmem:[%s1977 + $0xf9] sm:$0xff] %vm1436, %v1911
      %2000 = vst.msk [vmem:[%s1977 + $0x109] sm:$0xff] %vm1436, %v1912
      %2001 = vst.msk [vmem:[%s1977 + $0x111] sm:$0xff] %vm1436, %v1913
      %2002 = vst.msk [vmem:[%s1977 + $0x121] sm:$0xff] %vm1436, %v1914
      %2003 = vst.msk [vmem:[%s1977 + $0x129] sm:$0xff] %vm1436, %v1915
      %2004 = vst.msk [vmem:[%s1977 + $0x139] sm:$0xff] %vm1436, %v1916
      %2005 = vst.msk [vmem:[%s1977 + $0x141] sm:$0xff] %vm1436, %v1917
      %2006 = vst.msk [vmem:[%s1977 + $0x151] sm:$0xff] %vm1436, %v1918
      %2007 = vst.msk [vmem:[%s1977 + $0x159] sm:$0xff] %vm1436, %v1919
      %2008 = vst.msk [vmem:[%s1977 + $0x169] sm:$0xff] %vm1436, %v1920
      %2009 = vst.msk [vmem:[%s1977 + $0x171] sm:$0xff] %vm1436, %v1921
      %v2010 = vld [vmem:[#allocation3] sm:$0xff]
      %v2011 = vld [vmem:[#allocation3 + $0x8] sm:$0xff]
      %v2012 = vld [vmem:[#allocation3 + $0x10] sm:$0x3]
      %v2013 = vld [vmem:[#allocation3 + $0x18] sm:$0xff]
      %v2014 = vld [vmem:[#allocation3 + $0x20] sm:$0xff]
      %v2015 = vld [vmem:[#allocation3 + $0x28] sm:$0x3]
      %v2016 = vld [vmem:[#allocation3 + $0x30] sm:$0xff]
      %v2017 = vld [vmem:[#allocation3 + $0x38] sm:$0xff]
      %v2018 = vld [vmem:[#allocation3 + $0x40] sm:$0x3]
      %v2019 = vld [vmem:[#allocation3 + $0x48] sm:$0xff]
      %v2020 = vld [vmem:[#allocation3 + $0x50] sm:$0xff]
      %v2021 = vld [vmem:[#allocation3 + $0x58] sm:$0x3]
      %v2022 = vld [vmem:[#allocation3 + $0x60] sm:$0xff]
      %v2023 = vld [vmem:[#allocation3 + $0x68] sm:$0xff]
      %v2024 = vld [vmem:[#allocation3 + $0x70] sm:$0x3]
      %v2025 = vld [vmem:[#allocation3 + $0x78] sm:$0xff]
      %v2026 = vld [vmem:[#allocation3 + $0x80] sm:$0xff]
      %v2027 = vld [vmem:[#allocation3 + $0x88] sm:$0x3]
      %v2028 = vld [vmem:[#allocation3 + $0x90] sm:$0xff]
      %v2029 = vld [vmem:[#allocation3 + $0x98] sm:$0xff]
      %v2030 = vld [vmem:[#allocation3 + $0xa0] sm:$0x3]
      %v2031 = vld [vmem:[#allocation3 + $0xa8] sm:$0xff]
      %v2032 = vld [vmem:[#allocation3 + $0xb0] sm:$0xff]
      %v2033 = vld [vmem:[#allocation3 + $0xb8] sm:$0x3]
      %v2034 = vld [vmem:[#allocation3 + $0xc0] sm:$0xff]
      %v2035 = vld [vmem:[#allocation3 + $0xc8] sm:$0xff]
      %v2036 = vld [vmem:[#allocation3 + $0xd0] sm:$0x3]
      %v2037 = vld [vmem:[#allocation3 + $0xd8] sm:$0xff]
      %v2038 = vld [vmem:[#allocation3 + $0xe0] sm:$0xff]
      %v2039 = vld [vmem:[#allocation3 + $0xe8] sm:$0x3]
      %v2040 = vld [vmem:[#allocation3 + $0xf0] sm:$0xff]
      %v2041 = vld [vmem:[#allocation3 + $0xf8] sm:$0xff]
      %v2042 = vld [vmem:[#allocation3 + $0x100] sm:$0x3]
      %v2043 = vld [vmem:[#allocation3 + $0x108] sm:$0xff]
      %v2044 = vld [vmem:[#allocation3 + $0x110] sm:$0xff]
      %v2045 = vld [vmem:[#allocation3 + $0x118] sm:$0x3]
      %v2046 = vld [vmem:[#allocation3 + $0x120] sm:$0xff]
      %v2047 = vld [vmem:[#allocation3 + $0x128] sm:$0xff]
      %v2048 = vld [vmem:[#allocation3 + $0x130] sm:$0x3]
      %v2049 = vld [vmem:[#allocation3 + $0x138] sm:$0xff]
      %v2050 = vld [vmem:[#allocation3 + $0x140] sm:$0xff]
      %v2051 = vld [vmem:[#allocation3 + $0x148] sm:$0x3]
      %v2052 = vld [vmem:[#allocation3 + $0x150] sm:$0xff]
      %v2053 = vld [vmem:[#allocation3 + $0x158] sm:$0xff]
      %v2054 = vld [vmem:[#allocation3 + $0x160] sm:$0x3]
      %v2055 = vld [vmem:[#allocation3 + $0x168] sm:$0xff]
      %v2056 = vld [vmem:[#allocation3 + $0x170] sm:$0xff]
      %v2057 = vld [vmem:[#allocation3 + $0x178] sm:$0x3]
      %v2058 = vld [vmem:[#allocation3 + $0x180] sm:$0xff]
      %v2059 = vld [vmem:[#allocation3 + $0x188] sm:$0xff]
      %v2060 = vld [vmem:[#allocation3 + $0x190] sm:$0x3]
      %v2061 = vld [vmem:[#allocation3 + $0x198] sm:$0xff]
      %v2062 = vld [vmem:[#allocation3 + $0x1a0] sm:$0xff]
      %v2063 = vld [vmem:[#allocation3 + $0x1a8] sm:$0x3]
      %v2112 = vrot.slane %v2010, 1
      %v2113 = vrot.slane %v2011, 1
      %v2114 = vsel %vm448, %v2112, %v2113
      %v2115 = vrot.slane %v2012, 1
      %v2116 = vsel %vm448, %v2113, %v2115
      %v2117 = vrot.slane %v2013, 1
      %v2118 = vrot.slane %v2014, 1
      %v2119 = vsel %vm448, %v2117, %v2118
      %v2120 = vrot.slane %v2015, 1
      %v2121 = vsel %vm448, %v2118, %v2120
      %v2122 = vrot.slane %v2016, 1
      %v2123 = vrot.slane %v2017, 1
      %v2124 = vsel %vm448, %v2122, %v2123
      %v2125 = vrot.slane %v2018, 1
      %v2126 = vsel %vm448, %v2123, %v2125
      %v2127 = vrot.slane %v2019, 1
      %v2128 = vrot.slane %v2020, 1
      %v2129 = vsel %vm448, %v2127, %v2128
      %v2130 = vrot.slane %v2021, 1
      %v2131 = vsel %vm448, %v2128, %v2130
      %v2132 = vrot.slane %v2022, 1
      %v2133 = vrot.slane %v2023, 1
      %v2134 = vsel %vm448, %v2132, %v2133
      %v2135 = vrot.slane %v2024, 1
      %v2136 = vsel %vm448, %v2133, %v2135
      %v2137 = vrot.slane %v2025, 1
      %v2138 = vrot.slane %v2026, 1
      %v2139 = vsel %vm448, %v2137, %v2138
      %v2140 = vrot.slane %v2027, 1
      %v2141 = vsel %vm448, %v2138, %v2140
      %v2142 = vrot.slane %v2028, 1
      %v2143 = vrot.slane %v2029, 1
      %v2144 = vsel %vm448, %v2142, %v2143
      %v2145 = vrot.slane %v2030, 1
      %v2146 = vsel %vm448, %v2143, %v2145
      %v2147 = vrot.slane %v2031, 1
      %v2148 = vrot.slane %v2032, 1
      %v2149 = vsel %vm448, %v2147, %v2148
      %v2150 = vrot.slane %v2033, 1
      %v2151 = vsel %vm448, %v2148, %v2150
      %v2152 = vrot.slane %v2034, 1
      %v2153 = vrot.slane %v2035, 1
      %v2154 = vsel %vm448, %v2152, %v2153
      %v2155 = vrot.slane %v2036, 1
      %v2156 = vsel %vm448, %v2153, %v2155
      %v2157 = vrot.slane %v2037, 1
      %v2158 = vrot.slane %v2038, 1
      %v2159 = vsel %vm448, %v2157, %v2158
      %v2160 = vrot.slane %v2039, 1
      %v2161 = vsel %vm448, %v2158, %v2160
      %v2162 = vrot.slane %v2040, 1
      %v2163 = vrot.slane %v2041, 1
      %v2164 = vsel %vm448, %v2162, %v2163
      %v2165 = vrot.slane %v2042, 1
      %v2166 = vsel %vm448, %v2163, %v2165
      %v2167 = vrot.slane %v2043, 1
      %v2168 = vrot.slane %v2044, 1
      %v2169 = vsel %vm448, %v2167, %v2168
      %v2170 = vrot.slane %v2045, 1
      %v2171 = vsel %vm448, %v2168, %v2170
      %v2172 = vrot.slane %v2046, 1
      %v2173 = vrot.slane %v2047, 1
      %v2174 = vsel %vm448, %v2172, %v2173
      %v2175 = vrot.slane %v2048, 1
      %v2176 = vsel %vm448, %v2173, %v2175
      %v2177 = vrot.slane %v2049, 1
      %v2178 = vrot.slane %v2050, 1
      %v2179 = vsel %vm448, %v2177, %v2178
      %v2180 = vrot.slane %v2051, 1
      %v2181 = vsel %vm448, %v2178, %v2180
      %v2182 = vrot.slane %v2052, 1
      %v2183 = vrot.slane %v2053, 1
      %v2184 = vsel %vm448, %v2182, %v2183
      %v2185 = vrot.slane %v2054, 1
      %v2186 = vsel %vm448, %v2183, %v2185
      %v2187 = vrot.slane %v2055, 1
      %v2188 = vrot.slane %v2056, 1
      %v2189 = vsel %vm448, %v2187, %v2188
      %v2190 = vrot.slane %v2057, 1
      %v2191 = vsel %vm448, %v2188, %v2190
      %2192 = vrot.lane.b32.xlu0 %v2114, 8
      %v2193 = vpop.permute.xlu0 %2192
      %2194 = vrot.lane.b32.xlu0 %v2116, 8
      %v2195 = vpop.permute.xlu0 %2194
      %2196 = vrot.lane.b32.xlu0 %v2119, 8
      %v2197 = vpop.permute.xlu0 %2196
      %2198 = vrot.lane.b32.xlu0 %v2121, 8
      %v2199 = vpop.permute.xlu0 %2198
      %2200 = vrot.lane.b32.xlu0 %v2124, 8
      %v2201 = vpop.permute.xlu0 %2200
      %2202 = vrot.lane.b32.xlu0 %v2126, 8
      %v2203 = vpop.permute.xlu0 %2202
      %2204 = vrot.lane.b32.xlu0 %v2129, 8
      %v2205 = vpop.permute.xlu0 %2204
      %2206 = vrot.lane.b32.xlu0 %v2131, 8
      %v2207 = vpop.permute.xlu0 %2206
      %2208 = vrot.lane.b32.xlu0 %v2134, 8
      %v2209 = vpop.permute.xlu0 %2208
      %2210 = vrot.lane.b32.xlu0 %v2136, 8
      %v2211 = vpop.permute.xlu0 %2210
      %2212 = vrot.lane.b32.xlu0 %v2139, 8
      %v2213 = vpop.permute.xlu0 %2212
      %2214 = vrot.lane.b32.xlu0 %v2141, 8
      %v2215 = vpop.permute.xlu0 %2214
      %2216 = vrot.lane.b32.xlu0 %v2144, 8
      %v2217 = vpop.permute.xlu0 %2216
      %2218 = vrot.lane.b32.xlu0 %v2146, 8
      %v2219 = vpop.permute.xlu0 %2218
      %2220 = vrot.lane.b32.xlu0 %v2149, 8
      %v2221 = vpop.permute.xlu0 %2220
      %2222 = vrot.lane.b32.xlu0 %v2151, 8
      %v2223 = vpop.permute.xlu0 %2222
      %2224 = vrot.lane.b32.xlu0 %v2154, 8
      %v2225 = vpop.permute.xlu0 %2224
      %2226 = vrot.lane.b32.xlu0 %v2156, 8
      %v2227 = vpop.permute.xlu0 %2226
      %2228 = vrot.lane.b32.xlu0 %v2159, 8
      %v2229 = vpop.permute.xlu0 %2228
      %2230 = vrot.lane.b32.xlu0 %v2161, 8
      %v2231 = vpop.permute.xlu0 %2230
      %2232 = vrot.lane.b32.xlu0 %v2164, 8
      %v2233 = vpop.permute.xlu0 %2232
      %2234 = vrot.lane.b32.xlu0 %v2166, 8
      %v2235 = vpop.permute.xlu0 %2234
      %2236 = vrot.lane.b32.xlu0 %v2169, 8
      %v2237 = vpop.permute.xlu0 %2236
      %2238 = vrot.lane.b32.xlu0 %v2171, 8
      %v2239 = vpop.permute.xlu0 %2238
      %2240 = vrot.lane.b32.xlu0 %v2174, 8
      %v2241 = vpop.permute.xlu0 %2240
      %2242 = vrot.lane.b32.xlu0 %v2176, 8
      %v2243 = vpop.permute.xlu0 %2242
      %2244 = vrot.lane.b32.xlu0 %v2179, 8
      %v2245 = vpop.permute.xlu0 %2244
      %2246 = vrot.lane.b32.xlu0 %v2181, 8
      %v2247 = vpop.permute.xlu0 %2246
      %2248 = vrot.lane.b32.xlu0 %v2184, 8
      %v2249 = vpop.permute.xlu0 %2248
      %2250 = vrot.lane.b32.xlu0 %v2186, 8
      %v2251 = vpop.permute.xlu0 %2250
      %2252 = vrot.lane.b32.xlu0 %v2189, 8
      %v2253 = vpop.permute.xlu0 %2252
      %2254 = vrot.lane.b32.xlu0 %v2191, 8
      %v2255 = vpop.permute.xlu0 %2254
      %v2288 = vrot.slane %v2010, 2
      %v2289 = vrot.slane %v2011, 2
      %v2290 = vsel %vm625, %v2288, %v2289
      %v2291 = vrot.slane %v2012, 2
      %v2292 = vsel %vm625, %v2289, %v2291
      %v2293 = vrot.slane %v2013, 2
      %v2294 = vrot.slane %v2014, 2
      %v2295 = vsel %vm625, %v2293, %v2294
      %v2296 = vrot.slane %v2015, 2
      %v2297 = vsel %vm625, %v2294, %v2296
      %v2298 = vrot.slane %v2016, 2
      %v2299 = vrot.slane %v2017, 2
      %v2300 = vsel %vm625, %v2298, %v2299
      %v2301 = vrot.slane %v2018, 2
      %v2302 = vsel %vm625, %v2299, %v2301
      %v2303 = vrot.slane %v2019, 2
      %v2304 = vrot.slane %v2020, 2
      %v2305 = vsel %vm625, %v2303, %v2304
      %v2306 = vrot.slane %v2021, 2
      %v2307 = vsel %vm625, %v2304, %v2306
      %v2308 = vrot.slane %v2022, 2
      %v2309 = vrot.slane %v2023, 2
      %v2310 = vsel %vm625, %v2308, %v2309
      %v2311 = vrot.slane %v2024, 2
      %v2312 = vsel %vm625, %v2309, %v2311
      %v2313 = vrot.slane %v2025, 2
      %v2314 = vrot.slane %v2026, 2
      %v2315 = vsel %vm625, %v2313, %v2314
      %v2316 = vrot.slane %v2027, 2
      %v2317 = vsel %vm625, %v2314, %v2316
      %v2318 = vrot.slane %v2028, 2
      %v2319 = vrot.slane %v2029, 2
      %v2320 = vsel %vm625, %v2318, %v2319
      %v2321 = vrot.slane %v2030, 2
      %v2322 = vsel %vm625, %v2319, %v2321
      %v2323 = vrot.slane %v2031, 2
      %v2324 = vrot.slane %v2032, 2
      %v2325 = vsel %vm625, %v2323, %v2324
      %v2326 = vrot.slane %v2033, 2
      %v2327 = vsel %vm625, %v2324, %v2326
      %v2328 = vrot.slane %v2034, 2
      %v2329 = vrot.slane %v2035, 2
      %v2330 = vsel %vm625, %v2328, %v2329
      %v2331 = vrot.slane %v2036, 2
      %v2332 = vsel %vm625, %v2329, %v2331
      %v2333 = vrot.slane %v2037, 2
      %v2334 = vrot.slane %v2038, 2
      %v2335 = vsel %vm625, %v2333, %v2334
      %v2336 = vrot.slane %v2039, 2
      %v2337 = vsel %vm625, %v2334, %v2336
      %v2338 = vrot.slane %v2040, 2
      %v2339 = vrot.slane %v2041, 2
      %v2340 = vsel %vm625, %v2338, %v2339
      %v2341 = vrot.slane %v2042, 2
      %v2342 = vsel %vm625, %v2339, %v2341
      %v2343 = vrot.slane %v2043, 2
      %v2344 = vrot.slane %v2044, 2
      %v2345 = vsel %vm625, %v2343, %v2344
      %v2346 = vrot.slane %v2045, 2
      %v2347 = vsel %vm625, %v2344, %v2346
      %v2348 = vrot.slane %v2046, 2
      %v2349 = vrot.slane %v2047, 2
      %v2350 = vsel %vm625, %v2348, %v2349
      %v2351 = vrot.slane %v2048, 2
      %v2352 = vsel %vm625, %v2349, %v2351
      %v2353 = vrot.slane %v2049, 2
      %v2354 = vrot.slane %v2050, 2
      %v2355 = vsel %vm625, %v2353, %v2354
      %v2356 = vrot.slane %v2051, 2
      %v2357 = vsel %vm625, %v2354, %v2356
      %v2358 = vrot.slane %v2052, 2
      %v2359 = vrot.slane %v2053, 2
      %v2360 = vsel %vm625, %v2358, %v2359
      %v2361 = vrot.slane %v2054, 2
      %v2362 = vsel %vm625, %v2359, %v2361
      %v2363 = vrot.slane %v2055, 2
      %v2364 = vrot.slane %v2056, 2
      %v2365 = vsel %vm625, %v2363, %v2364
      %v2366 = vrot.slane %v2057, 2
      %v2367 = vsel %vm625, %v2364, %v2366
      %2368 = vrot.lane.b32.xlu0 %v2290, 16
      %v2369 = vpop.permute.xlu0 %2368
      %2370 = vrot.lane.b32.xlu0 %v2292, 16
      %v2371 = vpop.permute.xlu0 %2370
      %2372 = vrot.lane.b32.xlu0 %v2295, 16
      %v2373 = vpop.permute.xlu0 %2372
      %2374 = vrot.lane.b32.xlu0 %v2297, 16
      %v2375 = vpop.permute.xlu0 %2374
      %2376 = vrot.lane.b32.xlu0 %v2300, 16
      %v2377 = vpop.permute.xlu0 %2376
      %2378 = vrot.lane.b32.xlu0 %v2302, 16
      %v2379 = vpop.permute.xlu0 %2378
      %2380 = vrot.lane.b32.xlu0 %v2305, 16
      %v2381 = vpop.permute.xlu0 %2380
      %2382 = vrot.lane.b32.xlu0 %v2307, 16
      %v2383 = vpop.permute.xlu0 %2382
      %2384 = vrot.lane.b32.xlu0 %v2310, 16
      %v2385 = vpop.permute.xlu0 %2384
      %2386 = vrot.lane.b32.xlu0 %v2312, 16
      %v2387 = vpop.permute.xlu0 %2386
      %2388 = vrot.lane.b32.xlu0 %v2315, 16
      %v2389 = vpop.permute.xlu0 %2388
      %2390 = vrot.lane.b32.xlu0 %v2317, 16
      %v2391 = vpop.permute.xlu0 %2390
      %2392 = vrot.lane.b32.xlu0 %v2320, 16
      %v2393 = vpop.permute.xlu0 %2392
      %2394 = vrot.lane.b32.xlu0 %v2322, 16
      %v2395 = vpop.permute.xlu0 %2394
      %2396 = vrot.lane.b32.xlu0 %v2325, 16
      %v2397 = vpop.permute.xlu0 %2396
      %2398 = vrot.lane.b32.xlu0 %v2327, 16
      %v2399 = vpop.permute.xlu0 %2398
      %2400 = vrot.lane.b32.xlu0 %v2330, 16
      %v2401 = vpop.permute.xlu0 %2400
      %2402 = vrot.lane.b32.xlu0 %v2332, 16
      %v2403 = vpop.permute.xlu0 %2402
      %2404 = vrot.lane.b32.xlu0 %v2335, 16
      %v2405 = vpop.permute.xlu0 %2404
      %2406 = vrot.lane.b32.xlu0 %v2337, 16
      %v2407 = vpop.permute.xlu0 %2406
      %2408 = vrot.lane.b32.xlu0 %v2340, 16
      %v2409 = vpop.permute.xlu0 %2408
      %2410 = vrot.lane.b32.xlu0 %v2342, 16
      %v2411 = vpop.permute.xlu0 %2410
      %2412 = vrot.lane.b32.xlu0 %v2345, 16
      %v2413 = vpop.permute.xlu0 %2412
      %2414 = vrot.lane.b32.xlu0 %v2347, 16
      %v2415 = vpop.permute.xlu0 %2414
      %2416 = vrot.lane.b32.xlu0 %v2350, 16
      %v2417 = vpop.permute.xlu0 %2416
      %2418 = vrot.lane.b32.xlu0 %v2352, 16
      %v2419 = vpop.permute.xlu0 %2418
      %2420 = vrot.lane.b32.xlu0 %v2355, 16
      %v2421 = vpop.permute.xlu0 %2420
      %2422 = vrot.lane.b32.xlu0 %v2357, 16
      %v2423 = vpop.permute.xlu0 %2422
      %2424 = vrot.lane.b32.xlu0 %v2360, 16
      %v2425 = vpop.permute.xlu0 %2424
      %2426 = vrot.lane.b32.xlu0 %v2362, 16
      %v2427 = vpop.permute.xlu0 %2426
      %2428 = vrot.lane.b32.xlu0 %v2365, 16
      %v2429 = vpop.permute.xlu0 %2428
      %2430 = vrot.lane.b32.xlu0 %v2367, 16
      %v2431 = vpop.permute.xlu0 %2430
      %2466 = vrot.lane.b32.xlu0 %v2013, 24
      %v2467 = vpop.permute.xlu0 %2466
      %2468 = vrot.lane.b32.xlu0 %v2014, 24
      %v2469 = vpop.permute.xlu0 %2468
      %2470 = vrot.lane.b32.xlu0 %v2016, 24
      %v2471 = vpop.permute.xlu0 %2470
      %2472 = vrot.lane.b32.xlu0 %v2017, 24
      %v2473 = vpop.permute.xlu0 %2472
      %2474 = vrot.lane.b32.xlu0 %v2019, 24
      %v2475 = vpop.permute.xlu0 %2474
      %2476 = vrot.lane.b32.xlu0 %v2020, 24
      %v2477 = vpop.permute.xlu0 %2476
      %2478 = vrot.lane.b32.xlu0 %v2022, 24
      %v2479 = vpop.permute.xlu0 %2478
      %2480 = vrot.lane.b32.xlu0 %v2023, 24
      %v2481 = vpop.permute.xlu0 %2480
      %2482 = vrot.lane.b32.xlu0 %v2025, 24
      %v2483 = vpop.permute.xlu0 %2482
      %2484 = vrot.lane.b32.xlu0 %v2026, 24
      %v2485 = vpop.permute.xlu0 %2484
      %2486 = vrot.lane.b32.xlu0 %v2028, 24
      %v2487 = vpop.permute.xlu0 %2486
      %2488 = vrot.lane.b32.xlu0 %v2029, 24
      %v2489 = vpop.permute.xlu0 %2488
      %2490 = vrot.lane.b32.xlu0 %v2031, 24
      %v2491 = vpop.permute.xlu0 %2490
      %2492 = vrot.lane.b32.xlu0 %v2032, 24
      %v2493 = vpop.permute.xlu0 %2492
      %2494 = vrot.lane.b32.xlu0 %v2034, 24
      %v2495 = vpop.permute.xlu0 %2494
      %2496 = vrot.lane.b32.xlu0 %v2035, 24
      %v2497 = vpop.permute.xlu0 %2496
      %2498 = vrot.lane.b32.xlu0 %v2037, 24
      %v2499 = vpop.permute.xlu0 %2498
      %2500 = vrot.lane.b32.xlu0 %v2038, 24
      %v2501 = vpop.permute.xlu0 %2500
      %2502 = vrot.lane.b32.xlu0 %v2040, 24
      %v2503 = vpop.permute.xlu0 %2502
      %2504 = vrot.lane.b32.xlu0 %v2041, 24
      %v2505 = vpop.permute.xlu0 %2504
      %2506 = vrot.lane.b32.xlu0 %v2043, 24
      %v2507 = vpop.permute.xlu0 %2506
      %2508 = vrot.lane.b32.xlu0 %v2044, 24
      %v2509 = vpop.permute.xlu0 %2508
      %2510 = vrot.lane.b32.xlu0 %v2046, 24
      %v2511 = vpop.permute.xlu0 %2510
      %2512 = vrot.lane.b32.xlu0 %v2047, 24
      %v2513 = vpop.permute.xlu0 %2512
      %2514 = vrot.lane.b32.xlu0 %v2049, 24
      %v2515 = vpop.permute.xlu0 %2514
      %2516 = vrot.lane.b32.xlu0 %v2050, 24
      %v2517 = vpop.permute.xlu0 %2516
      %2518 = vrot.lane.b32.xlu0 %v2052, 24
      %v2519 = vpop.permute.xlu0 %2518
      %2520 = vrot.lane.b32.xlu0 %v2053, 24
      %v2521 = vpop.permute.xlu0 %2520
      %2522 = vrot.lane.b32.xlu0 %v2055, 24
      %v2523 = vpop.permute.xlu0 %2522
      %2524 = vrot.lane.b32.xlu0 %v2056, 24
      %v2525 = vpop.permute.xlu0 %2524
      %2526 = vrot.lane.b32.xlu0 %v2058, 24
      %v2527 = vpop.permute.xlu0 %2526
      %2528 = vrot.lane.b32.xlu0 %v2059, 24
      %v2529 = vpop.permute.xlu0 %2528
      %v2563 = vrot.slane %v2058, 1
      %v2564 = vrot.slane %v2059, 1
      %v2565 = vsel %vm448, %v2563, %v2564
      %v2566 = vrot.slane %v2060, 1
      %v2567 = vsel %vm448, %v2564, %v2566
      %2568 = vrot.lane.b32.xlu0 %v2119, 32
      %v2569 = vpop.permute.xlu0 %2568
      %2570 = vrot.lane.b32.xlu0 %v2121, 32
      %v2571 = vpop.permute.xlu0 %2570
      %2572 = vrot.lane.b32.xlu0 %v2124, 32
      %v2573 = vpop.permute.xlu0 %2572
      %2574 = vrot.lane.b32.xlu0 %v2126, 32
      %v2575 = vpop.permute.xlu0 %2574
      %2576 = vrot.lane.b32.xlu0 %v2129, 32
      %v2577 = vpop.permute.xlu0 %2576
      %2578 = vrot.lane.b32.xlu0 %v2131, 32
      %v2579 = vpop.permute.xlu0 %2578
      %2580 = vrot.lane.b32.xlu0 %v2134, 32
      %v2581 = vpop.permute.xlu0 %2580
      %2582 = vrot.lane.b32.xlu0 %v2136, 32
      %v2583 = vpop.permute.xlu0 %2582
      %2584 = vrot.lane.b32.xlu0 %v2139, 32
      %v2585 = vpop.permute.xlu0 %2584
      %2586 = vrot.lane.b32.xlu0 %v2141, 32
      %v2587 = vpop.permute.xlu0 %2586
      %2588 = vrot.lane.b32.xlu0 %v2144, 32
      %v2589 = vpop.permute.xlu0 %2588
      %2590 = vrot.lane.b32.xlu0 %v2146, 32
      %v2591 = vpop.permute.xlu0 %2590
      %2592 = vrot.lane.b32.xlu0 %v2149, 32
      %v2593 = vpop.permute.xlu0 %2592
      %2594 = vrot.lane.b32.xlu0 %v2151, 32
      %v2595 = vpop.permute.xlu0 %2594
      %2596 = vrot.lane.b32.xlu0 %v2154, 32
      %v2597 = vpop.permute.xlu0 %2596
      %2598 = vrot.lane.b32.xlu0 %v2156, 32
      %v2599 = vpop.permute.xlu0 %2598
      %2600 = vrot.lane.b32.xlu0 %v2159, 32
      %v2601 = vpop.permute.xlu0 %2600
      %2602 = vrot.lane.b32.xlu0 %v2161, 32
      %v2603 = vpop.permute.xlu0 %2602
      %2604 = vrot.lane.b32.xlu0 %v2164, 32
      %v2605 = vpop.permute.xlu0 %2604
      %2606 = vrot.lane.b32.xlu0 %v2166, 32
      %v2607 = vpop.permute.xlu0 %2606
      %2608 = vrot.lane.b32.xlu0 %v2169, 32
      %v2609 = vpop.permute.xlu0 %2608
      %2610 = vrot.lane.b32.xlu0 %v2171, 32
      %v2611 = vpop.permute.xlu0 %2610
      %2612 = vrot.lane.b32.xlu0 %v2174, 32
      %v2613 = vpop.permute.xlu0 %2612
      %2614 = vrot.lane.b32.xlu0 %v2176, 32
      %v2615 = vpop.permute.xlu0 %2614
      %2616 = vrot.lane.b32.xlu0 %v2179, 32
      %v2617 = vpop.permute.xlu0 %2616
      %2618 = vrot.lane.b32.xlu0 %v2181, 32
      %v2619 = vpop.permute.xlu0 %2618
      %2620 = vrot.lane.b32.xlu0 %v2184, 32
      %v2621 = vpop.permute.xlu0 %2620
      %2622 = vrot.lane.b32.xlu0 %v2186, 32
      %v2623 = vpop.permute.xlu0 %2622
      %2624 = vrot.lane.b32.xlu0 %v2189, 32
      %v2625 = vpop.permute.xlu0 %2624
      %2626 = vrot.lane.b32.xlu0 %v2191, 32
      %v2627 = vpop.permute.xlu0 %2626
      %2628 = vrot.lane.b32.xlu0 %v2565, 32
      %v2629 = vpop.permute.xlu0 %2628
      %2630 = vrot.lane.b32.xlu0 %v2567, 32
      %v2631 = vpop.permute.xlu0 %2630
      %v2664 = vrot.slane %v2058, 2
      %v2665 = vrot.slane %v2059, 2
      %v2666 = vsel %vm625, %v2664, %v2665
      %v2667 = vrot.slane %v2060, 2
      %v2668 = vsel %vm625, %v2665, %v2667
      %2669 = vrot.lane.b32.xlu0 %v2295, 40
      %v2670 = vpop.permute.xlu0 %2669
      %2671 = vrot.lane.b32.xlu0 %v2297, 40
      %v2672 = vpop.permute.xlu0 %2671
      %2673 = vrot.lane.b32.xlu0 %v2300, 40
      %v2674 = vpop.permute.xlu0 %2673
      %2675 = vrot.lane.b32.xlu0 %v2302, 40
      %v2676 = vpop.permute.xlu0 %2675
      %2677 = vrot.lane.b32.xlu0 %v2305, 40
      %v2678 = vpop.permute.xlu0 %2677
      %2679 = vrot.lane.b32.xlu0 %v2307, 40
      %v2680 = vpop.permute.xlu0 %2679
      %2681 = vrot.lane.b32.xlu0 %v2310, 40
      %v2682 = vpop.permute.xlu0 %2681
      %2683 = vrot.lane.b32.xlu0 %v2312, 40
      %v2684 = vpop.permute.xlu0 %2683
      %2685 = vrot.lane.b32.xlu0 %v2315, 40
      %v2686 = vpop.permute.xlu0 %2685
      %2687 = vrot.lane.b32.xlu0 %v2317, 40
      %v2688 = vpop.permute.xlu0 %2687
      %2689 = vrot.lane.b32.xlu0 %v2320, 40
      %v2690 = vpop.permute.xlu0 %2689
      %2691 = vrot.lane.b32.xlu0 %v2322, 40
      %v2692 = vpop.permute.xlu0 %2691
      %2693 = vrot.lane.b32.xlu0 %v2325, 40
      %v2694 = vpop.permute.xlu0 %2693
      %2695 = vrot.lane.b32.xlu0 %v2327, 40
      %v2696 = vpop.permute.xlu0 %2695
      %2697 = vrot.lane.b32.xlu0 %v2330, 40
      %v2698 = vpop.permute.xlu0 %2697
      %2699 = vrot.lane.b32.xlu0 %v2332, 40
      %v2700 = vpop.permute.xlu0 %2699
      %2701 = vrot.lane.b32.xlu0 %v2335, 40
      %v2702 = vpop.permute.xlu0 %2701
      %2703 = vrot.lane.b32.xlu0 %v2337, 40
      %v2704 = vpop.permute.xlu0 %2703
      %2705 = vrot.lane.b32.xlu0 %v2340, 40
      %v2706 = vpop.permute.xlu0 %2705
      %2707 = vrot.lane.b32.xlu0 %v2342, 40
      %v2708 = vpop.permute.xlu0 %2707
      %2709 = vrot.lane.b32.xlu0 %v2345, 40
      %v2710 = vpop.permute.xlu0 %2709
      %2711 = vrot.lane.b32.xlu0 %v2347, 40
      %v2712 = vpop.permute.xlu0 %2711
      %2713 = vrot.lane.b32.xlu0 %v2350, 40
      %v2714 = vpop.permute.xlu0 %2713
      %2715 = vrot.lane.b32.xlu0 %v2352, 40
      %v2716 = vpop.permute.xlu0 %2715
      %2717 = vrot.lane.b32.xlu0 %v2355, 40
      %v2718 = vpop.permute.xlu0 %2717
      %2719 = vrot.lane.b32.xlu0 %v2357, 40
      %v2720 = vpop.permute.xlu0 %2719
      %2721 = vrot.lane.b32.xlu0 %v2360, 40
      %v2722 = vpop.permute.xlu0 %2721
      %2723 = vrot.lane.b32.xlu0 %v2362, 40
      %v2724 = vpop.permute.xlu0 %2723
      %2725 = vrot.lane.b32.xlu0 %v2365, 40
      %v2726 = vpop.permute.xlu0 %2725
      %2727 = vrot.lane.b32.xlu0 %v2367, 40
      %v2728 = vpop.permute.xlu0 %2727
      %2729 = vrot.lane.b32.xlu0 %v2666, 40
      %v2730 = vpop.permute.xlu0 %2729
      %2731 = vrot.lane.b32.xlu0 %v2668, 40
      %v2732 = vpop.permute.xlu0 %2731
      %2767 = vrot.lane.b32.xlu0 %v2016, 48
      %v2768 = vpop.permute.xlu0 %2767
      %2769 = vrot.lane.b32.xlu0 %v2017, 48
      %v2770 = vpop.permute.xlu0 %2769
      %2771 = vrot.lane.b32.xlu0 %v2019, 48
      %v2772 = vpop.permute.xlu0 %2771
      %2773 = vrot.lane.b32.xlu0 %v2020, 48
      %v2774 = vpop.permute.xlu0 %2773
      %2775 = vrot.lane.b32.xlu0 %v2022, 48
      %v2776 = vpop.permute.xlu0 %2775
      %2777 = vrot.lane.b32.xlu0 %v2023, 48
      %v2778 = vpop.permute.xlu0 %2777
      %2779 = vrot.lane.b32.xlu0 %v2025, 48
      %v2780 = vpop.permute.xlu0 %2779
      %2781 = vrot.lane.b32.xlu0 %v2026, 48
      %v2782 = vpop.permute.xlu0 %2781
      %2783 = vrot.lane.b32.xlu0 %v2028, 48
      %v2784 = vpop.permute.xlu0 %2783
      %2785 = vrot.lane.b32.xlu0 %v2029, 48
      %v2786 = vpop.permute.xlu0 %2785
      %2787 = vrot.lane.b32.xlu0 %v2031, 48
      %v2788 = vpop.permute.xlu0 %2787
      %2789 = vrot.lane.b32.xlu0 %v2032, 48
      %v2790 = vpop.permute.xlu0 %2789
      %2791 = vrot.lane.b32.xlu0 %v2034, 48
      %v2792 = vpop.permute.xlu0 %2791
      %2793 = vrot.lane.b32.xlu0 %v2035, 48
      %v2794 = vpop.permute.xlu0 %2793
      %2795 = vrot.lane.b32.xlu0 %v2037, 48
      %v2796 = vpop.permute.xlu0 %2795
      %2797 = vrot.lane.b32.xlu0 %v2038, 48
      %v2798 = vpop.permute.xlu0 %2797
      %2799 = vrot.lane.b32.xlu0 %v2040, 48
      %v2800 = vpop.permute.xlu0 %2799
      %2801 = vrot.lane.b32.xlu0 %v2041, 48
      %v2802 = vpop.permute.xlu0 %2801
      %2803 = vrot.lane.b32.xlu0 %v2043, 48
      %v2804 = vpop.permute.xlu0 %2803
      %2805 = vrot.lane.b32.xlu0 %v2044, 48
      %v2806 = vpop.permute.xlu0 %2805
      %2807 = vrot.lane.b32.xlu0 %v2046, 48
      %v2808 = vpop.permute.xlu0 %2807
      %2809 = vrot.lane.b32.xlu0 %v2047, 48
      %v2810 = vpop.permute.xlu0 %2809
      %2811 = vrot.lane.b32.xlu0 %v2049, 48
      %v2812 = vpop.permute.xlu0 %2811
      %2813 = vrot.lane.b32.xlu0 %v2050, 48
      %v2814 = vpop.permute.xlu0 %2813
      %2815 = vrot.lane.b32.xlu0 %v2052, 48
      %v2816 = vpop.permute.xlu0 %2815
      %2817 = vrot.lane.b32.xlu0 %v2053, 48
      %v2818 = vpop.permute.xlu0 %2817
      %2819 = vrot.lane.b32.xlu0 %v2055, 48
      %v2820 = vpop.permute.xlu0 %2819
      %2821 = vrot.lane.b32.xlu0 %v2056, 48
      %v2822 = vpop.permute.xlu0 %2821
      %2823 = vrot.lane.b32.xlu0 %v2058, 48
      %v2824 = vpop.permute.xlu0 %2823
      %2825 = vrot.lane.b32.xlu0 %v2059, 48
      %v2826 = vpop.permute.xlu0 %2825
      %2827 = vrot.lane.b32.xlu0 %v2061, 48
      %v2828 = vpop.permute.xlu0 %2827
      %2829 = vrot.lane.b32.xlu0 %v2062, 48
      %v2830 = vpop.permute.xlu0 %2829
      %v2864 = vrot.slane %v2061, 1
      %v2865 = vrot.slane %v2062, 1
      %v2866 = vsel %vm448, %v2864, %v2865
      %v2867 = vrot.slane %v2063, 1
      %v2868 = vsel %vm448, %v2865, %v2867
      %2869 = vrot.lane.b32.xlu0 %v2124, 56
      %v2870 = vpop.permute.xlu0 %2869
      %2871 = vrot.lane.b32.xlu0 %v2126, 56
      %v2872 = vpop.permute.xlu0 %2871
      %2873 = vrot.lane.b32.xlu0 %v2129, 56
      %v2874 = vpop.permute.xlu0 %2873
      %2875 = vrot.lane.b32.xlu0 %v2131, 56
      %v2876 = vpop.permute.xlu0 %2875
      %2877 = vrot.lane.b32.xlu0 %v2134, 56
      %v2878 = vpop.permute.xlu0 %2877
      %2879 = vrot.lane.b32.xlu0 %v2136, 56
      %v2880 = vpop.permute.xlu0 %2879
      %2881 = vrot.lane.b32.xlu0 %v2139, 56
      %v2882 = vpop.permute.xlu0 %2881
      %2883 = vrot.lane.b32.xlu0 %v2141, 56
      %v2884 = vpop.permute.xlu0 %2883
      %2885 = vrot.lane.b32.xlu0 %v2144, 56
      %v2886 = vpop.permute.xlu0 %2885
      %2887 = vrot.lane.b32.xlu0 %v2146, 56
      %v2888 = vpop.permute.xlu0 %2887
      %2889 = vrot.lane.b32.xlu0 %v2149, 56
      %v2890 = vpop.permute.xlu0 %2889
      %2891 = vrot.lane.b32.xlu0 %v2151, 56
      %v2892 = vpop.permute.xlu0 %2891
      %2893 = vrot.lane.b32.xlu0 %v2154, 56
      %v2894 = vpop.permute.xlu0 %2893
      %2895 = vrot.lane.b32.xlu0 %v2156, 56
      %v2896 = vpop.permute.xlu0 %2895
      %2897 = vrot.lane.b32.xlu0 %v2159, 56
      %v2898 = vpop.permute.xlu0 %2897
      %2899 = vrot.lane.b32.xlu0 %v2161, 56
      %v2900 = vpop.permute.xlu0 %2899
      %2901 = vrot.lane.b32.xlu0 %v2164, 56
      %v2902 = vpop.permute.xlu0 %2901
      %2903 = vrot.lane.b32.xlu0 %v2166, 56
      %v2904 = vpop.permute.xlu0 %2903
      %2905 = vrot.lane.b32.xlu0 %v2169, 56
      %v2906 = vpop.permute.xlu0 %2905
      %2907 = vrot.lane.b32.xlu0 %v2171, 56
      %v2908 = vpop.permute.xlu0 %2907
      %2909 = vrot.lane.b32.xlu0 %v2174, 56
      %v2910 = vpop.permute.xlu0 %2909
      %2911 = vrot.lane.b32.xlu0 %v2176, 56
      %v2912 = vpop.permute.xlu0 %2911
      %2913 = vrot.lane.b32.xlu0 %v2179, 56
      %v2914 = vpop.permute.xlu0 %2913
      %2915 = vrot.lane.b32.xlu0 %v2181, 56
      %v2916 = vpop.permute.xlu0 %2915
      %2917 = vrot.lane.b32.xlu0 %v2184, 56
      %v2918 = vpop.permute.xlu0 %2917
      %2919 = vrot.lane.b32.xlu0 %v2186, 56
      %v2920 = vpop.permute.xlu0 %2919
      %2921 = vrot.lane.b32.xlu0 %v2189, 56
      %v2922 = vpop.permute.xlu0 %2921
      %2923 = vrot.lane.b32.xlu0 %v2191, 56
      %v2924 = vpop.permute.xlu0 %2923
      %2925 = vrot.lane.b32.xlu0 %v2565, 56
      %v2926 = vpop.permute.xlu0 %2925
      %2927 = vrot.lane.b32.xlu0 %v2567, 56
      %v2928 = vpop.permute.xlu0 %2927
      %2929 = vrot.lane.b32.xlu0 %v2866, 56
      %v2930 = vpop.permute.xlu0 %2929
      %2931 = vrot.lane.b32.xlu0 %v2868, 56
      %v2932 = vpop.permute.xlu0 %2931
      %v2965 = vrot.slane %v2061, 2
      %v2966 = vrot.slane %v2062, 2
      %v2967 = vsel %vm625, %v2965, %v2966
      %v2968 = vrot.slane %v2063, 2
      %v2969 = vsel %vm625, %v2966, %v2968
      %2970 = vrot.lane.b32.xlu0 %v2300, 64
      %v2971 = vpop.permute.xlu0 %2970
      %2972 = vrot.lane.b32.xlu0 %v2302, 64
      %v2973 = vpop.permute.xlu0 %2972
      %2974 = vrot.lane.b32.xlu0 %v2305, 64
      %v2975 = vpop.permute.xlu0 %2974
      %2976 = vrot.lane.b32.xlu0 %v2307, 64
      %v2977 = vpop.permute.xlu0 %2976
      %2978 = vrot.lane.b32.xlu0 %v2310, 64
      %v2979 = vpop.permute.xlu0 %2978
      %2980 = vrot.lane.b32.xlu0 %v2312, 64
      %v2981 = vpop.permute.xlu0 %2980
      %2982 = vrot.lane.b32.xlu0 %v2315, 64
      %v2983 = vpop.permute.xlu0 %2982
      %2984 = vrot.lane.b32.xlu0 %v2317, 64
      %v2985 = vpop.permute.xlu0 %2984
      %2986 = vrot.lane.b32.xlu0 %v2320, 64
      %v2987 = vpop.permute.xlu0 %2986
      %2988 = vrot.lane.b32.xlu0 %v2322, 64
      %v2989 = vpop.permute.xlu0 %2988
      %2990 = vrot.lane.b32.xlu0 %v2325, 64
      %v2991 = vpop.permute.xlu0 %2990
      %2992 = vrot.lane.b32.xlu0 %v2327, 64
      %v2993 = vpop.permute.xlu0 %2992
      %2994 = vrot.lane.b32.xlu0 %v2330, 64
      %v2995 = vpop.permute.xlu0 %2994
      %2996 = vrot.lane.b32.xlu0 %v2332, 64
      %v2997 = vpop.permute.xlu0 %2996
      %2998 = vrot.lane.b32.xlu0 %v2335, 64
      %v2999 = vpop.permute.xlu0 %2998
      %3000 = vrot.lane.b32.xlu0 %v2337, 64
      %v3001 = vpop.permute.xlu0 %3000
      %3002 = vrot.lane.b32.xlu0 %v2340, 64
      %v3003 = vpop.permute.xlu0 %3002
      %3004 = vrot.lane.b32.xlu0 %v2342, 64
      %v3005 = vpop.permute.xlu0 %3004
      %3006 = vrot.lane.b32.xlu0 %v2345, 64
      %v3007 = vpop.permute.xlu0 %3006
      %3008 = vrot.lane.b32.xlu0 %v2347, 64
      %v3009 = vpop.permute.xlu0 %3008
      %3010 = vrot.lane.b32.xlu0 %v2350, 64
      %v3011 = vpop.permute.xlu0 %3010
      %3012 = vrot.lane.b32.xlu0 %v2352, 64
      %v3013 = vpop.permute.xlu0 %3012
      %3014 = vrot.lane.b32.xlu0 %v2355, 64
      %v3015 = vpop.permute.xlu0 %3014
      %3016 = vrot.lane.b32.xlu0 %v2357, 64
      %v3017 = vpop.permute.xlu0 %3016
      %3018 = vrot.lane.b32.xlu0 %v2360, 64
      %v3019 = vpop.permute.xlu0 %3018
      %3020 = vrot.lane.b32.xlu0 %v2362, 64
      %v3021 = vpop.permute.xlu0 %3020
      %3022 = vrot.lane.b32.xlu0 %v2365, 64
      %v3023 = vpop.permute.xlu0 %3022
      %3024 = vrot.lane.b32.xlu0 %v2367, 64
      %v3025 = vpop.permute.xlu0 %3024
      %3026 = vrot.lane.b32.xlu0 %v2666, 64
      %v3027 = vpop.permute.xlu0 %3026
      %3028 = vrot.lane.b32.xlu0 %v2668, 64
      %v3029 = vpop.permute.xlu0 %3028
      %3030 = vrot.lane.b32.xlu0 %v2967, 64
      %v3031 = vpop.permute.xlu0 %3030
      %3032 = vrot.lane.b32.xlu0 %v2969, 64
      %v3033 = vpop.permute.xlu0 %3032
      %v3066 = vsel %vm1436, %v2010, %v2193
      %v3067 = vsel %vm1436, %v2011, %v2195
      %v3068 = vsel %vm1436, %v2013, %v2197
      %v3069 = vsel %vm1436, %v2014, %v2199
      %v3070 = vsel %vm1436, %v2016, %v2201
      %v3071 = vsel %vm1436, %v2017, %v2203
      %v3072 = vsel %vm1436, %v2019, %v2205
      %v3073 = vsel %vm1436, %v2020, %v2207
      %v3074 = vsel %vm1436, %v2022, %v2209
      %v3075 = vsel %vm1436, %v2023, %v2211
      %v3076 = vsel %vm1436, %v2025, %v2213
      %v3077 = vsel %vm1436, %v2026, %v2215
      %v3078 = vsel %vm1436, %v2028, %v2217
      %v3079 = vsel %vm1436, %v2029, %v2219
      %v3080 = vsel %vm1436, %v2031, %v2221
      %v3081 = vsel %vm1436, %v2032, %v2223
      %v3082 = vsel %vm1436, %v2034, %v2225
      %v3083 = vsel %vm1436, %v2035, %v2227
      %v3084 = vsel %vm1436, %v2037, %v2229
      %v3085 = vsel %vm1436, %v2038, %v2231
      %v3086 = vsel %vm1436, %v2040, %v2233
      %v3087 = vsel %vm1436, %v2041, %v2235
      %v3088 = vsel %vm1436, %v2043, %v2237
      %v3089 = vsel %vm1436, %v2044, %v2239
      %v3090 = vsel %vm1436, %v2046, %v2241
      %v3091 = vsel %vm1436, %v2047, %v2243
      %v3092 = vsel %vm1436, %v2049, %v2245
      %v3093 = vsel %vm1436, %v2050, %v2247
      %v3094 = vsel %vm1436, %v2052, %v2249
      %v3095 = vsel %vm1436, %v2053, %v2251
      %v3096 = vsel %vm1436, %v2055, %v2253
      %v3097 = vsel %vm1436, %v2056, %v2255
      %v3098 = vsel %vm1502, %v3066, %v2369
      %v3099 = vsel %vm1502, %v3067, %v2371
      %v3100 = vsel %vm1502, %v3068, %v2373
      %v3101 = vsel %vm1502, %v3069, %v2375
      %v3102 = vsel %vm1502, %v3070, %v2377
      %v3103 = vsel %vm1502, %v3071, %v2379
      %v3104 = vsel %vm1502, %v3072, %v2381
      %v3105 = vsel %vm1502, %v3073, %v2383
      %v3106 = vsel %vm1502, %v3074, %v2385
      %v3107 = vsel %vm1502, %v3075, %v2387
      %v3108 = vsel %vm1502, %v3076, %v2389
      %v3109 = vsel %vm1502, %v3077, %v2391
      %v3110 = vsel %vm1502, %v3078, %v2393
      %v3111 = vsel %vm1502, %v3079, %v2395
      %v3112 = vsel %vm1502, %v3080, %v2397
      %v3113 = vsel %vm1502, %v3081, %v2399
      %v3114 = vsel %vm1502, %v3082, %v2401
      %v3115 = vsel %vm1502, %v3083, %v2403
      %v3116 = vsel %vm1502, %v3084, %v2405
      %v3117 = vsel %vm1502, %v3085, %v2407
      %v3118 = vsel %vm1502, %v3086, %v2409
      %v3119 = vsel %vm1502, %v3087, %v2411
      %v3120 = vsel %vm1502, %v3088, %v2413
      %v3121 = vsel %vm1502, %v3089, %v2415
      %v3122 = vsel %vm1502, %v3090, %v2417
      %v3123 = vsel %vm1502, %v3091, %v2419
      %v3124 = vsel %vm1502, %v3092, %v2421
      %v3125 = vsel %vm1502, %v3093, %v2423
      %v3126 = vsel %vm1502, %v3094, %v2425
      %v3127 = vsel %vm1502, %v3095, %v2427
      %v3128 = vsel %vm1502, %v3096, %v2429
      %v3129 = vsel %vm1502, %v3097, %v2431
      %v3130 = vsel %vm1568, %v3098, %v2467
      %v3131 = vsel %vm1568, %v3099, %v2469
      %v3132 = vsel %vm1568, %v3100, %v2471
      %v3133 = vsel %vm1568, %v3101, %v2473
      %v3134 = vsel %vm1568, %v3102, %v2475
      %v3135 = vsel %vm1568, %v3103, %v2477
      %v3136 = vsel %vm1568, %v3104, %v2479
      %v3137 = vsel %vm1568, %v3105, %v2481
      %v3138 = vsel %vm1568, %v3106, %v2483
      %v3139 = vsel %vm1568, %v3107, %v2485
      %v3140 = vsel %vm1568, %v3108, %v2487
      %v3141 = vsel %vm1568, %v3109, %v2489
      %v3142 = vsel %vm1568, %v3110, %v2491
      %v3143 = vsel %vm1568, %v3111, %v2493
      %v3144 = vsel %vm1568, %v3112, %v2495
      %v3145 = vsel %vm1568, %v3113, %v2497
      %v3146 = vsel %vm1568, %v3114, %v2499
      %v3147 = vsel %vm1568, %v3115, %v2501
      %v3148 = vsel %vm1568, %v3116, %v2503
      %v3149 = vsel %vm1568, %v3117, %v2505
      %v3150 = vsel %vm1568, %v3118, %v2507
      %v3151 = vsel %vm1568, %v3119, %v2509
      %v3152 = vsel %vm1568, %v3120, %v2511
      %v3153 = vsel %vm1568, %v3121, %v2513
      %v3154 = vsel %vm1568, %v3122, %v2515
      %v3155 = vsel %vm1568, %v3123, %v2517
      %v3156 = vsel %vm1568, %v3124, %v2519
      %v3157 = vsel %vm1568, %v3125, %v2521
      %v3158 = vsel %vm1568, %v3126, %v2523
      %v3159 = vsel %vm1568, %v3127, %v2525
      %v3160 = vsel %vm1568, %v3128, %v2527
      %v3161 = vsel %vm1568, %v3129, %v2529
      %v3162 = vsel %vm1634, %v3130, %v2569
      %v3163 = vsel %vm1634, %v3131, %v2571
      %v3164 = vsel %vm1634, %v3132, %v2573
      %v3165 = vsel %vm1634, %v3133, %v2575
      %v3166 = vsel %vm1634, %v3134, %v2577
      %v3167 = vsel %vm1634, %v3135, %v2579
      %v3168 = vsel %vm1634, %v3136, %v2581
      %v3169 = vsel %vm1634, %v3137, %v2583
      %v3170 = vsel %vm1634, %v3138, %v2585
      %v3171 = vsel %vm1634, %v3139, %v2587
      %v3172 = vsel %vm1634, %v3140, %v2589
      %v3173 = vsel %vm1634, %v3141, %v2591
      %v3174 = vsel %vm1634, %v3142, %v2593
      %v3175 = vsel %vm1634, %v3143, %v2595
      %v3176 = vsel %vm1634, %v3144, %v2597
      %v3177 = vsel %vm1634, %v3145, %v2599
      %v3178 = vsel %vm1634, %v3146, %v2601
      %v3179 = vsel %vm1634, %v3147, %v2603
      %v3180 = vsel %vm1634, %v3148, %v2605
      %v3181 = vsel %vm1634, %v3149, %v2607
      %v3182 = vsel %vm1634, %v3150, %v2609
      %v3183 = vsel %vm1634, %v3151, %v2611
      %v3184 = vsel %vm1634, %v3152, %v2613
      %v3185 = vsel %vm1634, %v3153, %v2615
      %v3186 = vsel %vm1634, %v3154, %v2617
      %v3187 = vsel %vm1634, %v3155, %v2619
      %v3188 = vsel %vm1634, %v3156, %v2621
      %v3189 = vsel %vm1634, %v3157, %v2623
      %v3190 = vsel %vm1634, %v3158, %v2625
      %v3191 = vsel %vm1634, %v3159, %v2627
      %v3192 = vsel %vm1634, %v3160, %v2629
      %v3193 = vsel %vm1634, %v3161, %v2631
      %vm3194 = vcmask 326656
      %v3195 = vsel %vm3194, %v3162, %v2670
      %v3196 = vsel %vm3194, %v3163, %v2672
      %v3197 = vsel %vm3194, %v3164, %v2674
      %v3198 = vsel %vm3194, %v3165, %v2676
      %v3199 = vsel %vm3194, %v3166, %v2678
      %v3200 = vsel %vm3194, %v3167, %v2680
      %v3201 = vsel %vm3194, %v3168, %v2682
      %v3202 = vsel %vm3194, %v3169, %v2684
      %v3203 = vsel %vm3194, %v3170, %v2686
      %v3204 = vsel %vm3194, %v3171, %v2688
      %v3205 = vsel %vm3194, %v3172, %v2690
      %v3206 = vsel %vm3194, %v3173, %v2692
      %v3207 = vsel %vm3194, %v3174, %v2694
      %v3208 = vsel %vm3194, %v3175, %v2696
      %v3209 = vsel %vm3194, %v3176, %v2698
      %v3210 = vsel %vm3194, %v3177, %v2700
      %v3211 = vsel %vm3194, %v3178, %v2702
      %v3212 = vsel %vm3194, %v3179, %v2704
      %v3213 = vsel %vm3194, %v3180, %v2706
      %v3214 = vsel %vm3194, %v3181, %v2708
      %v3215 = vsel %vm3194, %v3182, %v2710
      %v3216 = vsel %vm3194, %v3183, %v2712
      %v3217 = vsel %vm3194, %v3184, %v2714
      %v3218 = vsel %vm3194, %v3185, %v2716
      %v3219 = vsel %vm3194, %v3186, %v2718
      %v3220 = vsel %vm3194, %v3187, %v2720
      %v3221 = vsel %vm3194, %v3188, %v2722
      %v3222 = vsel %vm3194, %v3189, %v2724
      %v3223 = vsel %vm3194, %v3190, %v2726
      %v3224 = vsel %vm3194, %v3191, %v2728
      %v3225 = vsel %vm3194, %v3192, %v2730
      %v3226 = vsel %vm3194, %v3193, %v2732
      %vm3227 = vcmask 392192
      %v3228 = vsel %vm3227, %v3195, %v2768
      %v3229 = vsel %vm3227, %v3196, %v2770
      %v3230 = vsel %vm3227, %v3197, %v2772
      %v3231 = vsel %vm3227, %v3198, %v2774
      %v3232 = vsel %vm3227, %v3199, %v2776
      %v3233 = vsel %vm3227, %v3200, %v2778
      %v3234 = vsel %vm3227, %v3201, %v2780
      %v3235 = vsel %vm3227, %v3202, %v2782
      %v3236 = vsel %vm3227, %v3203, %v2784
      %v3237 = vsel %vm3227, %v3204, %v2786
      %v3238 = vsel %vm3227, %v3205, %v2788
      %v3239 = vsel %vm3227, %v3206, %v2790
      %v3240 = vsel %vm3227, %v3207, %v2792
      %v3241 = vsel %vm3227, %v3208, %v2794
      %v3242 = vsel %vm3227, %v3209, %v2796
      %v3243 = vsel %vm3227, %v3210, %v2798
      %v3244 = vsel %vm3227, %v3211, %v2800
      %v3245 = vsel %vm3227, %v3212, %v2802
      %v3246 = vsel %vm3227, %v3213, %v2804
      %v3247 = vsel %vm3227, %v3214, %v2806
      %v3248 = vsel %vm3227, %v3215, %v2808
      %v3249 = vsel %vm3227, %v3216, %v2810
      %v3250 = vsel %vm3227, %v3217, %v2812
      %v3251 = vsel %vm3227, %v3218, %v2814
      %v3252 = vsel %vm3227, %v3219, %v2816
      %v3253 = vsel %vm3227, %v3220, %v2818
      %v3254 = vsel %vm3227, %v3221, %v2820
      %v3255 = vsel %vm3227, %v3222, %v2822
      %v3256 = vsel %vm3227, %v3223, %v2824
      %v3257 = vsel %vm3227, %v3224, %v2826
      %v3258 = vsel %vm3227, %v3225, %v2828
      %v3259 = vsel %vm3227, %v3226, %v2830
      %vm3260 = vcmask 457728
      %v3261 = vsel %vm3260, %v3228, %v2870
      %v3262 = vsel %vm3260, %v3229, %v2872
      %v3263 = vsel %vm3260, %v3230, %v2874
      %v3264 = vsel %vm3260, %v3231, %v2876
      %v3265 = vsel %vm3260, %v3232, %v2878
      %v3266 = vsel %vm3260, %v3233, %v2880
      %v3267 = vsel %vm3260, %v3234, %v2882
      %v3268 = vsel %vm3260, %v3235, %v2884
      %v3269 = vsel %vm3260, %v3236, %v2886
      %v3270 = vsel %vm3260, %v3237, %v2888
      %v3271 = vsel %vm3260, %v3238, %v2890
      %v3272 = vsel %vm3260, %v3239, %v2892
      %v3273 = vsel %vm3260, %v3240, %v2894
      %v3274 = vsel %vm3260, %v3241, %v2896
      %v3275 = vsel %vm3260, %v3242, %v2898
      %v3276 = vsel %vm3260, %v3243, %v2900
      %v3277 = vsel %vm3260, %v3244, %v2902
      %v3278 = vsel %vm3260, %v3245, %v2904
      %v3279 = vsel %vm3260, %v3246, %v2906
      %v3280 = vsel %vm3260, %v3247, %v2908
      %v3281 = vsel %vm3260, %v3248, %v2910
      %v3282 = vsel %vm3260, %v3249, %v2912
      %v3283 = vsel %vm3260, %v3250, %v2914
      %v3284 = vsel %vm3260, %v3251, %v2916
      %v3285 = vsel %vm3260, %v3252, %v2918
      %v3286 = vsel %vm3260, %v3253, %v2920
      %v3287 = vsel %vm3260, %v3254, %v2922
      %v3288 = vsel %vm3260, %v3255, %v2924
      %v3289 = vsel %vm3260, %v3256, %v2926
      %v3290 = vsel %vm3260, %v3257, %v2928
      %v3291 = vsel %vm3260, %v3258, %v2930
      %v3292 = vsel %vm3260, %v3259, %v2932
      %vm3293 = vcmask 523264
      %v3294 = vsel %vm3293, %v3261, %v2971
      %v3295 = vsel %vm3293, %v3262, %v2973
      %v3296 = vsel %vm3293, %v3263, %v2975
      %v3297 = vsel %vm3293, %v3264, %v2977
      %v3298 = vsel %vm3293, %v3265, %v2979
      %v3299 = vsel %vm3293, %v3266, %v2981
      %v3300 = vsel %vm3293, %v3267, %v2983
      %v3301 = vsel %vm3293, %v3268, %v2985
      %v3302 = vsel %vm3293, %v3269, %v2987
      %v3303 = vsel %vm3293, %v3270, %v2989
      %v3304 = vsel %vm3293, %v3271, %v2991
      %v3305 = vsel %vm3293, %v3272, %v2993
      %v3306 = vsel %vm3293, %v3273, %v2995
      %v3307 = vsel %vm3293, %v3274, %v2997
      %v3308 = vsel %vm3293, %v3275, %v2999
      %v3309 = vsel %vm3293, %v3276, %v3001
      %v3310 = vsel %vm3293, %v3277, %v3003
      %v3311 = vsel %vm3293, %v3278, %v3005
      %v3312 = vsel %vm3293, %v3279, %v3007
      %v3313 = vsel %vm3293, %v3280, %v3009
      %v3314 = vsel %vm3293, %v3281, %v3011
      %v3315 = vsel %vm3293, %v3282, %v3013
      %v3316 = vsel %vm3293, %v3283, %v3015
      %v3317 = vsel %vm3293, %v3284, %v3017
      %v3318 = vsel %vm3293, %v3285, %v3019
      %v3319 = vsel %vm3293, %v3286, %v3021
      %v3320 = vsel %vm3293, %v3287, %v3023
      %v3321 = vsel %vm3293, %v3288, %v3025
      %v3322 = vsel %vm3293, %v3289, %v3027
      %v3323 = vsel %vm3293, %v3290, %v3029
      %v3324 = vsel %vm3293, %v3291, %v3031
      %v3325 = vsel %vm3293, %v3292, %v3033
      %v3326 = vld [vmem:[%s3] sm:$0xff]
      %v3327 = vld [vmem:[%s3 + $0x8] sm:$0xff]
      %v3328 = vld [vmem:[%s3 + $0x10] sm:$0xff]
      %v3329 = vld [vmem:[%s3 + $0x18] sm:$0xff]
      %v3330 = vld [vmem:[%s3 + $0x20] sm:$0xff]
      %v3331 = vld [vmem:[%s3 + $0x28] sm:$0xff]
      %v3332 = vld [vmem:[%s3 + $0x30] sm:$0xff]
      %v3333 = vld [vmem:[%s3 + $0x38] sm:$0xff]
      %v3334 = vld [vmem:[%s3 + $0x40] sm:$0xff]
      %v3335 = vld [vmem:[%s4] sm:$0x1]
      %v3337 = vperm.slane %v3335, 0
      %vm3339 = vcmask 588800
      %v3341 = vsel %vm3339, %v3294, 0
      %v3344 = vsel %vm3339, %v3295, 0
      %v3347 = vsel %vm3339, %v3296, 0
      %v3350 = vsel %vm3339, %v3297, 0
      %v3353 = vsel %vm3339, %v3298, 0
      %v3356 = vsel %vm3339, %v3299, 0
      %v3359 = vsel %vm3339, %v3300, 0
      %v3362 = vsel %vm3339, %v3301, 0
      %v3365 = vsel %vm3339, %v3302, 0
      %v3368 = vsel %vm3339, %v3303, 0
      %v3371 = vsel %vm3339, %v3304, 0
      %v3374 = vsel %vm3339, %v3305, 0
      %v3377 = vsel %vm3339, %v3306, 0
      %v3380 = vsel %vm3339, %v3307, 0
      %v3383 = vsel %vm3339, %v3308, 0
      %v3386 = vsel %vm3339, %v3309, 0
      %v3389 = vsel %vm3339, %v3310, 0
      %v3392 = vsel %vm3339, %v3311, 0
      %v3395 = vsel %vm3339, %v3312, 0
      %v3398 = vsel %vm3339, %v3313, 0
      %v3401 = vsel %vm3339, %v3314, 0
      %v3404 = vsel %vm3339, %v3315, 0
      %v3407 = vsel %vm3339, %v3316, 0
      %v3410 = vsel %vm3339, %v3317, 0
      %v3413 = vsel %vm3339, %v3318, 0
      %v3416 = vsel %vm3339, %v3319, 0
      %v3419 = vsel %vm3339, %v3320, 0
      %v3422 = vsel %vm3339, %v3321, 0
      %v3425 = vsel %vm3339, %v3322, 0
      %v3428 = vsel %vm3339, %v3323, 0
      %v3431 = vsel %vm3339, %v3324, 0
      %v3434 = vsel %vm3339, %v3325, 0
      %3436 = vmatpush.msra.mxu0 0.0
      %3437 = vmatpush.msra.mxu0 0.0
      %3438 = vmatpush.msra.mxu0 0.0
      %3439 = vmatpush.msra.mxu0 0.0
      %3440 = vmatpush.msra.mxu0 0.0
      %3441 = vmatpush.msra.mxu0 0.0
      %3442 = vmatpush.msra.mxu0 0.0
      %3443 = vmatpush.msra.mxu0 %v3334
      %3444 = vmatpush.msra.mxu0 %v3333
      %3445 = vmatpush.msra.mxu0 %v3332
      %3446 = vmatpush.msra.mxu0 %v3331
      %3447 = vmatpush.msra.mxu0 %v3330
      %3448 = vmatpush.msra.mxu0 %v3329
      %3449 = vmatpush.msra.mxu0 %v3328
      %3450 = vmatpush.msra.mxu0 %v3327
      %3451 = vmatpush.msra.mxu0 %v3326
      %3452 = vmatmul.f32.gmra.mxu0 %v3341
      %v3453 = vpop.f32.mrf.mxu0
      %v3454 = vadd.f32 %v3337, %v3453
      %3455 = vmatmul.f32.gmra.mxu0 %v3344
      %v3456 = vpop.f32.mrf.mxu0
      %v3457 = vadd.f32 %v3337, %v3456
      %3458 = vmatmul.f32.gmra.mxu0 %v3347
      %v3459 = vpop.f32.mrf.mxu0
      %v3460 = vadd.f32 %v3337, %v3459
      %3461 = vmatmul.f32.gmra.mxu0 %v3350
      %v3462 = vpop.f32.mrf.mxu0
      %v3463 = vadd.f32 %v3337, %v3462
      %3464 = vmatmul.f32.gmra.mxu0 %v3353
      %v3465 = vpop.f32.mrf.mxu0
      %v3466 = vadd.f32 %v3337, %v3465
      %3467 = vmatmul.f32.gmra.mxu0 %v3356
      %v3468 = vpop.f32.mrf.mxu0
      %v3469 = vadd.f32 %v3337, %v3468
      %3470 = vmatmul.f32.gmra.mxu0 %v3359
      %v3471 = vpop.f32.mrf.mxu0
      %v3472 = vadd.f32 %v3337, %v3471
      %3473 = vmatmul.f32.gmra.mxu0 %v3362
      %v3474 = vpop.f32.mrf.mxu0
      %v3475 = vadd.f32 %v3337, %v3474
      %3476 = vmatmul.f32.gmra.mxu0 %v3365
      %v3477 = vpop.f32.mrf.mxu0
      %v3478 = vadd.f32 %v3337, %v3477
      %3479 = vmatmul.f32.gmra.mxu0 %v3368
      %v3480 = vpop.f32.mrf.mxu0
      %v3481 = vadd.f32 %v3337, %v3480
      %3482 = vmatmul.f32.gmra.mxu0 %v3371
      %v3483 = vpop.f32.mrf.mxu0
      %v3484 = vadd.f32 %v3337, %v3483
      %3485 = vmatmul.f32.gmra.mxu0 %v3374
      %v3486 = vpop.f32.mrf.mxu0
      %v3487 = vadd.f32 %v3337, %v3486
      %3488 = vmatmul.f32.gmra.mxu0 %v3377
      %v3489 = vpop.f32.mrf.mxu0
      %v3490 = vadd.f32 %v3337, %v3489
      %3491 = vmatmul.f32.gmra.mxu0 %v3380
      %v3492 = vpop.f32.mrf.mxu0
      %v3493 = vadd.f32 %v3337, %v3492
      %3494 = vmatmul.f32.gmra.mxu0 %v3383
      %v3495 = vpop.f32.mrf.mxu0
      %v3496 = vadd.f32 %v3337, %v3495
      %3497 = vmatmul.f32.gmra.mxu0 %v3386
      %v3498 = vpop.f32.mrf.mxu0
      %v3499 = vadd.f32 %v3337, %v3498
      %3500 = vmatmul.f32.gmra.mxu0 %v3389
      %v3501 = vpop.f32.mrf.mxu0
      %v3502 = vadd.f32 %v3337, %v3501
      %3503 = vmatmul.f32.gmra.mxu0 %v3392
      %v3504 = vpop.f32.mrf.mxu0
      %v3505 = vadd.f32 %v3337, %v3504
      %3506 = vmatmul.f32.gmra.mxu0 %v3395
      %v3507 = vpop.f32.mrf.mxu0
      %v3508 = vadd.f32 %v3337, %v3507
      %3509 = vmatmul.f32.gmra.mxu0 %v3398
      %v3510 = vpop.f32.mrf.mxu0
      %v3511 = vadd.f32 %v3337, %v3510
      %3512 = vmatmul.f32.gmra.mxu0 %v3401
      %v3513 = vpop.f32.mrf.mxu0
      %v3514 = vadd.f32 %v3337, %v3513
      %3515 = vmatmul.f32.gmra.mxu0 %v3404
      %v3516 = vpop.f32.mrf.mxu0
      %v3517 = vadd.f32 %v3337, %v3516
      %3518 = vmatmul.f32.gmra.mxu0 %v3407
      %v3519 = vpop.f32.mrf.mxu0
      %v3520 = vadd.f32 %v3337, %v3519
      %3521 = vmatmul.f32.gmra.mxu0 %v3410
      %v3522 = vpop.f32.mrf.mxu0
      %v3523 = vadd.f32 %v3337, %v3522
      %3524 = vmatmul.f32.gmra.mxu0 %v3413
      %v3525 = vpop.f32.mrf.mxu0
      %v3526 = vadd.f32 %v3337, %v3525
      %3527 = vmatmul.f32.gmra.mxu0 %v3416
      %v3528 = vpop.f32.mrf.mxu0
      %v3529 = vadd.f32 %v3337, %v3528
      %3530 = vmatmul.f32.gmra.mxu0 %v3419
      %v3531 = vpop.f32.mrf.mxu0
      %v3532 = vadd.f32 %v3337, %v3531
      %3533 = vmatmul.f32.gmra.mxu0 %v3422
      %v3534 = vpop.f32.mrf.mxu0
      %v3535 = vadd.f32 %v3337, %v3534
      %3536 = vmatmul.f32.gmra.mxu0 %v3425
      %v3537 = vpop.f32.mrf.mxu0
      %v3538 = vadd.f32 %v3337, %v3537
      %3539 = vmatmul.f32.gmra.mxu0 %v3428
      %v3540 = vpop.f32.mrf.mxu0
      %v3541 = vadd.f32 %v3337, %v3540
      %3542 = vmatmul.f32.gmra.mxu0 %v3431
      %v3543 = vpop.f32.mrf.mxu0
      %v3544 = vadd.f32 %v3337, %v3543
      %3545 = vmatmul.f32.gmra.mxu0 %v3434
      %v3546 = vpop.f32.mrf.mxu0
      %v3547 = vadd.f32 %v3337, %v3546
      %3548 = vdwg.mxu0
      %3549 = vst.msk [vmem:[%s224] sm:$0xff] %vm225, %v3454
      %3550 = vst.msk [vmem:[%s224 + $0x8] sm:$0xff] %vm225, %v3457
      %3551 = vst.msk [vmem:[%s224 + $0x10] sm:$0xff] %vm225, %v3460
      %3552 = vst.msk [vmem:[%s224 + $0x18] sm:$0xff] %vm225, %v3463
      %3553 = vst.msk [vmem:[%s224 + $0x20] sm:$0xff] %vm225, %v3466
      %3554 = vst.msk [vmem:[%s224 + $0x28] sm:$0xff] %vm225, %v3469
      %3555 = vst.msk [vmem:[%s224 + $0x30] sm:$0xff] %vm225, %v3472
      %3556 = vst.msk [vmem:[%s224 + $0x38] sm:$0xff] %vm225, %v3475
      %3557 = vst.msk [vmem:[%s224 + $0x40] sm:$0xff] %vm225, %v3478
      %3558 = vst.msk [vmem:[%s224 + $0x48] sm:$0xff] %vm225, %v3481
      %3559 = vst.msk [vmem:[%s224 + $0x50] sm:$0xff] %vm225, %v3484
      %3560 = vst.msk [vmem:[%s224 + $0x58] sm:$0xff] %vm225, %v3487
      %3561 = vst.msk [vmem:[%s224 + $0x60] sm:$0xff] %vm225, %v3490
      %3562 = vst.msk [vmem:[%s224 + $0x68] sm:$0xff] %vm225, %v3493
      %3563 = vst.msk [vmem:[%s224 + $0x70] sm:$0xff] %vm225, %v3496
      %3564 = vst.msk [vmem:[%s224 + $0x78] sm:$0xff] %vm225, %v3499
      %3565 = vst.msk [vmem:[%s224 + $0x80] sm:$0xff] %vm225, %v3502
      %3566 = vst.msk [vmem:[%s224 + $0x88] sm:$0xff] %vm225, %v3505
      %3567 = vst.msk [vmem:[%s224 + $0x90] sm:$0xff] %vm225, %v3508
      %3568 = vst.msk [vmem:[%s224 + $0x98] sm:$0xff] %vm225, %v3511
      %3569 = vst.msk [vmem:[%s224 + $0xa0] sm:$0xff] %vm225, %v3514
      %3570 = vst.msk [vmem:[%s224 + $0xa8] sm:$0xff] %vm225, %v3517
      %3571 = vst.msk [vmem:[%s224 + $0xb0] sm:$0xff] %vm225, %v3520
      %3572 = vst.msk [vmem:[%s224 + $0xb8] sm:$0xff] %vm225, %v3523
      %3573 = vst.msk [vmem:[%s224 + $0xc0] sm:$0xff] %vm225, %v3526
      %3574 = vst.msk [vmem:[%s224 + $0xc8] sm:$0xff] %vm225, %v3529
      %3575 = vst.msk [vmem:[%s224 + $0xd0] sm:$0xff] %vm225, %v3532
      %3576 = vst.msk [vmem:[%s224 + $0xd8] sm:$0xff] %vm225, %v3535
      %3577 = vst.msk [vmem:[%s224 + $0xe0] sm:$0xff] %vm225, %v3538
      %3578 = vst.msk [vmem:[%s224 + $0xe8] sm:$0xff] %vm225, %v3541
      %3579 = vst.msk [vmem:[%s224 + $0xf0] sm:$0xff] %vm225, %v3544
      %3580 = vst.msk [vmem:[%s224 + $0xf8] sm:$0xff] %vm225, %v3547
      %p3581 = scmp.lt.s32.totalorder %s16, 1
      %s3582 = scalar_select %p3581, %s16, 1
      %s3583 = smul.addr %s3582, 32
      %s3584 = smul.addr %s3583, 8
      %s3585 = scalar_lea.vmem %s5, %s3584
      // Predicated region
      $region41: #{tpu_custom_call.1} parent=39 // pred_check
        %p3586 = pneg %p144
      $region42: #{tpu_custom_call.1} parent=39 // pred_check_branch
        %3588 = sbr.rel (%p3586) target = $region44
      $region43: #{tpu_custom_call.1} parent=39 // pred_region
        _
      $region44: #{tpu_custom_call.1} parent=39 // pred_fallthru
        _
    $region40: #{tpu_custom_call.1} parent=5 // pred_fallthru
      _
    %p3589 = scmp.le.s32.totalorder 2, %s11
    // Predicated region
    $region45: #{tpu_custom_call.1} parent=5 // pred_check
      %p3590 = pneg %p3589
    $region46: #{tpu_custom_call.1} parent=5 // pred_check_branch
      %3592 = sbr.rel (%p3590) target = $region48
    $region47: #{tpu_custom_call.1} parent=5 // pred_region
      %s3593 = ssub.s32 %s11, 2
      // Predicated region
      $region49: #{tpu_custom_call.1} parent=47 // pred_check
        %p3594 = pneg %p150
      $region50: #{tpu_custom_call.1} parent=47 // pred_check_branch
        %3596 = sbr.rel (%p3594) target = $region52
      $region51: #{tpu_custom_call.1} parent=47 // pred_region
        %p3597 = scmp.lt.s32.totalorder %s17, 1
        %s3598 = scalar_select %p3597, %s17, 1
        %s3599 = smul.addr %s3598, 32
        %s3600 = smul.addr %s3599, 8
        %s3601 = scalar_lea.vmem %s5, %s3600
      $region52: #{tpu_custom_call.1} parent=47 // pred_fallthru
        _
    $region48: #{tpu_custom_call.1} parent=5 // pred_fallthru
      _
  $region6: #{tpu_custom_call.1} parent=0 // loop_footer
    %s15 = sadd.s32 1, %s11
  $region7: #{tpu_custom_call.1} parent=0 // loop_footer_branch
    %10 = sbr.rel target = $region3
  $region8: #{tpu_custom_call.1} parent=0 // loop_exit
    _

</llo_original>
